<compile_context>
chip_gen: v7x
topology: tpu7x:2x2x1
jax: 0.10.0
libtpu: 0.0.40
codegen_flags: <defaults>
</compile_context>

<pallas_src>
import jax
import jax.numpy as jnp
from jax.experimental import pallas as pl
from jax.experimental.pallas import tpu as pltpu


TILE_M = 512  # rows of the im2col matrix per grid step (~85% of HBM roofline)


def _round_up(x, m):
    return ((x + m - 1) // m) * m


# ---------------------------------------------------------------------------
# Pallas kernel: one M-tile of (patches @ folded_weights) + bias, then ReLU.
# Weights already carry the folded BN scale, so this is a pure MXU matmul
# (bf16 inputs, f32 accumulate) + broadcast bias add + ReLU on the VPU.
# ---------------------------------------------------------------------------
def _matmul_bias_relu_kernel(p_ref, w_ref, b_ref, o_ref):
    acc = jnp.dot(p_ref[...], w_ref[...], preferred_element_type=jnp.float32)
    o_ref[...] = jnp.maximum(acc + b_ref[...], 0.0).astype(o_ref.dtype)


def _fused_matmul_bias_relu(patches, w2, bias):
    """patches: (M, K) bf16, w2: (K, C) bf16, bias: (C,) f32 -> (M, C) f32."""
    m, k = patches.shape
    cout = w2.shape[1]

    tile_m = min(TILE_M, _round_up(m, 8))
    m_pad = _round_up(m, tile_m)
    if m_pad != m:
        patches = jnp.pad(patches, ((0, m_pad - m), (0, 0)))
    grid = (m_pad // tile_m,)

    cost = pl.CostEstimate(
        flops=2 * m_pad * k * cout,
        transcendentals=0,
        bytes_accessed=2 * m_pad * k + 2 * k * cout + 4 * m_pad * cout,
    )

    out = pl.pallas_call(
        _matmul_bias_relu_kernel,
        out_shape=jax.ShapeDtypeStruct((m_pad, cout), jnp.float32),
        grid_spec=pltpu.PrefetchScalarGridSpec(
            num_scalar_prefetch=0,
            grid=grid,
            in_specs=[
                pl.BlockSpec((tile_m, k), lambda i: (i, 0)),   # pipelined M tiles
                pl.BlockSpec((k, cout), lambda i: (0, 0)),     # weights stay resident
                pl.BlockSpec((1, cout), lambda i: (0, 0)),     # bias stays resident
            ],
            out_specs=pl.BlockSpec((tile_m, cout), lambda i: (i, 0)),
        ),
        compiler_params=pltpu.CompilerParams(
            dimension_semantics=("parallel",),         # megacore sharding on v7x
            vmem_limit_bytes=32 * 1024 * 1024,         # safe on v5e/v6e/v7x, >= worst tile need
        ),
        cost_estimate=cost,
    )(patches, w2, bias.reshape(1, cout))
    return out[:m]


# ---------------------------------------------------------------------------
# Conv + (folded) BN + ReLU.  im2col glue in JAX (fused under jit); the
# matmul/bias/ReLU hot path is the Pallas kernel above.
# ---------------------------------------------------------------------------
def conv_bn_relu(x, params, stride=(1, 1), padding="valid"):
    """x: (N, H, W, C) f32.  params = (w_folded (kh,kw,cin,cout) bf16, bias (cout,) f32)."""
    w, bias = params
    kh, kw, cin, cout = w.shape
    sh, sw = stride

    if padding == "same":
        ph, pw = (kh - 1) // 2, (kw - 1) // 2
        x = jnp.pad(x, ((0, 0), (ph, kh - 1 - ph), (pw, kw - 1 - pw), (0, 0)))

    n, h, wdim, c = x.shape
    oh = (h - kh) // sh + 1
    ow = (wdim - kw) // sw + 1

    # TODO(synk): replace wrapper-side im2col with in-kernel window gathering
    # (manual DMA over overlapping row windows) to remove the kh*kw x patch
    # traffic entirely; bf16 patches halve it in the meantime.
    cols = []
    for i in range(kh):
        for j in range(kw):
            cols.append(
                jax.lax.slice(
                    x,
                    (0, i, j, 0),
                    (n, i + sh * (oh - 1) + 1, j + sw * (ow - 1) + 1, c),
                    (1, sh, sw, 1),
                )
            )
    patches = jnp.concatenate(cols, axis=-1).reshape(n * oh * ow, kh * kw * cin)
    patches = patches.astype(jnp.bfloat16)

    out = _fused_matmul_bias_relu(patches, w.reshape(kh * kw * cin, cout), bias)
    return out.reshape(n, oh, ow, cout)


def maxpool_3x3_s2(x):
    """MaxPool2d(kernel=3, stride=2, no padding) on NHWC input.

    Plain-JAX maximum chain over strided slices: XLA fuses this into a single
    pass over x (read once, write output once). The previous Pallas version
    materialized a (9, M, C) tap stack in HBM, which was pure DMA overhead.
    """
    n, h, w, c = x.shape
    oh = (h - 3) // 2 + 1
    ow = (w - 3) // 2 + 1
    out = None
    for i in range(3):
        for j in range(3):
            tap = jax.lax.slice(
                x,
                (0, i, j, 0),
                (n, i + 2 * (oh - 1) + 1, j + 2 * (ow - 1) + 1, c),
                (1, 2, 2, 1),
            )
            out = tap if out is None else jnp.maximum(out, tap)
    return out


# ---------------------------------------------------------------------------
# Parameter construction (deterministic, synthetic).  The inference-mode BN
# scale is folded into the conv weights; conv bias + BN shift fold into `bias`.
# ---------------------------------------------------------------------------
def make_conv_bn_params(key, cin, cout, kh, kw, eps=1e-5):
    k1, k2, k3, k4 = jax.random.split(key, 4)
    w = 0.1 * jax.random.normal(k1, (kh, kw, cin, cout), jnp.float32)
    conv_bias = 0.1 * jax.random.normal(k2, (cout,), jnp.float32)
    gamma = 1.0 + 0.1 * jax.random.normal(k3, (cout,), jnp.float32)
    beta = 0.1 * jax.random.normal(k4, (cout,), jnp.float32)
    running_mean = jnp.zeros((cout,), jnp.float32)
    running_var = jnp.ones((cout,), jnp.float32)
    scale = gamma / jnp.sqrt(running_var + eps)          # BN scale (inference)
    bias = scale * (conv_bias - running_mean) + beta     # folded conv bias + BN shift
    w_folded = (w * scale).astype(jnp.bfloat16)          # fold scale into weight columns
    return (w_folded, bias)


def make_stem_params(key):
    layers = [
        ("c1a", 3, 32, 3, 3), ("c1b", 32, 32, 3, 3), ("c1c", 32, 64, 3, 3),
        ("d1", 64, 96, 3, 3),
        ("c21a", 160, 64, 1, 1), ("c21b", 64, 96, 3, 3),
        ("c22a", 160, 64, 1, 1), ("c22b", 64, 64, 7, 1),
        ("c22c", 64, 64, 1, 7), ("c22d", 64, 96, 3, 3),
        ("d2", 192, 192, 3, 3),
    ]
    keys = jax.random.split(key, len(layers))
    return {name: make_conv_bn_params(k, ci, co, kh, kw)
            for k, (name, ci, co, kh, kw) in zip(keys, layers)}


# ---------------------------------------------------------------------------
# Stem forward pass
# ---------------------------------------------------------------------------
def stem_forward(x_nchw, p):
    x = jnp.transpose(x_nchw, (0, 2, 3, 1))  # NCHW -> NHWC

    # conv1
    x = conv_bn_relu(x, p["c1a"], stride=(2, 2), padding="valid")
    x = conv_bn_relu(x, p["c1b"], stride=(1, 1), padding="valid")
    x = conv_bn_relu(x, p["c1c"], stride=(1, 1), padding="same")

    # down1: [maxpool, strided conv] -> concat on channels
    b0 = maxpool_3x3_s2(x)
    b1 = conv_bn_relu(x, p["d1"], stride=(2, 2), padding="valid")
    x = jnp.concatenate([b0, b1], axis=-1)  # 64 + 96 = 160

    # Fuse the two 1x1 branch heads (same 160-ch input) into one matmul with
    # 128 lane-dense output channels, then split per branch.
    w_h = jnp.concatenate([p["c21a"][0], p["c22a"][0]], axis=-1)   # (1,1,160,128)
    b_h = jnp.concatenate([p["c21a"][1], p["c22a"][1]], axis=0)    # (128,)
    heads = conv_bn_relu(x, (w_h, b_h), stride=(1, 1), padding="same")

    # conv2_1 branch
    a = conv_bn_relu(heads[..., :64], p["c21b"], stride=(1, 1), padding="valid")
    # conv2_2 branch
    b = conv_bn_relu(heads[..., 64:], p["c22b"], stride=(1, 1), padding="same")   # 7x1
    b = conv_bn_relu(b, p["c22c"], stride=(1, 1), padding="same")                 # 1x7
    b = conv_bn_relu(b, p["c22d"], stride=(1, 1), padding="valid")
    x = jnp.concatenate([a, b], axis=-1)  # 96 + 96 = 192

    # down2
    c0 = maxpool_3x3_s2(x)
    c1 = conv_bn_relu(x, p["d2"], stride=(2, 2), padding="valid")
    x = jnp.concatenate([c0, c1], axis=-1)  # 192 + 192 = 384

    return jnp.transpose(x, (0, 3, 1, 2))  # NHWC -> NCHW


# ---------------------------------------------------------------------------
if __name__ == "__main__":
    key = jax.random.PRNGKey(0)
    k_params, k_input = jax.random.split(key)

    params = make_stem_params(k_params)

    # Small input consistent with the module's geometry (31x31 keeps every
    # valid/strided conv and pool non-degenerate): (N=2, C=3, H=31, W=31).
    x = jax.random.normal(k_input, (2, 3, 31, 31), jnp.float32)

    out = jax.jit(stem_forward)(x, params)
    out = jax.block_until_ready(out)

    assert out.shape == (2, 384, 1, 1), out.shape
    assert bool(jnp.all(jnp.isfinite(out)))
    print("KERNEL_OK")
</pallas_src>

<mosaic_0001>
module attributes {stable_mosaic.version = 11 : i64} {
  func.func @_matmul_bias_relu_kernel(%arg0: i32, %arg1: memref<456x27xbf16, #tpu.memory_space<vmem>>, %arg2: memref<27x32xbf16, #tpu.memory_space<vmem>>, %arg3: memref<1x32xf32, #tpu.memory_space<vmem>>, %arg4: memref<456x32xf32, #tpu.memory_space<vmem>>) attributes {dimension_semantics = [#tpu.dimension_semantics<parallel>], iteration_bounds = array<i64: 1>, scalar_prefetch = 0 : i64, scratch_operands = 0 : i64, tpu.core_type = #tpu.core_type<tc>, window_params = [{transform_indices = @transform_0, window_bounds = array<i64: 456, 27>}, {pipeline_mode = #tpu.pipeline_mode<synchronous>, transform_indices = @transform_1, window_bounds = array<i64: 27, 32>}, {pipeline_mode = #tpu.pipeline_mode<synchronous>, transform_indices = @transform_2, window_bounds = array<i64: 1, 32>}, {transform_indices = @transform_3, window_bounds = array<i64: 456, 32>}]} {
    %c0 = arith.constant 0 : index
    %c0_0 = arith.constant 0 : index
    %0 = vector.load %arg1[%c0, %c0_0] : memref<456x27xbf16, #tpu.memory_space<vmem>>, vector<456x27xbf16>
    %c0_1 = arith.constant 0 : index
    %c0_2 = arith.constant 0 : index
    %1 = vector.load %arg2[%c0_1, %c0_2] : memref<27x32xbf16, #tpu.memory_space<vmem>>, vector<27x32xbf16>
    %cst = arith.constant dense<0.000000e+00> : vector<456x32xf32>
    %2 = tpu.matmul %0, %1, %cst {dimension_numbers = #tpu.dot_dimension_numbers<[1], [0], [0], [1], [0, 0, 1, 1], [], []>} : vector<456x27xbf16>, vector<27x32xbf16>, vector<456x32xf32> -> vector<456x32xf32>
    %c0_3 = arith.constant 0 : index
    %c0_4 = arith.constant 0 : index
    %3 = vector.load %arg3[%c0_3, %c0_4] : memref<1x32xf32, #tpu.memory_space<vmem>>, vector<1x32xf32>
    %4 = vector.broadcast %3 : vector<1x32xf32> to vector<456x32xf32>
    %5 = arith.addf %2, %4 : vector<456x32xf32>
    %cst_5 = arith.constant 0.000000e+00 : f32
    %6 = vector.broadcast %cst_5 : f32 to vector<456x32xf32>
    %7 = arith.maximumf %5, %6 : vector<456x32xf32>
    %c0_6 = arith.constant 0 : index
    %c0_7 = arith.constant 0 : index
    %8 = vector.load %arg4[%c0_6, %c0_7] : memref<456x32xf32, #tpu.memory_space<vmem>>, vector<456x32xf32>
    tpu.vector_store %arg4[%c0_6, %c0_7], %7 {strides = array<i32>} : memref<456x32xf32, #tpu.memory_space<vmem>>, vector<456x32xf32>,
    return
  }
  func.func @transform_0(%arg0: i32) -> (i32, i32) {
    %c0_i32 = arith.constant 0 : i32
    %c0_i32_0 = arith.constant 0 : i32
    return %arg0, %c0_i32 : i32, i32
  }
  func.func @transform_1(%arg0: i32) -> (i32, i32) {
    %c0_i32 = arith.constant 0 : i32
    %c0_i32_0 = arith.constant 0 : i32
    %c0_i32_1 = arith.constant 0 : i32
    return %c0_i32, %c0_i32_0 : i32, i32
  }
  func.func @transform_2(%arg0: i32) -> (i32, i32) {
    %c0_i32 = arith.constant 0 : i32
    %c0_i32_0 = arith.constant 0 : i32
    %c0_i32_1 = arith.constant 0 : i32
    return %c0_i32, %c0_i32_0 : i32, i32
  }
  func.func @transform_3(%arg0: i32) -> (i32, i32) {
    %c0_i32 = arith.constant 0 : i32
    %c0_i32_0 = arith.constant 0 : i32
    return %arg0, %c0_i32 : i32, i32
  }
}

module attributes {stable_mosaic.version = 11 : i64} {
  func.func @_matmul_bias_relu_kernel(%arg0: i32, %arg1: memref<344x288xbf16, #tpu.memory_space<vmem>>, %arg2: memref<288x32xbf16, #tpu.memory_space<vmem>>, %arg3: memref<1x32xf32, #tpu.memory_space<vmem>>, %arg4: memref<344x32xf32, #tpu.memory_space<vmem>>) attributes {dimension_semantics = [#tpu.dimension_semantics<parallel>], iteration_bounds = array<i64: 1>, scalar_prefetch = 0 : i64, scratch_operands = 0 : i64, tpu.core_type = #tpu.core_type<tc>, window_params = [{transform_indices = @transform_0, window_bounds = array<i64: 344, 288>}, {pipeline_mode = #tpu.pipeline_mode<synchronous>, transform_indices = @transform_1, window_bounds = array<i64: 288, 32>}, {pipeline_mode = #tpu.pipeline_mode<synchronous>, transform_indices = @transform_2, window_bounds = array<i64: 1, 32>}, {transform_indices = @transform_3, window_bounds = array<i64: 344, 32>}]} {
    %c0 = arith.constant 0 : index
    %c0_0 = arith.constant 0 : index
    %0 = vector.load %arg1[%c0, %c0_0] : memref<344x288xbf16, #tpu.memory_space<vmem>>, vector<344x288xbf16>
    %c0_1 = arith.constant 0 : index
    %c0_2 = arith.constant 0 : index
    %1 = vector.load %arg2[%c0_1, %c0_2] : memref<288x32xbf16, #tpu.memory_space<vmem>>, vector<288x32xbf16>
    %cst = arith.constant dense<0.000000e+00> : vector<344x32xf32>
    %2 = tpu.matmul %0, %1, %cst {dimension_numbers = #tpu.dot_dimension_numbers<[1], [0], [0], [1], [0, 0, 1, 1], [], []>} : vector<344x288xbf16>, vector<288x32xbf16>, vector<344x32xf32> -> vector<344x32xf32>
    %c0_3 = arith.constant 0 : index
    %c0_4 = arith.constant 0 : index
    %3 = vector.load %arg3[%c0_3, %c0_4] : memref<1x32xf32, #tpu.memory_space<vmem>>, vector<1x32xf32>
    %4 = vector.broadcast %3 : vector<1x32xf32> to vector<344x32xf32>
    %5 = arith.addf %2, %4 : vector<344x32xf32>
    %cst_5 = arith.constant 0.000000e+00 : f32
    %6 = vector.broadcast %cst_5 : f32 to vector<344x32xf32>
    %7 = arith.maximumf %5, %6 : vector<344x32xf32>
    %c0_6 = arith.constant 0 : index
    %c0_7 = arith.constant 0 : index
    %8 = vector.load %arg4[%c0_6, %c0_7] : memref<344x32xf32, #tpu.memory_space<vmem>>, vector<344x32xf32>
    tpu.vector_store %arg4[%c0_6, %c0_7], %7 {strides = array<i32>} : memref<344x32xf32, #tpu.memory_space<vmem>>, vector<344x32xf32>,
    return
  }
  func.func @transform_0(%arg0: i32) -> (i32, i32) {
    %c0_i32 = arith.constant 0 : i32
    %c0_i32_0 = arith.constant 0 : i32
    return %arg0, %c0_i32 : i32, i32
  }
  func.func @transform_1(%arg0: i32) -> (i32, i32) {
    %c0_i32 = arith.constant 0 : i32
    %c0_i32_0 = arith.constant 0 : i32
    %c0_i32_1 = arith.constant 0 : i32
    return %c0_i32, %c0_i32_0 : i32, i32
  }
  func.func @transform_2(%arg0: i32) -> (i32, i32) {
    %c0_i32 = arith.constant 0 : i32
    %c0_i32_0 = arith.constant 0 : i32
    %c0_i32_1 = arith.constant 0 : i32
    return %c0_i32, %c0_i32_0 : i32, i32
  }
  func.func @transform_3(%arg0: i32) -> (i32, i32) {
    %c0_i32 = arith.constant 0 : i32
    %c0_i32_0 = arith.constant 0 : i32
    return %arg0, %c0_i32 : i32, i32
  }
}

module attributes {stable_mosaic.version = 11 : i64} {
  func.func @_matmul_bias_relu_kernel(%arg0: i32, %arg1: memref<344x288xbf16, #tpu.memory_space<vmem>>, %arg2: memref<288x64xbf16, #tpu.memory_space<vmem>>, %arg3: memref<1x64xf32, #tpu.memory_space<vmem>>, %arg4: memref<344x64xf32, #tpu.memory_space<vmem>>) attributes {dimension_semantics = [#tpu.dimension_semantics<parallel>], iteration_bounds = array<i64: 1>, scalar_prefetch = 0 : i64, scratch_operands = 0 : i64, tpu.core_type = #tpu.core_type<tc>, window_params = [{transform_indices = @transform_0, window_bounds = array<i64: 344, 288>}, {pipeline_mode = #tpu.pipeline_mode<synchronous>, transform_indices = @transform_1, window_bounds = array<i64: 288, 64>}, {pipeline_mode = #tpu.pipeline_mode<synchronous>, transform_indices = @transform_2, window_bounds = array<i64: 1, 64>}, {transform_indices = @transform_3, window_bounds = array<i64: 344, 64>}]} {
    %c0 = arith.constant 0 : index
    %c0_0 = arith.constant 0 : index
    %0 = vector.load %arg1[%c0, %c0_0] : memref<344x288xbf16, #tpu.memory_space<vmem>>, vector<344x288xbf16>
    %c0_1 = arith.constant 0 : index
    %c0_2 = arith.constant 0 : index
    %1 = vector.load %arg2[%c0_1, %c0_2] : memref<288x64xbf16, #tpu.memory_space<vmem>>, vector<288x64xbf16>
    %cst = arith.constant dense<0.000000e+00> : vector<344x64xf32>
    %2 = tpu.matmul %0, %1, %cst {dimension_numbers = #tpu.dot_dimension_numbers<[1], [0], [0], [1], [0, 0, 1, 1], [], []>} : vector<344x288xbf16>, vector<288x64xbf16>, vector<344x64xf32> -> vector<344x64xf32>
    %c0_3 = arith.constant 0 : index
    %c0_4 = arith.constant 0 : index
    %3 = vector.load %arg3[%c0_3, %c0_4] : memref<1x64xf32, #tpu.memory_space<vmem>>, vector<1x64xf32>
    %4 = vector.broadcast %3 : vector<1x64xf32> to vector<344x64xf32>
    %5 = arith.addf %2, %4 : vector<344x64xf32>
    %cst_5 = arith.constant 0.000000e+00 : f32
    %6 = vector.broadcast %cst_5 : f32 to vector<344x64xf32>
    %7 = arith.maximumf %5, %6 : vector<344x64xf32>
    %c0_6 = arith.constant 0 : index
    %c0_7 = arith.constant 0 : index
    %8 = vector.load %arg4[%c0_6, %c0_7] : memref<344x64xf32, #tpu.memory_space<vmem>>, vector<344x64xf32>
    tpu.vector_store %arg4[%c0_6, %c0_7], %7 {strides = array<i32>} : memref<344x64xf32, #tpu.memory_space<vmem>>, vector<344x64xf32>,
    return
  }
  func.func @transform_0(%arg0: i32) -> (i32, i32) {
    %c0_i32 = arith.constant 0 : i32
    %c0_i32_0 = arith.constant 0 : i32
    return %arg0, %c0_i32 : i32, i32
  }
  func.func @transform_1(%arg0: i32) -> (i32, i32) {
    %c0_i32 = arith.constant 0 : i32
    %c0_i32_0 = arith.constant 0 : i32
    %c0_i32_1 = arith.constant 0 : i32
    return %c0_i32, %c0_i32_0 : i32, i32
  }
  func.func @transform_2(%arg0: i32) -> (i32, i32) {
    %c0_i32 = arith.constant 0 : i32
    %c0_i32_0 = arith.constant 0 : i32
    %c0_i32_1 = arith.constant 0 : i32
    return %c0_i32, %c0_i32_0 : i32, i32
  }
  func.func @transform_3(%arg0: i32) -> (i32, i32) {
    %c0_i32 = arith.constant 0 : i32
    %c0_i32_0 = arith.constant 0 : i32
    return %arg0, %c0_i32 : i32, i32
  }
}

module attributes {stable_mosaic.version = 11 : i64} {
  func.func @_matmul_bias_relu_kernel(%arg0: i32, %arg1: memref<72x576xbf16, #tpu.memory_space<vmem>>, %arg2: memref<576x96xbf16, #tpu.memory_space<vmem>>, %arg3: memref<1x96xf32, #tpu.memory_space<vmem>>, %arg4: memref<72x96xf32, #tpu.memory_space<vmem>>) attributes {dimension_semantics = [#tpu.dimension_semantics<parallel>], iteration_bounds = array<i64: 1>, scalar_prefetch = 0 : i64, scratch_operands = 0 : i64, tpu.core_type = #tpu.core_type<tc>, window_params = [{transform_indices = @transform_0, window_bounds = array<i64: 72, 576>}, {pipeline_mode = #tpu.pipeline_mode<synchronous>, transform_indices = @transform_1, window_bounds = array<i64: 576, 96>}, {pipeline_mode = #tpu.pipeline_mode<synchronous>, transform_indices = @transform_2, window_bounds = array<i64: 1, 96>}, {transform_indices = @transform_3, window_bounds = array<i64: 72, 96>}]} {
    %c0 = arith.constant 0 : index
    %c0_0 = arith.constant 0 : index
    %0 = vector.load %arg1[%c0, %c0_0] : memref<72x576xbf16, #tpu.memory_space<vmem>>, vector<72x576xbf16>
    %c0_1 = arith.constant 0 : index
    %c0_2 = arith.constant 0 : index
    %1 = vector.load %arg2[%c0_1, %c0_2] : memref<576x96xbf16, #tpu.memory_space<vmem>>, vector<576x96xbf16>
    %cst = arith.constant dense<0.000000e+00> : vector<72x96xf32>
    %2 = tpu.matmul %0, %1, %cst {dimension_numbers = #tpu.dot_dimension_numbers<[1], [0], [0], [1], [0, 0, 1, 1], [], []>} : vector<72x576xbf16>, vector<576x96xbf16>, vector<72x96xf32> -> vector<72x96xf32>
    %c0_3 = arith.constant 0 : index
    %c0_4 = arith.constant 0 : index
    %3 = vector.load %arg3[%c0_3, %c0_4] : memref<1x96xf32, #tpu.memory_space<vmem>>, vector<1x96xf32>
    %4 = vector.broadcast %3 : vector<1x96xf32> to vector<72x96xf32>
    %5 = arith.addf %2, %4 : vector<72x96xf32>
    %cst_5 = arith.constant 0.000000e+00 : f32
    %6 = vector.broadcast %cst_5 : f32 to vector<72x96xf32>
    %7 = arith.maximumf %5, %6 : vector<72x96xf32>
    %c0_6 = arith.constant 0 : index
    %c0_7 = arith.constant 0 : index
    %8 = vector.load %arg4[%c0_6, %c0_7] : memref<72x96xf32, #tpu.memory_space<vmem>>, vector<72x96xf32>
    tpu.vector_store %arg4[%c0_6, %c0_7], %7 {strides = array<i32>} : memref<72x96xf32, #tpu.memory_space<vmem>>, vector<72x96xf32>,
    return
  }
  func.func @transform_0(%arg0: i32) -> (i32, i32) {
    %c0_i32 = arith.constant 0 : i32
    %c0_i32_0 = arith.constant 0 : i32
    return %arg0, %c0_i32 : i32, i32
  }
  func.func @transform_1(%arg0: i32) -> (i32, i32) {
    %c0_i32 = arith.constant 0 : i32
    %c0_i32_0 = arith.constant 0 : i32
    %c0_i32_1 = arith.constant 0 : i32
    return %c0_i32, %c0_i32_0 : i32, i32
  }
  func.func @transform_2(%arg0: i32) -> (i32, i32) {
    %c0_i32 = arith.constant 0 : i32
    %c0_i32_0 = arith.constant 0 : i32
    %c0_i32_1 = arith.constant 0 : i32
    return %c0_i32, %c0_i32_0 : i32, i32
  }
  func.func @transform_3(%arg0: i32) -> (i32, i32) {
    %c0_i32 = arith.constant 0 : i32
    %c0_i32_0 = arith.constant 0 : i32
    return %arg0, %c0_i32 : i32, i32
  }
}

module attributes {stable_mosaic.version = 11 : i64} {
  func.func @_matmul_bias_relu_kernel(%arg0: i32, %arg1: memref<72x160xbf16, #tpu.memory_space<vmem>>, %arg2: memref<160x128xbf16, #tpu.memory_space<vmem>>, %arg3: memref<1x128xf32, #tpu.memory_space<vmem>>, %arg4: memref<72x128xf32, #tpu.memory_space<vmem>>) attributes {dimension_semantics = [#tpu.dimension_semantics<parallel>], iteration_bounds = array<i64: 1>, scalar_prefetch = 0 : i64, scratch_operands = 0 : i64, tpu.core_type = #tpu.core_type<tc>, window_params = [{transform_indices = @transform_0, window_bounds = array<i64: 72, 160>}, {pipeline_mode = #tpu.pipeline_mode<synchronous>, transform_indices = @transform_1, window_bounds = array<i64: 160, 128>}, {pipeline_mode = #tpu.pipeline_mode<synchronous>, transform_indices = @transform_2, window_bounds = array<i64: 1, 128>}, {transform_indices = @transform_3, window_bounds = array<i64: 72, 128>}]} {
    %c0 = arith.constant 0 : index
    %c0_0 = arith.constant 0 : index
    %0 = vector.load %arg1[%c0, %c0_0] : memref<72x160xbf16, #tpu.memory_space<vmem>>, vector<72x160xbf16>
    %c0_1 = arith.constant 0 : index
    %c0_2 = arith.constant 0 : index
    %1 = vector.load %arg2[%c0_1, %c0_2] : memref<160x128xbf16, #tpu.memory_space<vmem>>, vector<160x128xbf16>
    %cst = arith.constant dense<0.000000e+00> : vector<72x128xf32>
    %2 = tpu.matmul %0, %1, %cst {dimension_numbers = #tpu.dot_dimension_numbers<[1], [0], [0], [1], [0, 0, 1, 1], [], []>} : vector<72x160xbf16>, vector<160x128xbf16>, vector<72x128xf32> -> vector<72x128xf32>
    %c0_3 = arith.constant 0 : index
    %c0_4 = arith.constant 0 : index
    %3 = vector.load %arg3[%c0_3, %c0_4] : memref<1x128xf32, #tpu.memory_space<vmem>>, vector<1x128xf32>
    %4 = vector.broadcast %3 : vector<1x128xf32> to vector<72x128xf32>
    %5 = arith.addf %2, %4 : vector<72x128xf32>
    %cst_5 = arith.constant 0.000000e+00 : f32
    %6 = vector.broadcast %cst_5 : f32 to vector<72x128xf32>
    %7 = arith.maximumf %5, %6 : vector<72x128xf32>
    %c0_6 = arith.constant 0 : index
    %c0_7 = arith.constant 0 : index
    %8 = vector.load %arg4[%c0_6, %c0_7] : memref<72x128xf32, #tpu.memory_space<vmem>>, vector<72x128xf32>
    tpu.vector_store %arg4[%c0_6, %c0_7], %7 {strides = array<i32>} : memref<72x128xf32, #tpu.memory_space<vmem>>, vector<72x128xf32>,
    return
  }
  func.func @transform_0(%arg0: i32) -> (i32, i32) {
    %c0_i32 = arith.constant 0 : i32
    %c0_i32_0 = arith.constant 0 : i32
    return %arg0, %c0_i32 : i32, i32
  }
  func.func @transform_1(%arg0: i32) -> (i32, i32) {
    %c0_i32 = arith.constant 0 : i32
    %c0_i32_0 = arith.constant 0 : i32
    %c0_i32_1 = arith.constant 0 : i32
    return %c0_i32, %c0_i32_0 : i32, i32
  }
  func.func @transform_2(%arg0: i32) -> (i32, i32) {
    %c0_i32 = arith.constant 0 : i32
    %c0_i32_0 = arith.constant 0 : i32
    %c0_i32_1 = arith.constant 0 : i32
    return %c0_i32, %c0_i32_0 : i32, i32
  }
  func.func @transform_3(%arg0: i32) -> (i32, i32) {
    %c0_i32 = arith.constant 0 : i32
    %c0_i32_0 = arith.constant 0 : i32
    return %arg0, %c0_i32 : i32, i32
  }
}

module attributes {stable_mosaic.version = 11 : i64} {
  func.func @_matmul_bias_relu_kernel(%arg0: i32, %arg1: memref<72x448xbf16, #tpu.memory_space<vmem>>, %arg2: memref<448x64xbf16, #tpu.memory_space<vmem>>, %arg3: memref<1x64xf32, #tpu.memory_space<vmem>>, %arg4: memref<72x64xf32, #tpu.memory_space<vmem>>) attributes {dimension_semantics = [#tpu.dimension_semantics<parallel>], iteration_bounds = array<i64: 1>, scalar_prefetch = 0 : i64, scratch_operands = 0 : i64, tpu.core_type = #tpu.core_type<tc>, window_params = [{transform_indices = @transform_0, window_bounds = array<i64: 72, 448>}, {pipeline_mode = #tpu.pipeline_mode<synchronous>, transform_indices = @transform_1, window_bounds = array<i64: 448, 64>}, {pipeline_mode = #tpu.pipeline_mode<synchronous>, transform_indices = @transform_2, window_bounds = array<i64: 1, 64>}, {transform_indices = @transform_3, window_bounds = array<i64: 72, 64>}]} {
    %c0 = arith.constant 0 : index
    %c0_0 = arith.constant 0 : index
    %0 = vector.load %arg1[%c0, %c0_0] : memref<72x448xbf16, #tpu.memory_space<vmem>>, vector<72x448xbf16>
    %c0_1 = arith.constant 0 : index
    %c0_2 = arith.constant 0 : index
    %1 = vector.load %arg2[%c0_1, %c0_2] : memref<448x64xbf16, #tpu.memory_space<vmem>>, vector<448x64xbf16>
    %cst = arith.constant dense<0.000000e+00> : vector<72x64xf32>
    %2 = tpu.matmul %0, %1, %cst {dimension_numbers = #tpu.dot_dimension_numbers<[1], [0], [0], [1], [0, 0, 1, 1], [], []>} : vector<72x448xbf16>, vector<448x64xbf16>, vector<72x64xf32> -> vector<72x64xf32>
    %c0_3 = arith.constant 0 : index
    %c0_4 = arith.constant 0 : index
    %3 = vector.load %arg3[%c0_3, %c0_4] : memref<1x64xf32, #tpu.memory_space<vmem>>, vector<1x64xf32>
    %4 = vector.broadcast %3 : vector<1x64xf32> to vector<72x64xf32>
    %5 = arith.addf %2, %4 : vector<72x64xf32>
    %cst_5 = arith.constant 0.000000e+00 : f32
    %6 = vector.broadcast %cst_5 : f32 to vector<72x64xf32>
    %7 = arith.maximumf %5, %6 : vector<72x64xf32>
    %c0_6 = arith.constant 0 : index
    %c0_7 = arith.constant 0 : index
    %8 = vector.load %arg4[%c0_6, %c0_7] : memref<72x64xf32, #tpu.memory_space<vmem>>, vector<72x64xf32>
    tpu.vector_store %arg4[%c0_6, %c0_7], %7 {strides = array<i32>} : memref<72x64xf32, #tpu.memory_space<vmem>>, vector<72x64xf32>,
    return
  }
  func.func @transform_0(%arg0: i32) -> (i32, i32) {
    %c0_i32 = arith.constant 0 : i32
    %c0_i32_0 = arith.constant 0 : i32
    return %arg0, %c0_i32 : i32, i32
  }
  func.func @transform_1(%arg0: i32) -> (i32, i32) {
    %c0_i32 = arith.constant 0 : i32
    %c0_i32_0 = arith.constant 0 : i32
    %c0_i32_1 = arith.constant 0 : i32
    return %c0_i32, %c0_i32_0 : i32, i32
  }
  func.func @transform_2(%arg0: i32) -> (i32, i32) {
    %c0_i32 = arith.constant 0 : i32
    %c0_i32_0 = arith.constant 0 : i32
    %c0_i32_1 = arith.constant 0 : i32
    return %c0_i32, %c0_i32_0 : i32, i32
  }
  func.func @transform_3(%arg0: i32) -> (i32, i32) {
    %c0_i32 = arith.constant 0 : i32
    %c0_i32_0 = arith.constant 0 : i32
    return %arg0, %c0_i32 : i32, i32
  }
}

module attributes {stable_mosaic.version = 11 : i64} {
  func.func @_matmul_bias_relu_kernel(%arg0: i32, %arg1: memref<32x576xbf16, #tpu.memory_space<vmem>>, %arg2: memref<576x96xbf16, #tpu.memory_space<vmem>>, %arg3: memref<1x96xf32, #tpu.memory_space<vmem>>, %arg4: memref<32x96xf32, #tpu.memory_space<vmem>>) attributes {dimension_semantics = [#tpu.dimension_semantics<parallel>], iteration_bounds = array<i64: 1>, scalar_prefetch = 0 : i64, scratch_operands = 0 : i64, tpu.core_type = #tpu.core_type<tc>, window_params = [{transform_indices = @transform_0, window_bounds = array<i64: 32, 576>}, {pipeline_mode = #tpu.pipeline_mode<synchronous>, transform_indices = @transform_1, window_bounds = array<i64: 576, 96>}, {pipeline_mode = #tpu.pipeline_mode<synchronous>, transform_indices = @transform_2, window_bounds = array<i64: 1, 96>}, {transform_indices = @transform_3, window_bounds = array<i64: 32, 96>}]} {
    %c0 = arith.constant 0 : index
    %c0_0 = arith.constant 0 : index
    %0 = vector.load %arg1[%c0, %c0_0] : memref<32x576xbf16, #tpu.memory_space<vmem>>, vector<32x576xbf16>
    %c0_1 = arith.constant 0 : index
    %c0_2 = arith.constant 0 : index
    %1 = vector.load %arg2[%c0_1, %c0_2] : memref<576x96xbf16, #tpu.memory_space<vmem>>, vector<576x96xbf16>
    %cst = arith.constant dense<0.000000e+00> : vector<32x96xf32>
    %2 = tpu.matmul %0, %1, %cst {dimension_numbers = #tpu.dot_dimension_numbers<[1], [0], [0], [1], [0, 0, 1, 1], [], []>} : vector<32x576xbf16>, vector<576x96xbf16>, vector<32x96xf32> -> vector<32x96xf32>
    %c0_3 = arith.constant 0 : index
    %c0_4 = arith.constant 0 : index
    %3 = vector.load %arg3[%c0_3, %c0_4] : memref<1x96xf32, #tpu.memory_space<vmem>>, vector<1x96xf32>
    %4 = vector.broadcast %3 : vector<1x96xf32> to vector<32x96xf32>
    %5 = arith.addf %2, %4 : vector<32x96xf32>
    %cst_5 = arith.constant 0.000000e+00 : f32
    %6 = vector.broadcast %cst_5 : f32 to vector<32x96xf32>
    %7 = arith.maximumf %5, %6 : vector<32x96xf32>
    %c0_6 = arith.constant 0 : index
    %c0_7 = arith.constant 0 : index
    %8 = vector.load %arg4[%c0_6, %c0_7] : memref<32x96xf32, #tpu.memory_space<vmem>>, vector<32x96xf32>
    tpu.vector_store %arg4[%c0_6, %c0_7], %7 {strides = array<i32>} : memref<32x96xf32, #tpu.memory_space<vmem>>, vector<32x96xf32>,
    return
  }
  func.func @transform_0(%arg0: i32) -> (i32, i32) {
    %c0_i32 = arith.constant 0 : i32
    %c0_i32_0 = arith.constant 0 : i32
    return %arg0, %c0_i32 : i32, i32
  }
  func.func @transform_1(%arg0: i32) -> (i32, i32) {
    %c0_i32 = arith.constant 0 : i32
    %c0_i32_0 = arith.constant 0 : i32
    %c0_i32_1 = arith.constant 0 : i32
    return %c0_i32, %c0_i32_0 : i32, i32
  }
  func.func @transform_2(%arg0: i32) -> (i32, i32) {
    %c0_i32 = arith.constant 0 : i32
    %c0_i32_0 = arith.constant 0 : i32
    %c0_i32_1 = arith.constant 0 : i32
    return %c0_i32, %c0_i32_0 : i32, i32
  }
  func.func @transform_3(%arg0: i32) -> (i32, i32) {
    %c0_i32 = arith.constant 0 : i32
    %c0_i32_0 = arith.constant 0 : i32
    return %arg0, %c0_i32 : i32, i32
  }
}

module attributes {stable_mosaic.version = 11 : i64} {
  func.func @_matmul_bias_relu_kernel(%arg0: i32, %arg1: memref<8x1728xbf16, #tpu.memory_space<vmem>>, %arg2: memref<1728x192xbf16, #tpu.memory_space<vmem>>, %arg3: memref<1x192xf32, #tpu.memory_space<vmem>>, %arg4: memref<8x192xf32, #tpu.memory_space<vmem>>) attributes {dimension_semantics = [#tpu.dimension_semantics<parallel>], iteration_bounds = array<i64: 1>, scalar_prefetch = 0 : i64, scratch_operands = 0 : i64, tpu.core_type = #tpu.core_type<tc>, window_params = [{transform_indices = @transform_0, window_bounds = array<i64: 8, 1728>}, {pipeline_mode = #tpu.pipeline_mode<synchronous>, transform_indices = @transform_1, window_bounds = array<i64: 1728, 192>}, {pipeline_mode = #tpu.pipeline_mode<synchronous>, transform_indices = @transform_2, window_bounds = array<i64: 1, 192>}, {transform_indices = @transform_3, window_bounds = array<i64: 8, 192>}]} {
    %c0 = arith.constant 0 : index
    %c0_0 = arith.constant 0 : index
    %0 = vector.load %arg1[%c0, %c0_0] : memref<8x1728xbf16, #tpu.memory_space<vmem>>, vector<8x1728xbf16>
    %c0_1 = arith.constant 0 : index
    %c0_2 = arith.constant 0 : index
    %1 = vector.load %arg2[%c0_1, %c0_2] : memref<1728x192xbf16, #tpu.memory_space<vmem>>, vector<1728x192xbf16>
    %cst = arith.constant dense<0.000000e+00> : vector<8x192xf32>
    %2 = tpu.matmul %0, %1, %cst {dimension_numbers = #tpu.dot_dimension_numbers<[1], [0], [0], [1], [0, 0, 1, 1], [], []>} : vector<8x1728xbf16>, vector<1728x192xbf16>, vector<8x192xf32> -> vector<8x192xf32>
    %c0_3 = arith.constant 0 : index
    %c0_4 = arith.constant 0 : index
    %3 = vector.load %arg3[%c0_3, %c0_4] : memref<1x192xf32, #tpu.memory_space<vmem>>, vector<1x192xf32>
    %4 = vector.broadcast %3 : vector<1x192xf32> to vector<8x192xf32>
    %5 = arith.addf %2, %4 : vector<8x192xf32>
    %cst_5 = arith.constant 0.000000e+00 : f32
    %6 = vector.broadcast %cst_5 : f32 to vector<8x192xf32>
    %7 = arith.maximumf %5, %6 : vector<8x192xf32>
    %c0_6 = arith.constant 0 : index
    %c0_7 = arith.constant 0 : index
    %8 = vector.load %arg4[%c0_6, %c0_7] : memref<8x192xf32, #tpu.memory_space<vmem>>, vector<8x192xf32>
    tpu.vector_store %arg4[%c0_6, %c0_7], %7 {strides = array<i32>} : memref<8x192xf32, #tpu.memory_space<vmem>>, vector<8x192xf32>,
    return
  }
  func.func @transform_0(%arg0: i32) -> (i32, i32) {
    %c0_i32 = arith.constant 0 : i32
    %c0_i32_0 = arith.constant 0 : i32
    return %arg0, %c0_i32 : i32, i32
  }
  func.func @transform_1(%arg0: i32) -> (i32, i32) {
    %c0_i32 = arith.constant 0 : i32
    %c0_i32_0 = arith.constant 0 : i32
    %c0_i32_1 = arith.constant 0 : i32
    return %c0_i32, %c0_i32_0 : i32, i32
  }
  func.func @transform_2(%arg0: i32) -> (i32, i32) {
    %c0_i32 = arith.constant 0 : i32
    %c0_i32_0 = arith.constant 0 : i32
    %c0_i32_1 = arith.constant 0 : i32
    return %c0_i32, %c0_i32_0 : i32, i32
  }
  func.func @transform_3(%arg0: i32) -> (i32, i32) {
    %c0_i32 = arith.constant 0 : i32
    %c0_i32_0 = arith.constant 0 : i32
    return %arg0, %c0_i32 : i32, i32
  }
}

</mosaic_0001>

<llo_original>
// kernel: stem_forward.10
$region0: #{stem_forward.10}
  #allocation0 [shape = 'u32[]', space=smem, size = 0x4, offset = 0x4, fixed_abs, tag = 'smem constant byte address 0x4 - core index']
  #allocation1 [shape = 'u32[144,128]{1,0:T(1,128)}', space=vmem, size = 0x12000, scoped, tag = 'internal scratch']
  %s0 = inlined_call_operand.vmem [shape: bf16[456,27], index: 0, kind: input, shape index: {}]
  %s1 = inlined_call_operand.vmem [shape: bf16[27,32], index: 1, kind: input, shape index: {}]
  %s2 = inlined_call_operand.vmem [shape: f32[1,32], index: 2, kind: input, shape index: {}]
  %s3 = inlined_call_operand.vmem [shape: f32[456,32], index: 3, kind: output, shape index: {}]
  %s4 = sld [smem:[#allocation0]]
  $region22: #{stem_forward.10} parent=0
    _
  %s6 = ssub.s32 1, %s4
  %s7 = scalar_select 0, %s6, %s4
  // Predicated region
  $region2: #{stem_forward.10} parent=0 // pred_check
    _
  $region3: #{stem_forward.10} parent=0 // pred_check_branch
    %9 = sbr.rel (0) target = $region5
  $region4: #{stem_forward.10} parent=0 // pred_region
    _
  $region5: #{stem_forward.10} parent=0 // pred_fallthru
    _
  // Predicated region
  $region6: #{stem_forward.10} parent=0 // pred_check
    _
  $region7: #{stem_forward.10} parent=0 // pred_check_branch
    %11 = sbr.rel (0) target = $region9
  $region8: #{stem_forward.10} parent=0 // pred_region
    _
  $region9: #{stem_forward.10} parent=0 // pred_fallthru
    _
  // Predicated region
  $region10: #{stem_forward.10} parent=0 // pred_check
    _
  $region11: #{stem_forward.10} parent=0 // pred_check_branch
    %13 = sbr.rel (0) target = $region13
  $region12: #{stem_forward.10} parent=0 // pred_region
    _
  $region13: #{stem_forward.10} parent=0 // pred_fallthru
    _
  %v15 = vld [vmem:[%s0] sm:$0xf]
  %v16 = vld [vmem:[%s0 + $0x4] sm:$0xf]
  %v17 = vld [vmem:[%s0 + $0x8] sm:$0xf]
  %v18 = vld [vmem:[%s0 + $0xc] sm:$0xf]
  %v19 = vld [vmem:[%s0 + $0x10] sm:$0xf]
  %v20 = vld [vmem:[%s0 + $0x14] sm:$0xf]
  %v21 = vld [vmem:[%s0 + $0x18] sm:$0xf]
  %v22 = vld [vmem:[%s0 + $0x1c] sm:$0xf]
  %v23 = vld [vmem:[%s0 + $0x20] sm:$0xf]
  %v24 = vld [vmem:[%s0 + $0x24] sm:$0xf]
  %v25 = vld [vmem:[%s0 + $0x28] sm:$0xf]
  %v26 = vld [vmem:[%s0 + $0x2c] sm:$0xf]
  %v27 = vld [vmem:[%s0 + $0x30] sm:$0xf]
  %v28 = vld [vmem:[%s0 + $0x34] sm:$0xf]
  %v29 = vld [vmem:[%s0 + $0x38] sm:$0xf]
  %v30 = vld [vmem:[%s0 + $0x3c] sm:$0xf]
  %v31 = vld [vmem:[%s0 + $0x40] sm:$0xf]
  %v32 = vld [vmem:[%s0 + $0x44] sm:$0xf]
  %v33 = vld [vmem:[%s0 + $0x48] sm:$0xf]
  %v34 = vld [vmem:[%s0 + $0x4c] sm:$0xf]
  %v35 = vld [vmem:[%s0 + $0x50] sm:$0xf]
  %v36 = vld [vmem:[%s0 + $0x54] sm:$0xf]
  %v37 = vld [vmem:[%s0 + $0x58] sm:$0xf]
  %v38 = vld [vmem:[%s0 + $0x5c] sm:$0xf]
  %v39 = vld [vmem:[%s0 + $0x60] sm:$0xf]
  %v40 = vld [vmem:[%s0 + $0x64] sm:$0xf]
  %v41 = vld [vmem:[%s0 + $0x68] sm:$0xf]
  %v42 = vld [vmem:[%s0 + $0x6c] sm:$0xf]
  %v43 = vld [vmem:[%s0 + $0x70] sm:$0xf]
  %v44 = vld [vmem:[%s0 + $0x74] sm:$0xf]
  %v45 = vld [vmem:[%s0 + $0x78] sm:$0xf]
  %v46 = vld [vmem:[%s0 + $0x7c] sm:$0xf]
  %v47 = vld [vmem:[%s0 + $0x80] sm:$0xf]
  %v48 = vld [vmem:[%s0 + $0x84] sm:$0xf]
  %v49 = vld [vmem:[%s0 + $0x88] sm:$0xf]
  %v50 = vld [vmem:[%s0 + $0x8c] sm:$0xf]
  %v51 = vld [vmem:[%s0 + $0x90] sm:$0xf]
  %v52 = vld [vmem:[%s0 + $0x94] sm:$0xf]
  %v53 = vld [vmem:[%s0 + $0x98] sm:$0xf]
  %v54 = vld [vmem:[%s0 + $0x9c] sm:$0xf]
  %v55 = vld [vmem:[%s0 + $0xa0] sm:$0xf]
  %v56 = vld [vmem:[%s0 + $0xa4] sm:$0xf]
  %v57 = vld [vmem:[%s0 + $0xa8] sm:$0xf]
  %v58 = vld [vmem:[%s0 + $0xac] sm:$0xf]
  %v59 = vld [vmem:[%s0 + $0xb0] sm:$0xf]
  %v60 = vld [vmem:[%s0 + $0xb4] sm:$0xf]
  %v61 = vld [vmem:[%s0 + $0xb8] sm:$0xf]
  %v62 = vld [vmem:[%s0 + $0xbc] sm:$0xf]
  %v63 = vld [vmem:[%s0 + $0xc0] sm:$0xf]
  %v64 = vld [vmem:[%s0 + $0xc4] sm:$0xf]
  %v65 = vld [vmem:[%s0 + $0xc8] sm:$0xf]
  %v66 = vld [vmem:[%s0 + $0xcc] sm:$0xf]
  %v67 = vld [vmem:[%s0 + $0xd0] sm:$0xf]
  %v68 = vld [vmem:[%s0 + $0xd4] sm:$0xf]
  %v69 = vld [vmem:[%s0 + $0xd8] sm:$0xf]
  %v70 = vld [vmem:[%s0 + $0xdc] sm:$0xf]
  %v71 = vld [vmem:[%s0 + $0xe0] sm:$0xf]
  %v72 = vld [vmem:[%s1] sm:$0xf]
  %v73 = vld [vmem:[%s1 + $0x4] sm:$0xf]
  %v74 = vld [vmem:[%s1 + $0x8] sm:$0xf]
  %v75 = vld [vmem:[%s1 + $0xc] sm:$0x3]
  %v76 = vld [vmem:[%s2] sm:$0x1]
  %v78 = vlaneseq
  %v79 = vshrl.u32 %v78, 7
  %v80 = vsub.s32 0, %v79
  %v81 = vrot.slane %v76, %v80
  %v140 = vunpack.c.l.b16 %v15
  %v141 = vunpack.c.l.b16 %v16
  %v142 = vunpack.c.l.b16 %v17
  %v143 = vunpack.c.l.b16 %v18
  %v144 = vunpack.c.l.b16 %v19
  %v145 = vunpack.c.l.b16 %v20
  %v146 = vunpack.c.l.b16 %v21
  %v147 = vunpack.c.l.b16 %v22
  %v148 = vunpack.c.l.b16 %v23
  %v149 = vunpack.c.l.b16 %v24
  %v150 = vunpack.c.l.b16 %v25
  %v151 = vunpack.c.l.b16 %v26
  %v152 = vunpack.c.l.b16 %v27
  %v153 = vunpack.c.l.b16 %v28
  %v154 = vunpack.c.l.b16 %v29
  %v155 = vunpack.c.l.b16 %v30
  %v156 = vunpack.c.l.b16 %v31
  %v157 = vunpack.c.l.b16 %v32
  %v158 = vunpack.c.l.b16 %v33
  %v159 = vunpack.c.l.b16 %v34
  %v160 = vunpack.c.l.b16 %v35
  %v161 = vunpack.c.l.b16 %v36
  %v162 = vunpack.c.l.b16 %v37
  %v163 = vunpack.c.l.b16 %v38
  %v164 = vunpack.c.l.b16 %v39
  %v165 = vunpack.c.l.b16 %v40
  %v166 = vunpack.c.l.b16 %v41
  %v167 = vunpack.c.l.b16 %v42
  %v168 = vunpack.c.l.b16 %v43
  %v169 = vunpack.c.l.b16 %v44
  %v170 = vunpack.c.l.b16 %v45
  %v171 = vunpack.c.l.b16 %v46
  %v172 = vunpack.c.l.b16 %v47
  %v173 = vunpack.c.l.b16 %v48
  %v174 = vunpack.c.l.b16 %v49
  %v175 = vunpack.c.l.b16 %v50
  %v176 = vunpack.c.l.b16 %v51
  %v177 = vunpack.c.l.b16 %v52
  %v178 = vunpack.c.l.b16 %v53
  %v179 = vunpack.c.l.b16 %v54
  %v180 = vunpack.c.l.b16 %v55
  %v181 = vunpack.c.l.b16 %v56
  %v182 = vunpack.c.l.b16 %v57
  %v183 = vunpack.c.l.b16 %v58
  %v184 = vunpack.c.l.b16 %v59
  %v185 = vunpack.c.l.b16 %v60
  %v186 = vunpack.c.l.b16 %v61
  %v187 = vunpack.c.l.b16 %v62
  %v188 = vunpack.c.l.b16 %v63
  %v189 = vunpack.c.l.b16 %v64
  %v190 = vunpack.c.l.b16 %v65
  %v191 = vunpack.c.l.b16 %v66
  %v192 = vunpack.c.l.b16 %v67
  %v193 = vunpack.c.l.b16 %v68
  %v194 = vunpack.c.l.b16 %v69
  %v195 = vunpack.c.l.b16 %v70
  %v196 = vunpack.c.l.b16 %v71
  %v197 = vpack.c.b16 %v141, %v140
  %v198 = vpack.c.b16 %v143, %v142
  %v199 = vpack.c.b16 %v145, %v144
  %v200 = vpack.c.b16 %v147, %v146
  %v201 = vpack.c.b16 %v149, %v148
  %v202 = vpack.c.b16 %v151, %v150
  %v203 = vpack.c.b16 %v153, %v152
  %v204 = vpack.c.b16 %v155, %v154
  %v205 = vpack.c.b16 %v157, %v156
  %v206 = vpack.c.b16 %v159, %v158
  %v207 = vpack.c.b16 %v161, %v160
  %v208 = vpack.c.b16 %v163, %v162
  %v209 = vpack.c.b16 %v165, %v164
  %v210 = vpack.c.b16 %v167, %v166
  %v211 = vpack.c.b16 %v169, %v168
  %v212 = vpack.c.b16 %v171, %v170
  %v213 = vpack.c.b16 %v173, %v172
  %v214 = vpack.c.b16 %v175, %v174
  %v215 = vpack.c.b16 %v177, %v176
  %v216 = vpack.c.b16 %v179, %v178
  %v217 = vpack.c.b16 %v181, %v180
  %v218 = vpack.c.b16 %v183, %v182
  %v219 = vpack.c.b16 %v185, %v184
  %v220 = vpack.c.b16 %v187, %v186
  %v221 = vpack.c.b16 %v189, %v188
  %v222 = vpack.c.b16 %v191, %v190
  %v223 = vpack.c.b16 %v193, %v192
  %v224 = vpack.c.b16 %v195, %v194
  %v225 = vpack.c.b16 %v196, %v196
  %v230 = vunpack.c.l.b16 %v72
  %v231 = vunpack.c.l.b16 %v73
  %v232 = vunpack.c.l.b16 %v74
  %v233 = vunpack.c.l.b16 %v75
  %v234 = vpack.c.b16 %v231, %v230
  %v235 = vpack.c.b16 %v233, %v232
  %vm237 = vcmask 220160
  %v239 = vsel %vm237, %v197, 0
  %v242 = vsel %vm237, %v198, 0
  %v245 = vsel %vm237, %v199, 0
  %v248 = vsel %vm237, %v200, 0
  %v251 = vsel %vm237, %v201, 0
  %v254 = vsel %vm237, %v202, 0
  %v257 = vsel %vm237, %v203, 0
  %v260 = vsel %vm237, %v204, 0
  %v263 = vsel %vm237, %v205, 0
  %v266 = vsel %vm237, %v206, 0
  %v269 = vsel %vm237, %v207, 0
  %v272 = vsel %vm237, %v208, 0
  %v275 = vsel %vm237, %v209, 0
  %v278 = vsel %vm237, %v210, 0
  %v281 = vsel %vm237, %v211, 0
  %v284 = vsel %vm237, %v212, 0
  %v287 = vsel %vm237, %v213, 0
  %v290 = vsel %vm237, %v214, 0
  %v293 = vsel %vm237, %v215, 0
  %v296 = vsel %vm237, %v216, 0
  %v299 = vsel %vm237, %v217, 0
  %v302 = vsel %vm237, %v218, 0
  %v305 = vsel %vm237, %v219, 0
  %v308 = vsel %vm237, %v220, 0
  %v311 = vsel %vm237, %v221, 0
  %v314 = vsel %vm237, %v222, 0
  %v317 = vsel %vm237, %v223, 0
  %v320 = vsel %vm237, %v224, 0
  %v323 = vsel %vm237, %v225, 0
  %vm325 = vcmask 1044480
  %vm326 = vcmask 1045504
  %v327 = vsel %vm325, 4294967295, 65535
  %v328 = vsel %vm326, %v327, 0
  %v330 = vand.u32 %v235, %v328
  %332 = vmatprep.subr.bf16.mxu0 0
  %333 = vmatpush1.bf16.msra.mxu0 %v234
  %334 = vmatprep.subr.bf16.mxu0 0
  %335 = vmatpush1.bf16.msra.mxu0 %v330
  %336 = vmatprep.subr.bf16.mxu0 0
  %337 = vmatpush1.bf16.msra.mxu0 0
  %338 = vmatprep.subr.bf16.mxu0 0
  %339 = vmatpush1.bf16.msra.mxu0 0
  %340 = vmatprep.subr.bf16.mxu0 0
  %341 = vmatpush1.bf16.msra.mxu0 0
  %342 = vmatprep.subr.bf16.mxu0 0
  %343 = vmatpush1.bf16.msra.mxu0 0
  %344 = vmatprep.subr.bf16.mxu0 0
  %345 = vmatpush1.bf16.msra.mxu0 0
  %346 = vmatprep.subr.bf16.mxu0 0
  %347 = vmatpush1.bf16.msra.mxu0 0
  %348 = vmatprep.subr.bf16.mxu0 0
  %349 = vmatpush1.bf16.msra.mxu0 0
  %350 = vmatprep.subr.bf16.mxu0 0
  %351 = vmatpush1.bf16.msra.mxu0 0
  %352 = vmatprep.subr.bf16.mxu0 0
  %353 = vmatpush1.bf16.msra.mxu0 0
  %354 = vmatprep.subr.bf16.mxu0 0
  %355 = vmatpush1.bf16.msra.mxu0 0
  %356 = vmatprep.subr.bf16.mxu0 0
  %357 = vmatpush1.bf16.msra.mxu0 0
  %358 = vmatprep.subr.bf16.mxu0 0
  %359 = vmatpush1.bf16.msra.mxu0 0
  %360 = vmatprep.subr.bf16.mxu0 0
  %361 = vmatpush1.bf16.msra.mxu0 0
  %362 = vmatprep.subr.bf16.mxu0 0
  %363 = vmatpush1.bf16.msra.mxu0 0
  %364 = vmatprep.mubr.bf16.mxu0 0
  %365 = vmatmul.mubr.bf16.gmra.mrb[0].mxu0 %v239
  %v366 = vpop.f32.mrb[0].mxu0
  %v367 = vadd.f32 %v81, %v366
  %v368 = vpop.f32.mrb[0].mxu0
  %v369 = vpop.f32.mrb[0].mxu0
  %v370 = vadd.f32 %v81, %v369
  %v371 = vpop.f32.mrb[0].mxu0
  %372 = vmatprep.mubr.bf16.mxu0 0
  %373 = vmatmul.mubr.bf16.gmra.mrb[0].mxu0 %v242
  %v374 = vpop.f32.mrb[0].mxu0
  %v375 = vadd.f32 %v81, %v374
  %v376 = vpop.f32.mrb[0].mxu0
  %v377 = vpop.f32.mrb[0].mxu0
  %v378 = vadd.f32 %v81, %v377
  %v379 = vpop.f32.mrb[0].mxu0
  %380 = vmatprep.mubr.bf16.mxu0 0
  %381 = vmatmul.mubr.bf16.gmra.mrb[0].mxu0 %v245
  %v382 = vpop.f32.mrb[0].mxu0
  %v383 = vadd.f32 %v81, %v382
  %v384 = vpop.f32.mrb[0].mxu0
  %v385 = vpop.f32.mrb[0].mxu0
  %v386 = vadd.f32 %v81, %v385
  %v387 = vpop.f32.mrb[0].mxu0
  %388 = vmatprep.mubr.bf16.mxu0 0
  %389 = vmatmul.mubr.bf16.gmra.mrb[0].mxu0 %v248
  %v390 = vpop.f32.mrb[0].mxu0
  %v391 = vadd.f32 %v81, %v390
  %v392 = vpop.f32.mrb[0].mxu0
  %v393 = vpop.f32.mrb[0].mxu0
  %v394 = vadd.f32 %v81, %v393
  %v395 = vpop.f32.mrb[0].mxu0
  %396 = vmatprep.mubr.bf16.mxu0 0
  %397 = vmatmul.mubr.bf16.gmra.mrb[0].mxu0 %v251
  %v398 = vpop.f32.mrb[0].mxu0
  %v399 = vadd.f32 %v81, %v398
  %v400 = vpop.f32.mrb[0].mxu0
  %v401 = vpop.f32.mrb[0].mxu0
  %v402 = vadd.f32 %v81, %v401
  %v403 = vpop.f32.mrb[0].mxu0
  %404 = vmatprep.mubr.bf16.mxu0 0
  %405 = vmatmul.mubr.bf16.gmra.mrb[0].mxu0 %v254
  %v406 = vpop.f32.mrb[0].mxu0
  %v407 = vadd.f32 %v81, %v406
  %v408 = vpop.f32.mrb[0].mxu0
  %v409 = vpop.f32.mrb[0].mxu0
  %v410 = vadd.f32 %v81, %v409
  %v411 = vpop.f32.mrb[0].mxu0
  %412 = vmatprep.mubr.bf16.mxu0 0
  %413 = vmatmul.mubr.bf16.gmra.mrb[0].mxu0 %v257
  %v414 = vpop.f32.mrb[0].mxu0
  %v415 = vadd.f32 %v81, %v414
  %v416 = vpop.f32.mrb[0].mxu0
  %v417 = vpop.f32.mrb[0].mxu0
  %v418 = vadd.f32 %v81, %v417
  %v419 = vpop.f32.mrb[0].mxu0
  %420 = vmatprep.mubr.bf16.mxu0 0
  %421 = vmatmul.mubr.bf16.gmra.mrb[0].mxu0 %v260
  %v422 = vpop.f32.mrb[0].mxu0
  %v423 = vadd.f32 %v81, %v422
  %v424 = vpop.f32.mrb[0].mxu0
  %v425 = vpop.f32.mrb[0].mxu0
  %v426 = vadd.f32 %v81, %v425
  %v427 = vpop.f32.mrb[0].mxu0
  %428 = vmatprep.mubr.bf16.mxu0 0
  %429 = vmatmul.mubr.bf16.gmra.mrb[0].mxu0 %v263
  %v430 = vpop.f32.mrb[0].mxu0
  %v431 = vadd.f32 %v81, %v430
  %v432 = vpop.f32.mrb[0].mxu0
  %v433 = vpop.f32.mrb[0].mxu0
  %v434 = vadd.f32 %v81, %v433
  %v435 = vpop.f32.mrb[0].mxu0
  %436 = vmatprep.mubr.bf16.mxu0 0
  %437 = vmatmul.mubr.bf16.gmra.mrb[0].mxu0 %v266
  %v438 = vpop.f32.mrb[0].mxu0
  %v439 = vadd.f32 %v81, %v438
  %v440 = vpop.f32.mrb[0].mxu0
  %v441 = vpop.f32.mrb[0].mxu0
  %v442 = vadd.f32 %v81, %v441
  %v443 = vpop.f32.mrb[0].mxu0
  %444 = vmatprep.mubr.bf16.mxu0 0
  %445 = vmatmul.mubr.bf16.gmra.mrb[0].mxu0 %v269
  %v446 = vpop.f32.mrb[0].mxu0
  %v447 = vadd.f32 %v81, %v446
  %v448 = vpop.f32.mrb[0].mxu0
  %v449 = vpop.f32.mrb[0].mxu0
  %v450 = vadd.f32 %v81, %v449
  %v451 = vpop.f32.mrb[0].mxu0
  %452 = vmatprep.mubr.bf16.mxu0 0
  %453 = vmatmul.mubr.bf16.gmra.mrb[0].mxu0 %v272
  %v454 = vpop.f32.mrb[0].mxu0
  %v455 = vadd.f32 %v81, %v454
  %v456 = vpop.f32.mrb[0].mxu0
  %v457 = vpop.f32.mrb[0].mxu0
  %v458 = vadd.f32 %v81, %v457
  %v459 = vpop.f32.mrb[0].mxu0
  %460 = vmatprep.mubr.bf16.mxu0 0
  %461 = vmatmul.mubr.bf16.gmra.mrb[0].mxu0 %v275
  %v462 = vpop.f32.mrb[0].mxu0
  %v463 = vadd.f32 %v81, %v462
  %v464 = vpop.f32.mrb[0].mxu0
  %v465 = vpop.f32.mrb[0].mxu0
  %v466 = vadd.f32 %v81, %v465
  %v467 = vpop.f32.mrb[0].mxu0
  %468 = vmatprep.mubr.bf16.mxu0 0
  %469 = vmatmul.mubr.bf16.gmra.mrb[0].mxu0 %v278
  %v470 = vpop.f32.mrb[0].mxu0
  %v471 = vadd.f32 %v81, %v470
  %v472 = vpop.f32.mrb[0].mxu0
  %v473 = vpop.f32.mrb[0].mxu0
  %v474 = vadd.f32 %v81, %v473
  %v475 = vpop.f32.mrb[0].mxu0
  %476 = vmatprep.mubr.bf16.mxu0 0
  %477 = vmatmul.mubr.bf16.gmra.mrb[0].mxu0 %v281
  %v478 = vpop.f32.mrb[0].mxu0
  %v479 = vadd.f32 %v81, %v478
  %v480 = vpop.f32.mrb[0].mxu0
  %v481 = vpop.f32.mrb[0].mxu0
  %v482 = vadd.f32 %v81, %v481
  %v483 = vpop.f32.mrb[0].mxu0
  %484 = vmatprep.mubr.bf16.mxu0 0
  %485 = vmatmul.mubr.bf16.gmra.mrb[0].mxu0 %v284
  %v486 = vpop.f32.mrb[0].mxu0
  %v487 = vadd.f32 %v81, %v486
  %v488 = vpop.f32.mrb[0].mxu0
  %v489 = vpop.f32.mrb[0].mxu0
  %v490 = vadd.f32 %v81, %v489
  %v491 = vpop.f32.mrb[0].mxu0
  %492 = vmatprep.mubr.bf16.mxu0 0
  %493 = vmatmul.mubr.bf16.gmra.mrb[0].mxu0 %v287
  %v494 = vpop.f32.mrb[0].mxu0
  %v495 = vadd.f32 %v81, %v494
  %v496 = vpop.f32.mrb[0].mxu0
  %v497 = vpop.f32.mrb[0].mxu0
  %v498 = vadd.f32 %v81, %v497
  %v499 = vpop.f32.mrb[0].mxu0
  %500 = vmatprep.mubr.bf16.mxu0 0
  %501 = vmatmul.mubr.bf16.gmra.mrb[0].mxu0 %v290
  %v502 = vpop.f32.mrb[0].mxu0
  %v503 = vadd.f32 %v81, %v502
  %v504 = vpop.f32.mrb[0].mxu0
  %v505 = vpop.f32.mrb[0].mxu0
  %v506 = vadd.f32 %v81, %v505
  %v507 = vpop.f32.mrb[0].mxu0
  %508 = vmatprep.mubr.bf16.mxu0 0
  %509 = vmatmul.mubr.bf16.gmra.mrb[0].mxu0 %v293
  %v510 = vpop.f32.mrb[0].mxu0
  %v511 = vadd.f32 %v81, %v510
  %v512 = vpop.f32.mrb[0].mxu0
  %v513 = vpop.f32.mrb[0].mxu0
  %v514 = vadd.f32 %v81, %v513
  %v515 = vpop.f32.mrb[0].mxu0
  %516 = vmatprep.mubr.bf16.mxu0 0
  %517 = vmatmul.mubr.bf16.gmra.mrb[0].mxu0 %v296
  %v518 = vpop.f32.mrb[0].mxu0
  %v519 = vadd.f32 %v81, %v518
  %v520 = vpop.f32.mrb[0].mxu0
  %v521 = vpop.f32.mrb[0].mxu0
  %v522 = vadd.f32 %v81, %v521
  %v523 = vpop.f32.mrb[0].mxu0
  %524 = vmatprep.mubr.bf16.mxu0 0
  %525 = vmatmul.mubr.bf16.gmra.mrb[0].mxu0 %v299
  %v526 = vpop.f32.mrb[0].mxu0
  %v527 = vadd.f32 %v81, %v526
  %v528 = vpop.f32.mrb[0].mxu0
  %v529 = vpop.f32.mrb[0].mxu0
  %v530 = vadd.f32 %v81, %v529
  %v531 = vpop.f32.mrb[0].mxu0
  %532 = vmatprep.mubr.bf16.mxu0 0
  %533 = vmatmul.mubr.bf16.gmra.mrb[0].mxu0 %v302
  %v534 = vpop.f32.mrb[0].mxu0
  %v535 = vadd.f32 %v81, %v534
  %v536 = vpop.f32.mrb[0].mxu0
  %v537 = vpop.f32.mrb[0].mxu0
  %v538 = vadd.f32 %v81, %v537
  %v539 = vpop.f32.mrb[0].mxu0
  %540 = vmatprep.mubr.bf16.mxu0 0
  %541 = vmatmul.mubr.bf16.gmra.mrb[0].mxu0 %v305
  %v542 = vpop.f32.mrb[0].mxu0
  %v543 = vadd.f32 %v81, %v542
  %v544 = vpop.f32.mrb[0].mxu0
  %v545 = vpop.f32.mrb[0].mxu0
  %v546 = vadd.f32 %v81, %v545
  %v547 = vpop.f32.mrb[0].mxu0
  %548 = vmatprep.mubr.bf16.mxu0 0
  %549 = vmatmul.mubr.bf16.gmra.mrb[0].mxu0 %v308
  %v550 = vpop.f32.mrb[0].mxu0
  %v551 = vadd.f32 %v81, %v550
  %v552 = vpop.f32.mrb[0].mxu0
  %v553 = vpop.f32.mrb[0].mxu0
  %v554 = vadd.f32 %v81, %v553
  %v555 = vpop.f32.mrb[0].mxu0
  %556 = vmatprep.mubr.bf16.mxu0 0
  %557 = vmatmul.mubr.bf16.gmra.mrb[0].mxu0 %v311
  %v558 = vpop.f32.mrb[0].mxu0
  %v559 = vadd.f32 %v81, %v558
  %v560 = vpop.f32.mrb[0].mxu0
  %v561 = vpop.f32.mrb[0].mxu0
  %v562 = vadd.f32 %v81, %v561
  %v563 = vpop.f32.mrb[0].mxu0
  %564 = vmatprep.mubr.bf16.mxu0 0
  %565 = vmatmul.mubr.bf16.gmra.mrb[0].mxu0 %v314
  %v566 = vpop.f32.mrb[0].mxu0
  %v567 = vadd.f32 %v81, %v566
  %v568 = vpop.f32.mrb[0].mxu0
  %v569 = vpop.f32.mrb[0].mxu0
  %v570 = vadd.f32 %v81, %v569
  %v571 = vpop.f32.mrb[0].mxu0
  %572 = vmatprep.mubr.bf16.mxu0 0
  %573 = vmatmul.mubr.bf16.gmra.mrb[0].mxu0 %v317
  %v574 = vpop.f32.mrb[0].mxu0
  %v575 = vadd.f32 %v81, %v574
  %v576 = vpop.f32.mrb[0].mxu0
  %v577 = vpop.f32.mrb[0].mxu0
  %v578 = vadd.f32 %v81, %v577
  %v579 = vpop.f32.mrb[0].mxu0
  %580 = vmatprep.mubr.bf16.mxu0 0
  %581 = vmatmul.mubr.bf16.gmra.mrb[0].mxu0 %v320
  %v582 = vpop.f32.mrb[0].mxu0
  %v583 = vadd.f32 %v81, %v582
  %v584 = vpop.f32.mrb[0].mxu0
  %v585 = vpop.f32.mrb[0].mxu0
  %v586 = vadd.f32 %v81, %v585
  %v587 = vpop.f32.mrb[0].mxu0
  %588 = vmatprep.mubr.bf16.mxu0 0
  %589 = vmatmul.mubr.bf16.gmra.mrb[0].mxu0 %v323
  %v590 = vpop.f32.mrb[0].mxu0
  %v591 = vadd.f32 %v81, %v590
  %v592 = vpop.f32.mrb[0].mxu0
  %v593 = vpop.f32.mrb[0].mxu0
  %v594 = vpop.f32.mrb[0].mxu0
  %595 = vdwg.mxu0
  %v596 = vmax.f32 %v367, 0.0
  %v597 = vmax.f32 %v370, 0.0
  %v598 = vmax.f32 %v375, 0.0
  %v599 = vmax.f32 %v378, 0.0
  %v600 = vmax.f32 %v383, 0.0
  %v601 = vmax.f32 %v386, 0.0
  %v602 = vmax.f32 %v391, 0.0
  %v603 = vmax.f32 %v394, 0.0
  %v604 = vmax.f32 %v399, 0.0
  %v605 = vmax.f32 %v402, 0.0
  %v606 = vmax.f32 %v407, 0.0
  %v607 = vmax.f32 %v410, 0.0
  %v608 = vmax.f32 %v415, 0.0
  %v609 = vmax.f32 %v418, 0.0
  %v610 = vmax.f32 %v423, 0.0
  %v611 = vmax.f32 %v426, 0.0
  %v612 = vmax.f32 %v431, 0.0
  %v613 = vmax.f32 %v434, 0.0
  %v614 = vmax.f32 %v439, 0.0
  %v615 = vmax.f32 %v442, 0.0
  %v616 = vmax.f32 %v447, 0.0
  %v617 = vmax.f32 %v450, 0.0
  %v618 = vmax.f32 %v455, 0.0
  %v619 = vmax.f32 %v458, 0.0
  %v620 = vmax.f32 %v463, 0.0
  %v621 = vmax.f32 %v466, 0.0
  %v622 = vmax.f32 %v471, 0.0
  %v623 = vmax.f32 %v474, 0.0
  %v624 = vmax.f32 %v479, 0.0
  %v625 = vmax.f32 %v482, 0.0
  %v626 = vmax.f32 %v487, 0.0
  %v627 = vmax.f32 %v490, 0.0
  %v628 = vmax.f32 %v495, 0.0
  %v629 = vmax.f32 %v498, 0.0
  %v630 = vmax.f32 %v503, 0.0
  %v631 = vmax.f32 %v506, 0.0
  %v632 = vmax.f32 %v511, 0.0
  %v633 = vmax.f32 %v514, 0.0
  %v634 = vmax.f32 %v519, 0.0
  %v635 = vmax.f32 %v522, 0.0
  %v636 = vmax.f32 %v527, 0.0
  %v637 = vmax.f32 %v530, 0.0
  %v638 = vmax.f32 %v535, 0.0
  %v639 = vmax.f32 %v538, 0.0
  %v640 = vmax.f32 %v543, 0.0
  %v641 = vmax.f32 %v546, 0.0
  %v642 = vmax.f32 %v551, 0.0
  %v643 = vmax.f32 %v554, 0.0
  %v644 = vmax.f32 %v559, 0.0
  %v645 = vmax.f32 %v562, 0.0
  %v646 = vmax.f32 %v567, 0.0
  %v647 = vmax.f32 %v570, 0.0
  %v648 = vmax.f32 %v575, 0.0
  %v649 = vmax.f32 %v578, 0.0
  %v650 = vmax.f32 %v583, 0.0
  %v651 = vmax.f32 %v586, 0.0
  %v652 = vmax.f32 %v591, 0.0
  %vm653 = vcmask 261120
  %654 = vst.msk [vmem:[%s3] sm:$0xff] %vm653, %v596
  %655 = vst.msk [vmem:[%s3 + $0x8] sm:$0xff] %vm653, %v597
  %656 = vst.msk [vmem:[%s3 + $0x10] sm:$0xff] %vm653, %v598
  %657 = vst.msk [vmem:[%s3 + $0x18] sm:$0xff] %vm653, %v599
  %658 = vst.msk [vmem:[%s3 + $0x20] sm:$0xff] %vm653, %v600
  %659 = vst.msk [vmem:[%s3 + $0x28] sm:$0xff] %vm653, %v601
  %660 = vst.msk [vmem:[%s3 + $0x30] sm:$0xff] %vm653, %v602
  %661 = vst.msk [vmem:[%s3 + $0x38] sm:$0xff] %vm653, %v603
  %662 = vst.msk [vmem:[%s3 + $0x40] sm:$0xff] %vm653, %v604
  %663 = vst.msk [vmem:[%s3 + $0x48] sm:$0xff] %vm653, %v605
  %664 = vst.msk [vmem:[%s3 + $0x50] sm:$0xff] %vm653, %v606
  %665 = vst.msk [vmem:[%s3 + $0x58] sm:$0xff] %vm653, %v607
  %666 = vst.msk [vmem:[%s3 + $0x60] sm:$0xff] %vm653, %v608
  %667 = vst.msk [vmem:[%s3 + $0x68] sm:$0xff] %vm653, %v609
  %668 = vst.msk [vmem:[%s3 + $0x70] sm:$0xff] %vm653, %v610
  %669 = vst.msk [vmem:[%s3 + $0x78] sm:$0xff] %vm653, %v611
  %670 = vst.msk [vmem:[%s3 + $0x80] sm:$0xff] %vm653, %v612
  %671 = vst.msk [vmem:[%s3 + $0x88] sm:$0xff] %vm653, %v613
  %672 = vst.msk [vmem:[%s3 + $0x90] sm:$0xff] %vm653, %v614
  %673 = vst.msk [vmem:[%s3 + $0x98] sm:$0xff] %vm653, %v615
  %674 = vst.msk [vmem:[%s3 + $0xa0] sm:$0xff] %vm653, %v616
  %675 = vst.msk [vmem:[%s3 + $0xa8] sm:$0xff] %vm653, %v617
  %676 = vst.msk [vmem:[%s3 + $0xb0] sm:$0xff] %vm653, %v618
  %677 = vst.msk [vmem:[%s3 + $0xb8] sm:$0xff] %vm653, %v619
  %678 = vst.msk [vmem:[%s3 + $0xc0] sm:$0xff] %vm653, %v620
  %679 = vst.msk [vmem:[%s3 + $0xc8] sm:$0xff] %vm653, %v621
  %680 = vst.msk [vmem:[%s3 + $0xd0] sm:$0xff] %vm653, %v622
  %681 = vst.msk [vmem:[%s3 + $0xd8] sm:$0xff] %vm653, %v623
  %682 = vst.msk [vmem:[%s3 + $0xe0] sm:$0xff] %vm653, %v624
  %683 = vst.msk [vmem:[%s3 + $0xe8] sm:$0xff] %vm653, %v625
  %684 = vst.msk [vmem:[%s3 + $0xf0] sm:$0xff] %vm653, %v626
  %685 = vst.msk [vmem:[%s3 + $0xf8] sm:$0xff] %vm653, %v627
  %686 = vst.msk [vmem:[%s3 + $0x100] sm:$0xff] %vm653, %v628
  %687 = vst.msk [vmem:[%s3 + $0x108] sm:$0xff] %vm653, %v629
  %688 = vst.msk [vmem:[%s3 + $0x110] sm:$0xff] %vm653, %v630
  %689 = vst.msk [vmem:[%s3 + $0x118] sm:$0xff] %vm653, %v631
  %690 = vst.msk [vmem:[%s3 + $0x120] sm:$0xff] %vm653, %v632
  %691 = vst.msk [vmem:[%s3 + $0x128] sm:$0xff] %vm653, %v633
  %692 = vst.msk [vmem:[%s3 + $0x130] sm:$0xff] %vm653, %v634
  %693 = vst.msk [vmem:[%s3 + $0x138] sm:$0xff] %vm653, %v635
  %694 = vst.msk [vmem:[%s3 + $0x140] sm:$0xff] %vm653, %v636
  %695 = vst.msk [vmem:[%s3 + $0x148] sm:$0xff] %vm653, %v637
  %696 = vst.msk [vmem:[%s3 + $0x150] sm:$0xff] %vm653, %v638
  %697 = vst.msk [vmem:[%s3 + $0x158] sm:$0xff] %vm653, %v639
  %698 = vst.msk [vmem:[%s3 + $0x160] sm:$0xff] %vm653, %v640
  %699 = vst.msk [vmem:[%s3 + $0x168] sm:$0xff] %vm653, %v641
  %700 = vst.msk [vmem:[%s3 + $0x170] sm:$0xff] %vm653, %v642
  %701 = vst.msk [vmem:[%s3 + $0x178] sm:$0xff] %vm653, %v643
  %702 = vst.msk [vmem:[%s3 + $0x180] sm:$0xff] %vm653, %v644
  %703 = vst.msk [vmem:[%s3 + $0x188] sm:$0xff] %vm653, %v645
  %704 = vst.msk [vmem:[%s3 + $0x190] sm:$0xff] %vm653, %v646
  %705 = vst.msk [vmem:[%s3 + $0x198] sm:$0xff] %vm653, %v647
  %706 = vst.msk [vmem:[%s3 + $0x1a0] sm:$0xff] %vm653, %v648
  %707 = vst.msk [vmem:[%s3 + $0x1a8] sm:$0xff] %vm653, %v649
  %708 = vst.msk [vmem:[%s3 + $0x1b0] sm:$0xff] %vm653, %v650
  %709 = vst.msk [vmem:[%s3 + $0x1b8] sm:$0xff] %vm653, %v651
  %710 = vst.msk [vmem:[%s3 + $0x1c0] sm:$0xff] %vm653, %v652
  // Predicated region
  $region14: #{stem_forward.10} parent=0 // pred_check
    _
  $region15: #{stem_forward.10} parent=0 // pred_check_branch
    %712 = sbr.rel (0) target = $region17
  $region16: #{stem_forward.10} parent=0 // pred_region
    _
  $region17: #{stem_forward.10} parent=0 // pred_fallthru
    _
  // Predicated region
  $region18: #{stem_forward.10} parent=0 // pred_check
    _
  $region19: #{stem_forward.10} parent=0 // pred_check_branch
    %714 = sbr.rel (0) target = $region21
  $region20: #{stem_forward.10} parent=0 // pred_region
    _
  $region21: #{stem_forward.10} parent=0 // pred_fallthru
    _

// kernel: stem_forward.11
$region0: #{stem_forward.11}
  #allocation0 [shape = 'u32[]', space=smem, size = 0x4, offset = 0x4, fixed_abs, tag = 'smem constant byte address 0x4 - core index']
  #allocation1 [shape = 'u32[144,128]{1,0:T(1,128)}', space=vmem, size = 0x12000, scoped, tag = 'internal scratch']
  %s0 = inlined_call_operand.vmem [shape: bf16[344,288], index: 0, kind: input, shape index: {}]
  %s1 = inlined_call_operand.vmem [shape: bf16[288,32], index: 1, kind: input, shape index: {}]
  %s2 = inlined_call_operand.vmem [shape: f32[1,32], index: 2, kind: input, shape index: {}]
  %s3 = inlined_call_operand.vmem [shape: f32[344,32], index: 3, kind: output, shape index: {}]
  %s4 = sld [smem:[#allocation0]]
  $region22: #{stem_forward.11} parent=0
    _
  %s6 = ssub.s32 1, %s4
  %s7 = scalar_select 0, %s6, %s4
  // Predicated region
  $region2: #{stem_forward.11} parent=0 // pred_check
    _
  $region3: #{stem_forward.11} parent=0 // pred_check_branch
    %9 = sbr.rel (0) target = $region5
  $region4: #{stem_forward.11} parent=0 // pred_region
    _
  $region5: #{stem_forward.11} parent=0 // pred_fallthru
    _
  // Predicated region
  $region6: #{stem_forward.11} parent=0 // pred_check
    _
  $region7: #{stem_forward.11} parent=0 // pred_check_branch
    %11 = sbr.rel (0) target = $region9
  $region8: #{stem_forward.11} parent=0 // pred_region
    _
  $region9: #{stem_forward.11} parent=0 // pred_fallthru
    _
  // Predicated region
  $region10: #{stem_forward.11} parent=0 // pred_check
    _
  $region11: #{stem_forward.11} parent=0 // pred_check_branch
    %13 = sbr.rel (0) target = $region13
  $region12: #{stem_forward.11} parent=0 // pred_region
    _
  $region13: #{stem_forward.11} parent=0 // pred_fallthru
    _
  %v15 = vld [vmem:[%s0] sm:$0xff]
  %v16 = vld [vmem:[%s0 + $0x8] sm:$0xf]
  %v17 = vld [vmem:[%s0 + $0xc] sm:$0xff]
  %v18 = vld [vmem:[%s0 + $0x14] sm:$0xf]
  %v19 = vld [vmem:[%s0 + $0x18] sm:$0xff]
  %v20 = vld [vmem:[%s0 + $0x20] sm:$0xf]
  %v21 = vld [vmem:[%s0 + $0x24] sm:$0xff]
  %v22 = vld [vmem:[%s0 + $0x2c] sm:$0xf]
  %v23 = vld [vmem:[%s0 + $0x30] sm:$0xff]
  %v24 = vld [vmem:[%s0 + $0x38] sm:$0xf]
  %v25 = vld [vmem:[%s0 + $0x3c] sm:$0xff]
  %v26 = vld [vmem:[%s0 + $0x44] sm:$0xf]
  %v27 = vld [vmem:[%s0 + $0x48] sm:$0xff]
  %v28 = vld [vmem:[%s0 + $0x50] sm:$0xf]
  %v29 = vld [vmem:[%s0 + $0x54] sm:$0xff]
  %v30 = vld [vmem:[%s0 + $0x5c] sm:$0xf]
  %v31 = vld [vmem:[%s0 + $0x60] sm:$0xff]
  %v32 = vld [vmem:[%s0 + $0x68] sm:$0xf]
  %v33 = vld [vmem:[%s0 + $0x6c] sm:$0xff]
  %v34 = vld [vmem:[%s0 + $0x74] sm:$0xf]
  %v35 = vld [vmem:[%s0 + $0x78] sm:$0xff]
  %v36 = vld [vmem:[%s0 + $0x80] sm:$0xf]
  %v37 = vld [vmem:[%s0 + $0x84] sm:$0xff]
  %v38 = vld [vmem:[%s0 + $0x8c] sm:$0xf]
  %v39 = vld [vmem:[%s0 + $0x90] sm:$0xff]
  %v40 = vld [vmem:[%s0 + $0x98] sm:$0xf]
  %v41 = vld [vmem:[%s0 + $0x9c] sm:$0xff]
  %v42 = vld [vmem:[%s0 + $0xa4] sm:$0xf]
  %v43 = vld [vmem:[%s0 + $0xa8] sm:$0xff]
  %v44 = vld [vmem:[%s0 + $0xb0] sm:$0xf]
  %v45 = vld [vmem:[%s0 + $0xb4] sm:$0xff]
  %v46 = vld [vmem:[%s0 + $0xbc] sm:$0xf]
  %v47 = vld [vmem:[%s0 + $0xc0] sm:$0xff]
  %v48 = vld [vmem:[%s0 + $0xc8] sm:$0xf]
  %v49 = vld [vmem:[%s0 + $0xcc] sm:$0xff]
  %v50 = vld [vmem:[%s0 + $0xd4] sm:$0xf]
  %v51 = vld [vmem:[%s0 + $0xd8] sm:$0xff]
  %v52 = vld [vmem:[%s0 + $0xe0] sm:$0xf]
  %v53 = vld [vmem:[%s0 + $0xe4] sm:$0xff]
  %v54 = vld [vmem:[%s0 + $0xec] sm:$0xf]
  %v55 = vld [vmem:[%s0 + $0xf0] sm:$0xff]
  %v56 = vld [vmem:[%s0 + $0xf8] sm:$0xf]
  %v57 = vld [vmem:[%s0 + $0xfc] sm:$0xff]
  %v58 = vld [vmem:[%s0 + $0x104] sm:$0xf]
  %v59 = vld [vmem:[%s0 + $0x108] sm:$0xff]
  %v60 = vld [vmem:[%s0 + $0x110] sm:$0xf]
  %v61 = vld [vmem:[%s0 + $0x114] sm:$0xff]
  %v62 = vld [vmem:[%s0 + $0x11c] sm:$0xf]
  %v63 = vld [vmem:[%s0 + $0x120] sm:$0xff]
  %v64 = vld [vmem:[%s0 + $0x128] sm:$0xf]
  %v65 = vld [vmem:[%s0 + $0x12c] sm:$0xff]
  %v66 = vld [vmem:[%s0 + $0x134] sm:$0xf]
  %v67 = vld [vmem:[%s0 + $0x138] sm:$0xff]
  %v68 = vld [vmem:[%s0 + $0x140] sm:$0xf]
  %v69 = vld [vmem:[%s0 + $0x144] sm:$0xff]
  %v70 = vld [vmem:[%s0 + $0x14c] sm:$0xf]
  %v71 = vld [vmem:[%s0 + $0x150] sm:$0xff]
  %v72 = vld [vmem:[%s0 + $0x158] sm:$0xf]
  %v73 = vld [vmem:[%s0 + $0x15c] sm:$0xff]
  %v74 = vld [vmem:[%s0 + $0x164] sm:$0xf]
  %v75 = vld [vmem:[%s0 + $0x168] sm:$0xff]
  %v76 = vld [vmem:[%s0 + $0x170] sm:$0xf]
  %v77 = vld [vmem:[%s0 + $0x174] sm:$0xff]
  %v78 = vld [vmem:[%s0 + $0x17c] sm:$0xf]
  %v79 = vld [vmem:[%s0 + $0x180] sm:$0xff]
  %v80 = vld [vmem:[%s0 + $0x188] sm:$0xf]
  %v81 = vld [vmem:[%s0 + $0x18c] sm:$0xff]
  %v82 = vld [vmem:[%s0 + $0x194] sm:$0xf]
  %v83 = vld [vmem:[%s0 + $0x198] sm:$0xff]
  %v84 = vld [vmem:[%s0 + $0x1a0] sm:$0xf]
  %v85 = vld [vmem:[%s0 + $0x1a4] sm:$0xff]
  %v86 = vld [vmem:[%s0 + $0x1ac] sm:$0xf]
  %v87 = vld [vmem:[%s0 + $0x1b0] sm:$0xff]
  %v88 = vld [vmem:[%s0 + $0x1b8] sm:$0xf]
  %v89 = vld [vmem:[%s0 + $0x1bc] sm:$0xff]
  %v90 = vld [vmem:[%s0 + $0x1c4] sm:$0xf]
  %v91 = vld [vmem:[%s0 + $0x1c8] sm:$0xff]
  %v92 = vld [vmem:[%s0 + $0x1d0] sm:$0xf]
  %v93 = vld [vmem:[%s0 + $0x1d4] sm:$0xff]
  %v94 = vld [vmem:[%s0 + $0x1dc] sm:$0xf]
  %v95 = vld [vmem:[%s0 + $0x1e0] sm:$0xff]
  %v96 = vld [vmem:[%s0 + $0x1e8] sm:$0xf]
  %v97 = vld [vmem:[%s0 + $0x1ec] sm:$0xff]
  %v98 = vld [vmem:[%s0 + $0x1f4] sm:$0xf]
  %v99 = vld [vmem:[%s0 + $0x1f8] sm:$0xff]
  %v100 = vld [vmem:[%s0 + $0x200] sm:$0xf]
  %v101 = vld [vmem:[%s1] sm:$0xf]
  %v102 = vld [vmem:[%s1 + $0x4] sm:$0xf]
  %v103 = vld [vmem:[%s1 + $0x8] sm:$0xf]
  %v104 = vld [vmem:[%s1 + $0xc] sm:$0xf]
  %v105 = vld [vmem:[%s1 + $0x10] sm:$0xf]
  %v106 = vld [vmem:[%s1 + $0x14] sm:$0xf]
  %v107 = vld [vmem:[%s1 + $0x18] sm:$0xf]
  %v108 = vld [vmem:[%s1 + $0x1c] sm:$0xf]
  %v109 = vld [vmem:[%s1 + $0x20] sm:$0xf]
  %v110 = vld [vmem:[%s1 + $0x24] sm:$0xf]
  %v111 = vld [vmem:[%s1 + $0x28] sm:$0xf]
  %v112 = vld [vmem:[%s1 + $0x2c] sm:$0xf]
  %v113 = vld [vmem:[%s1 + $0x30] sm:$0xf]
  %v114 = vld [vmem:[%s1 + $0x34] sm:$0xf]
  %v115 = vld [vmem:[%s1 + $0x38] sm:$0xf]
  %v116 = vld [vmem:[%s1 + $0x3c] sm:$0xf]
  %v117 = vld [vmem:[%s1 + $0x40] sm:$0xf]
  %v118 = vld [vmem:[%s1 + $0x44] sm:$0xf]
  %v119 = vld [vmem:[%s1 + $0x48] sm:$0xf]
  %v120 = vld [vmem:[%s1 + $0x4c] sm:$0xf]
  %v121 = vld [vmem:[%s1 + $0x50] sm:$0xf]
  %v122 = vld [vmem:[%s1 + $0x54] sm:$0xf]
  %v123 = vld [vmem:[%s1 + $0x58] sm:$0xf]
  %v124 = vld [vmem:[%s1 + $0x5c] sm:$0xf]
  %v125 = vld [vmem:[%s1 + $0x60] sm:$0xf]
  %v126 = vld [vmem:[%s1 + $0x64] sm:$0xf]
  %v127 = vld [vmem:[%s1 + $0x68] sm:$0xf]
  %v128 = vld [vmem:[%s1 + $0x6c] sm:$0xf]
  %v129 = vld [vmem:[%s1 + $0x70] sm:$0xf]
  %v130 = vld [vmem:[%s1 + $0x74] sm:$0xf]
  %v131 = vld [vmem:[%s1 + $0x78] sm:$0xf]
  %v132 = vld [vmem:[%s1 + $0x7c] sm:$0xf]
  %v133 = vld [vmem:[%s1 + $0x80] sm:$0xf]
  %v134 = vld [vmem:[%s1 + $0x84] sm:$0xf]
  %v135 = vld [vmem:[%s1 + $0x88] sm:$0xf]
  %v136 = vld [vmem:[%s1 + $0x8c] sm:$0xf]
  %v137 = vld [vmem:[%s2] sm:$0x1]
  %v139 = vlaneseq
  %v140 = vshrl.u32 %v139, 7
  %v141 = vsub.s32 0, %v140
  %v142 = vrot.slane %v137, %v141
  %v230 = vunpack.c.l.b16 %v15
  %v231 = vunpack.c.h.b16 %v15
  %v232 = vunpack.c.l.b16 %v16
  %v233 = vunpack.c.l.b16 %v17
  %v234 = vunpack.c.h.b16 %v17
  %v235 = vunpack.c.l.b16 %v18
  %v236 = vunpack.c.l.b16 %v19
  %v237 = vunpack.c.h.b16 %v19
  %v238 = vunpack.c.l.b16 %v20
  %v239 = vunpack.c.l.b16 %v21
  %v240 = vunpack.c.h.b16 %v21
  %v241 = vunpack.c.l.b16 %v22
  %v242 = vunpack.c.l.b16 %v23
  %v243 = vunpack.c.h.b16 %v23
  %v244 = vunpack.c.l.b16 %v24
  %v245 = vunpack.c.l.b16 %v25
  %v246 = vunpack.c.h.b16 %v25
  %v247 = vunpack.c.l.b16 %v26
  %v248 = vunpack.c.l.b16 %v27
  %v249 = vunpack.c.h.b16 %v27
  %v250 = vunpack.c.l.b16 %v28
  %v251 = vunpack.c.l.b16 %v29
  %v252 = vunpack.c.h.b16 %v29
  %v253 = vunpack.c.l.b16 %v30
  %v254 = vunpack.c.l.b16 %v31
  %v255 = vunpack.c.h.b16 %v31
  %v256 = vunpack.c.l.b16 %v32
  %v257 = vunpack.c.l.b16 %v33
  %v258 = vunpack.c.h.b16 %v33
  %v259 = vunpack.c.l.b16 %v34
  %v260 = vunpack.c.l.b16 %v35
  %v261 = vunpack.c.h.b16 %v35
  %v262 = vunpack.c.l.b16 %v36
  %v263 = vunpack.c.l.b16 %v37
  %v264 = vunpack.c.h.b16 %v37
  %v265 = vunpack.c.l.b16 %v38
  %v266 = vunpack.c.l.b16 %v39
  %v267 = vunpack.c.h.b16 %v39
  %v268 = vunpack.c.l.b16 %v40
  %v269 = vunpack.c.l.b16 %v41
  %v270 = vunpack.c.h.b16 %v41
  %v271 = vunpack.c.l.b16 %v42
  %v272 = vunpack.c.l.b16 %v43
  %v273 = vunpack.c.h.b16 %v43
  %v274 = vunpack.c.l.b16 %v44
  %v275 = vunpack.c.l.b16 %v45
  %v276 = vunpack.c.h.b16 %v45
  %v277 = vunpack.c.l.b16 %v46
  %v278 = vunpack.c.l.b16 %v47
  %v279 = vunpack.c.h.b16 %v47
  %v280 = vunpack.c.l.b16 %v48
  %v281 = vunpack.c.l.b16 %v49
  %v282 = vunpack.c.h.b16 %v49
  %v283 = vunpack.c.l.b16 %v50
  %v284 = vunpack.c.l.b16 %v51
  %v285 = vunpack.c.h.b16 %v51
  %v286 = vunpack.c.l.b16 %v52
  %v287 = vunpack.c.l.b16 %v53
  %v288 = vunpack.c.h.b16 %v53
  %v289 = vunpack.c.l.b16 %v54
  %v290 = vunpack.c.l.b16 %v55
  %v291 = vunpack.c.h.b16 %v55
  %v292 = vunpack.c.l.b16 %v56
  %v293 = vunpack.c.l.b16 %v57
  %v294 = vunpack.c.h.b16 %v57
  %v295 = vunpack.c.l.b16 %v58
  %v296 = vunpack.c.l.b16 %v59
  %v297 = vunpack.c.h.b16 %v59
  %v298 = vunpack.c.l.b16 %v60
  %v299 = vunpack.c.l.b16 %v61
  %v300 = vunpack.c.h.b16 %v61
  %v301 = vunpack.c.l.b16 %v62
  %v302 = vunpack.c.l.b16 %v63
  %v303 = vunpack.c.h.b16 %v63
  %v304 = vunpack.c.l.b16 %v64
  %v305 = vunpack.c.l.b16 %v65
  %v306 = vunpack.c.h.b16 %v65
  %v307 = vunpack.c.l.b16 %v66
  %v308 = vunpack.c.l.b16 %v67
  %v309 = vunpack.c.h.b16 %v67
  %v310 = vunpack.c.l.b16 %v68
  %v311 = vunpack.c.l.b16 %v69
  %v312 = vunpack.c.h.b16 %v69
  %v313 = vunpack.c.l.b16 %v70
  %v314 = vunpack.c.l.b16 %v71
  %v315 = vunpack.c.h.b16 %v71
  %v316 = vunpack.c.l.b16 %v72
  %v317 = vunpack.c.l.b16 %v73
  %v318 = vunpack.c.h.b16 %v73
  %v319 = vunpack.c.l.b16 %v74
  %v320 = vunpack.c.l.b16 %v75
  %v321 = vunpack.c.h.b16 %v75
  %v322 = vunpack.c.l.b16 %v76
  %v323 = vunpack.c.l.b16 %v77
  %v324 = vunpack.c.h.b16 %v77
  %v325 = vunpack.c.l.b16 %v78
  %v326 = vunpack.c.l.b16 %v79
  %v327 = vunpack.c.h.b16 %v79
  %v328 = vunpack.c.l.b16 %v80
  %v329 = vunpack.c.l.b16 %v81
  %v330 = vunpack.c.h.b16 %v81
  %v331 = vunpack.c.l.b16 %v82
  %v332 = vunpack.c.l.b16 %v83
  %v333 = vunpack.c.h.b16 %v83
  %v334 = vunpack.c.l.b16 %v84
  %v335 = vunpack.c.l.b16 %v85
  %v336 = vunpack.c.h.b16 %v85
  %v337 = vunpack.c.l.b16 %v86
  %v338 = vunpack.c.l.b16 %v87
  %v339 = vunpack.c.h.b16 %v87
  %v340 = vunpack.c.l.b16 %v88
  %v341 = vunpack.c.l.b16 %v89
  %v342 = vunpack.c.h.b16 %v89
  %v343 = vunpack.c.l.b16 %v90
  %v344 = vunpack.c.l.b16 %v91
  %v345 = vunpack.c.h.b16 %v91
  %v346 = vunpack.c.l.b16 %v92
  %v347 = vunpack.c.l.b16 %v93
  %v348 = vunpack.c.h.b16 %v93
  %v349 = vunpack.c.l.b16 %v94
  %v350 = vunpack.c.l.b16 %v95
  %v351 = vunpack.c.h.b16 %v95
  %v352 = vunpack.c.l.b16 %v96
  %v353 = vunpack.c.l.b16 %v97
  %v354 = vunpack.c.h.b16 %v97
  %v355 = vunpack.c.l.b16 %v98
  %v356 = vunpack.c.l.b16 %v99
  %v357 = vunpack.c.h.b16 %v99
  %v358 = vunpack.c.l.b16 %v100
  %v359 = vpack.c.b16 %v233, %v230
  %v360 = vpack.c.b16 %v234, %v231
  %v361 = vpack.c.b16 %v235, %v232
  %v362 = vpack.c.b16 %v239, %v236
  %v363 = vpack.c.b16 %v240, %v237
  %v364 = vpack.c.b16 %v241, %v238
  %v365 = vpack.c.b16 %v245, %v242
  %v366 = vpack.c.b16 %v246, %v243
  %v367 = vpack.c.b16 %v247, %v244
  %v368 = vpack.c.b16 %v251, %v248
  %v369 = vpack.c.b16 %v252, %v249
  %v370 = vpack.c.b16 %v253, %v250
  %v371 = vpack.c.b16 %v257, %v254
  %v372 = vpack.c.b16 %v258, %v255
  %v373 = vpack.c.b16 %v259, %v256
  %v374 = vpack.c.b16 %v263, %v260
  %v375 = vpack.c.b16 %v264, %v261
  %v376 = vpack.c.b16 %v265, %v262
  %v377 = vpack.c.b16 %v269, %v266
  %v378 = vpack.c.b16 %v270, %v267
  %v379 = vpack.c.b16 %v271, %v268
  %v380 = vpack.c.b16 %v275, %v272
  %v381 = vpack.c.b16 %v276, %v273
  %v382 = vpack.c.b16 %v277, %v274
  %v383 = vpack.c.b16 %v281, %v278
  %v384 = vpack.c.b16 %v282, %v279
  %v385 = vpack.c.b16 %v283, %v280
  %v386 = vpack.c.b16 %v287, %v284
  %v387 = vpack.c.b16 %v288, %v285
  %v388 = vpack.c.b16 %v289, %v286
  %v389 = vpack.c.b16 %v293, %v290
  %v390 = vpack.c.b16 %v294, %v291
  %v391 = vpack.c.b16 %v295, %v292
  %v392 = vpack.c.b16 %v299, %v296
  %v393 = vpack.c.b16 %v300, %v297
  %v394 = vpack.c.b16 %v301, %v298
  %v395 = vpack.c.b16 %v305, %v302
  %v396 = vpack.c.b16 %v306, %v303
  %v397 = vpack.c.b16 %v307, %v304
  %v398 = vpack.c.b16 %v311, %v308
  %v399 = vpack.c.b16 %v312, %v309
  %v400 = vpack.c.b16 %v313, %v310
  %v401 = vpack.c.b16 %v317, %v314
  %v402 = vpack.c.b16 %v318, %v315
  %v403 = vpack.c.b16 %v319, %v316
  %v404 = vpack.c.b16 %v323, %v320
  %v405 = vpack.c.b16 %v324, %v321
  %v406 = vpack.c.b16 %v325, %v322
  %v407 = vpack.c.b16 %v329, %v326
  %v408 = vpack.c.b16 %v330, %v327
  %v409 = vpack.c.b16 %v331, %v328
  %v410 = vpack.c.b16 %v335, %v332
  %v411 = vpack.c.b16 %v336, %v333
  %v412 = vpack.c.b16 %v337, %v334
  %v413 = vpack.c.b16 %v341, %v338
  %v414 = vpack.c.b16 %v342, %v339
  %v415 = vpack.c.b16 %v343, %v340
  %v416 = vpack.c.b16 %v347, %v344
  %v417 = vpack.c.b16 %v348, %v345
  %v418 = vpack.c.b16 %v349, %v346
  %v419 = vpack.c.b16 %v353, %v350
  %v420 = vpack.c.b16 %v354, %v351
  %v421 = vpack.c.b16 %v355, %v352
  %v422 = vpack.c.b16 %v356, %v356
  %v423 = vpack.c.b16 %v357, %v357
  %v424 = vpack.c.b16 %v358, %v358
  %v505 = vunpack.c.l.b16 %v101
  %v506 = vunpack.c.l.b16 %v102
  %v507 = vunpack.c.l.b16 %v103
  %v508 = vunpack.c.l.b16 %v104
  %v509 = vunpack.c.l.b16 %v105
  %v510 = vunpack.c.l.b16 %v106
  %v511 = vunpack.c.l.b16 %v107
  %v512 = vunpack.c.l.b16 %v108
  %v513 = vunpack.c.l.b16 %v109
  %v514 = vunpack.c.l.b16 %v110
  %v515 = vunpack.c.l.b16 %v111
  %v516 = vunpack.c.l.b16 %v112
  %v517 = vunpack.c.l.b16 %v113
  %v518 = vunpack.c.l.b16 %v114
  %v519 = vunpack.c.l.b16 %v115
  %v520 = vunpack.c.l.b16 %v116
  %v521 = vunpack.c.l.b16 %v117
  %v522 = vunpack.c.l.b16 %v118
  %v523 = vunpack.c.l.b16 %v119
  %v524 = vunpack.c.l.b16 %v120
  %v525 = vunpack.c.l.b16 %v121
  %v526 = vunpack.c.l.b16 %v122
  %v527 = vunpack.c.l.b16 %v123
  %v528 = vunpack.c.l.b16 %v124
  %v529 = vunpack.c.l.b16 %v125
  %v530 = vunpack.c.l.b16 %v126
  %v531 = vunpack.c.l.b16 %v127
  %v532 = vunpack.c.l.b16 %v128
  %v533 = vunpack.c.l.b16 %v129
  %v534 = vunpack.c.l.b16 %v130
  %v535 = vunpack.c.l.b16 %v131
  %v536 = vunpack.c.l.b16 %v132
  %v537 = vunpack.c.l.b16 %v133
  %v538 = vunpack.c.l.b16 %v134
  %v539 = vunpack.c.l.b16 %v135
  %v540 = vunpack.c.l.b16 %v136
  %v541 = vpack.c.b16 %v506, %v505
  %v542 = vpack.c.b16 %v508, %v507
  %v543 = vpack.c.b16 %v510, %v509
  %v544 = vpack.c.b16 %v512, %v511
  %v545 = vpack.c.b16 %v514, %v513
  %v546 = vpack.c.b16 %v516, %v515
  %v547 = vpack.c.b16 %v518, %v517
  %v548 = vpack.c.b16 %v520, %v519
  %v549 = vpack.c.b16 %v522, %v521
  %v550 = vpack.c.b16 %v524, %v523
  %v551 = vpack.c.b16 %v526, %v525
  %v552 = vpack.c.b16 %v528, %v527
  %v553 = vpack.c.b16 %v530, %v529
  %v554 = vpack.c.b16 %v532, %v531
  %v555 = vpack.c.b16 %v534, %v533
  %v556 = vpack.c.b16 %v536, %v535
  %v557 = vpack.c.b16 %v538, %v537
  %v558 = vpack.c.b16 %v540, %v539
  %vm577 = vcmask 261120
  %v579 = vsel %vm577, %v361, 0
  %v582 = vsel %vm577, %v364, 0
  %v585 = vsel %vm577, %v367, 0
  %v588 = vsel %vm577, %v370, 0
  %v591 = vsel %vm577, %v373, 0
  %v594 = vsel %vm577, %v376, 0
  %v597 = vsel %vm577, %v379, 0
  %v600 = vsel %vm577, %v382, 0
  %v603 = vsel %vm577, %v385, 0
  %v606 = vsel %vm577, %v388, 0
  %v609 = vsel %vm577, %v391, 0
  %v612 = vsel %vm577, %v394, 0
  %v615 = vsel %vm577, %v397, 0
  %v618 = vsel %vm577, %v400, 0
  %v621 = vsel %vm577, %v403, 0
  %v624 = vsel %vm577, %v406, 0
  %v627 = vsel %vm577, %v409, 0
  %v630 = vsel %vm577, %v412, 0
  %v633 = vsel %vm577, %v415, 0
  %v636 = vsel %vm577, %v418, 0
  %v639 = vsel %vm577, %v421, 0
  %v642 = vsel %vm577, %v424, 0
  %644 = vmatprep.subr.bf16.mxu0 0
  %645 = vmatpush1.bf16.msra.mxu0 %v541
  %646 = vmatprep.subr.bf16.mxu0 0
  %647 = vmatpush1.bf16.msra.mxu0 %v542
  %648 = vmatprep.subr.bf16.mxu0 0
  %649 = vmatpush1.bf16.msra.mxu0 %v543
  %650 = vmatprep.subr.bf16.mxu0 0
  %651 = vmatpush1.bf16.msra.mxu0 %v544
  %652 = vmatprep.subr.bf16.mxu0 0
  %653 = vmatpush1.bf16.msra.mxu0 %v545
  %654 = vmatprep.subr.bf16.mxu0 0
  %655 = vmatpush1.bf16.msra.mxu0 %v546
  %656 = vmatprep.subr.bf16.mxu0 0
  %657 = vmatpush1.bf16.msra.mxu0 %v547
  %658 = vmatprep.subr.bf16.mxu0 0
  %659 = vmatpush1.bf16.msra.mxu0 %v548
  %660 = vmatprep.subr.bf16.mxu0 0
  %661 = vmatpush1.bf16.msra.mxu0 %v549
  %662 = vmatprep.subr.bf16.mxu0 0
  %663 = vmatpush1.bf16.msra.mxu0 %v550
  %664 = vmatprep.subr.bf16.mxu0 0
  %665 = vmatpush1.bf16.msra.mxu0 %v551
  %666 = vmatprep.subr.bf16.mxu0 0
  %667 = vmatpush1.bf16.msra.mxu0 %v552
  %668 = vmatprep.subr.bf16.mxu0 0
  %669 = vmatpush1.bf16.msra.mxu0 %v553
  %670 = vmatprep.subr.bf16.mxu0 0
  %671 = vmatpush1.bf16.msra.mxu0 %v554
  %672 = vmatprep.subr.bf16.mxu0 0
  %673 = vmatpush1.bf16.msra.mxu0 %v555
  %674 = vmatprep.subr.bf16.mxu0 0
  %675 = vmatpush1.bf16.msra.mxu0 %v556
  %676 = vmatprep.mubr.bf16.mxu0 %v360
  %677 = vmatmul.mubr.bf16.gmra.mrb[0].mxu0 %v359
  %v678 = vpop.f32.mrb[0].mxu0
  %v679 = vadd.f32 %v142, %v678
  %v680 = vpop.f32.mrb[0].mxu0
  %v681 = vpop.f32.mrb[0].mxu0
  %v682 = vadd.f32 %v142, %v681
  %v683 = vpop.f32.mrb[0].mxu0
  %684 = vmatprep.mubr.bf16.mxu0 %v363
  %685 = vmatmul.mubr.bf16.gmra.mrb[0].mxu0 %v362
  %v686 = vpop.f32.mrb[0].mxu0
  %v687 = vadd.f32 %v142, %v686
  %v688 = vpop.f32.mrb[0].mxu0
  %v689 = vpop.f32.mrb[0].mxu0
  %v690 = vadd.f32 %v142, %v689
  %v691 = vpop.f32.mrb[0].mxu0
  %692 = vmatprep.mubr.bf16.mxu0 %v366
  %693 = vmatmul.mubr.bf16.gmra.mrb[0].mxu0 %v365
  %v694 = vpop.f32.mrb[0].mxu0
  %v695 = vadd.f32 %v142, %v694
  %v696 = vpop.f32.mrb[0].mxu0
  %v697 = vpop.f32.mrb[0].mxu0
  %v698 = vadd.f32 %v142, %v697
  %v699 = vpop.f32.mrb[0].mxu0
  %700 = vmatprep.mubr.bf16.mxu0 %v369
  %701 = vmatmul.mubr.bf16.gmra.mrb[0].mxu0 %v368
  %v702 = vpop.f32.mrb[0].mxu0
  %v703 = vadd.f32 %v142, %v702
  %v704 = vpop.f32.mrb[0].mxu0
  %v705 = vpop.f32.mrb[0].mxu0
  %v706 = vadd.f32 %v142, %v705
  %v707 = vpop.f32.mrb[0].mxu0
  %708 = vmatprep.mubr.bf16.mxu0 %v372
  %709 = vmatmul.mubr.bf16.gmra.mrb[0].mxu0 %v371
  %v710 = vpop.f32.mrb[0].mxu0
  %v711 = vadd.f32 %v142, %v710
  %v712 = vpop.f32.mrb[0].mxu0
  %v713 = vpop.f32.mrb[0].mxu0
  %v714 = vadd.f32 %v142, %v713
  %v715 = vpop.f32.mrb[0].mxu0
  %716 = vmatprep.mubr.bf16.mxu0 %v375
  %717 = vmatmul.mubr.bf16.gmra.mrb[0].mxu0 %v374
  %v718 = vpop.f32.mrb[0].mxu0
  %v719 = vadd.f32 %v142, %v718
  %v720 = vpop.f32.mrb[0].mxu0
  %v721 = vpop.f32.mrb[0].mxu0
  %v722 = vadd.f32 %v142, %v721
  %v723 = vpop.f32.mrb[0].mxu0
  %724 = vmatprep.mubr.bf16.mxu0 %v378
  %725 = vmatmul.mubr.bf16.gmra.mrb[0].mxu0 %v377
  %v726 = vpop.f32.mrb[0].mxu0
  %v727 = vadd.f32 %v142, %v726
  %v728 = vpop.f32.mrb[0].mxu0
  %v729 = vpop.f32.mrb[0].mxu0
  %v730 = vadd.f32 %v142, %v729
  %v731 = vpop.f32.mrb[0].mxu0
  %732 = vmatprep.mubr.bf16.mxu0 %v381
  %733 = vmatmul.mubr.bf16.gmra.mrb[0].mxu0 %v380
  %v734 = vpop.f32.mrb[0].mxu0
  %v735 = vadd.f32 %v142, %v734
  %v736 = vpop.f32.mrb[0].mxu0
  %v737 = vpop.f32.mrb[0].mxu0
  %v738 = vadd.f32 %v142, %v737
  %v739 = vpop.f32.mrb[0].mxu0
  %740 = vmatprep.mubr.bf16.mxu0 %v384
  %741 = vmatmul.mubr.bf16.gmra.mrb[0].mxu0 %v383
  %v742 = vpop.f32.mrb[0].mxu0
  %v743 = vadd.f32 %v142, %v742
  %v744 = vpop.f32.mrb[0].mxu0
  %v745 = vpop.f32.mrb[0].mxu0
  %v746 = vadd.f32 %v142, %v745
  %v747 = vpop.f32.mrb[0].mxu0
  %748 = vmatprep.mubr.bf16.mxu0 %v387
  %749 = vmatmul.mubr.bf16.gmra.mrb[0].mxu0 %v386
  %v750 = vpop.f32.mrb[0].mxu0
  %v751 = vadd.f32 %v142, %v750
  %v752 = vpop.f32.mrb[0].mxu0
  %v753 = vpop.f32.mrb[0].mxu0
  %v754 = vadd.f32 %v142, %v753
  %v755 = vpop.f32.mrb[0].mxu0
  %756 = vmatprep.mubr.bf16.mxu0 %v390
  %757 = vmatmul.mubr.bf16.gmra.mrb[0].mxu0 %v389
  %v758 = vpop.f32.mrb[0].mxu0
  %v759 = vadd.f32 %v142, %v758
  %v760 = vpop.f32.mrb[0].mxu0
  %v761 = vpop.f32.mrb[0].mxu0
  %v762 = vadd.f32 %v142, %v761
  %v763 = vpop.f32.mrb[0].mxu0
  %764 = vmatprep.mubr.bf16.mxu0 %v393
  %765 = vmatmul.mubr.bf16.gmra.mrb[0].mxu0 %v392
  %v766 = vpop.f32.mrb[0].mxu0
  %v767 = vadd.f32 %v142, %v766
  %v768 = vpop.f32.mrb[0].mxu0
  %v769 = vpop.f32.mrb[0].mxu0
  %v770 = vadd.f32 %v142, %v769
  %v771 = vpop.f32.mrb[0].mxu0
  %772 = vmatprep.mubr.bf16.mxu0 %v396
  %773 = vmatmul.mubr.bf16.gmra.mrb[0].mxu0 %v395
  %v774 = vpop.f32.mrb[0].mxu0
  %v775 = vadd.f32 %v142, %v774
  %v776 = vpop.f32.mrb[0].mxu0
  %v777 = vpop.f32.mrb[0].mxu0
  %v778 = vadd.f32 %v142, %v777
  %v779 = vpop.f32.mrb[0].mxu0
  %780 = vmatprep.mubr.bf16.mxu0 %v399
  %781 = vmatmul.mubr.bf16.gmra.mrb[0].mxu0 %v398
  %v782 = vpop.f32.mrb[0].mxu0
  %v783 = vadd.f32 %v142, %v782
  %v784 = vpop.f32.mrb[0].mxu0
  %v785 = vpop.f32.mrb[0].mxu0
  %v786 = vadd.f32 %v142, %v785
  %v787 = vpop.f32.mrb[0].mxu0
  %788 = vmatprep.mubr.bf16.mxu0 %v402
  %789 = vmatmul.mubr.bf16.gmra.mrb[0].mxu0 %v401
  %v790 = vpop.f32.mrb[0].mxu0
  %v791 = vadd.f32 %v142, %v790
  %v792 = vpop.f32.mrb[0].mxu0
  %v793 = vpop.f32.mrb[0].mxu0
  %v794 = vadd.f32 %v142, %v793
  %v795 = vpop.f32.mrb[0].mxu0
  %796 = vmatprep.mubr.bf16.mxu0 %v405
  %797 = vmatmul.mubr.bf16.gmra.mrb[0].mxu0 %v404
  %v798 = vpop.f32.mrb[0].mxu0
  %v799 = vadd.f32 %v142, %v798
  %v800 = vpop.f32.mrb[0].mxu0
  %v801 = vpop.f32.mrb[0].mxu0
  %v802 = vadd.f32 %v142, %v801
  %v803 = vpop.f32.mrb[0].mxu0
  %804 = vmatprep.mubr.bf16.mxu0 %v408
  %805 = vmatmul.mubr.bf16.gmra.mrb[0].mxu0 %v407
  %v806 = vpop.f32.mrb[0].mxu0
  %v807 = vadd.f32 %v142, %v806
  %v808 = vpop.f32.mrb[0].mxu0
  %v809 = vpop.f32.mrb[0].mxu0
  %v810 = vadd.f32 %v142, %v809
  %v811 = vpop.f32.mrb[0].mxu0
  %812 = vmatprep.mubr.bf16.mxu0 %v411
  %813 = vmatmul.mubr.bf16.gmra.mrb[0].mxu0 %v410
  %v814 = vpop.f32.mrb[0].mxu0
  %v815 = vadd.f32 %v142, %v814
  %v816 = vpop.f32.mrb[0].mxu0
  %v817 = vpop.f32.mrb[0].mxu0
  %v818 = vadd.f32 %v142, %v817
  %v819 = vpop.f32.mrb[0].mxu0
  %820 = vmatprep.mubr.bf16.mxu0 %v414
  %821 = vmatmul.mubr.bf16.gmra.mrb[0].mxu0 %v413
  %v822 = vpop.f32.mrb[0].mxu0
  %v823 = vadd.f32 %v142, %v822
  %v824 = vpop.f32.mrb[0].mxu0
  %v825 = vpop.f32.mrb[0].mxu0
  %v826 = vadd.f32 %v142, %v825
  %v827 = vpop.f32.mrb[0].mxu0
  %828 = vmatprep.mubr.bf16.mxu0 %v417
  %829 = vmatmul.mubr.bf16.gmra.mrb[0].mxu0 %v416
  %v830 = vpop.f32.mrb[0].mxu0
  %v831 = vadd.f32 %v142, %v830
  %v832 = vpop.f32.mrb[0].mxu0
  %v833 = vpop.f32.mrb[0].mxu0
  %v834 = vadd.f32 %v142, %v833
  %v835 = vpop.f32.mrb[0].mxu0
  %836 = vmatprep.mubr.bf16.mxu0 %v420
  %837 = vmatmul.mubr.bf16.gmra.mrb[0].mxu0 %v419
  %v838 = vpop.f32.mrb[0].mxu0
  %v839 = vadd.f32 %v142, %v838
  %v840 = vpop.f32.mrb[0].mxu0
  %v841 = vpop.f32.mrb[0].mxu0
  %v842 = vadd.f32 %v142, %v841
  %v843 = vpop.f32.mrb[0].mxu0
  %844 = vmatprep.mubr.bf16.mxu0 %v423
  %845 = vmatmul.mubr.bf16.gmra.mrb[0].mxu0 %v422
  %v846 = vpop.f32.mrb[0].mxu0
  %v847 = vadd.f32 %v142, %v846
  %v848 = vpop.f32.mrb[0].mxu0
  %v849 = vpop.f32.mrb[0].mxu0
  %v850 = vpop.f32.mrb[0].mxu0
  %851 = vdwg.mxu0
  %852 = vmatprep.subr.bf16.mxu0 0
  %853 = vmatpush1.bf16.msra.mxu0 %v557
  %854 = vmatprep.subr.bf16.mxu0 0
  %855 = vmatpush1.bf16.msra.mxu0 %v558
  %856 = vmatprep.subr.bf16.mxu0 0
  %857 = vmatpush1.bf16.msra.mxu0 0
  %858 = vmatprep.subr.bf16.mxu0 0
  %859 = vmatpush1.bf16.msra.mxu0 0
  %860 = vmatprep.subr.bf16.mxu0 0
  %861 = vmatpush1.bf16.msra.mxu0 0
  %862 = vmatprep.subr.bf16.mxu0 0
  %863 = vmatpush1.bf16.msra.mxu0 0
  %864 = vmatprep.subr.bf16.mxu0 0
  %865 = vmatpush1.bf16.msra.mxu0 0
  %866 = vmatprep.subr.bf16.mxu0 0
  %867 = vmatpush1.bf16.msra.mxu0 0
  %868 = vmatprep.subr.bf16.mxu0 0
  %869 = vmatpush1.bf16.msra.mxu0 0
  %870 = vmatprep.subr.bf16.mxu0 0
  %871 = vmatpush1.bf16.msra.mxu0 0
  %872 = vmatprep.subr.bf16.mxu0 0
  %873 = vmatpush1.bf16.msra.mxu0 0
  %874 = vmatprep.subr.bf16.mxu0 0
  %875 = vmatpush1.bf16.msra.mxu0 0
  %876 = vmatprep.subr.bf16.mxu0 0
  %877 = vmatpush1.bf16.msra.mxu0 0
  %878 = vmatprep.subr.bf16.mxu0 0
  %879 = vmatpush1.bf16.msra.mxu0 0
  %880 = vmatprep.subr.bf16.mxu0 0
  %881 = vmatpush1.bf16.msra.mxu0 0
  %882 = vmatprep.subr.bf16.mxu0 0
  %883 = vmatpush1.bf16.msra.mxu0 0
  %884 = vmatprep.mubr.bf16.mxu0 0
  %885 = vmatmul.mubr.bf16.gmra.mrb[0].mxu0 %v579
  %v886 = vpop.f32.mrb[0].mxu0
  %v887 = vadd.f32 %v679, %v886
  %v888 = vpop.f32.mrb[0].mxu0
  %v889 = vpop.f32.mrb[0].mxu0
  %v890 = vadd.f32 %v682, %v889
  %v891 = vpop.f32.mrb[0].mxu0
  %892 = vmatprep.mubr.bf16.mxu0 0
  %893 = vmatmul.mubr.bf16.gmra.mrb[0].mxu0 %v582
  %v894 = vpop.f32.mrb[0].mxu0
  %v895 = vadd.f32 %v687, %v894
  %v896 = vpop.f32.mrb[0].mxu0
  %v897 = vpop.f32.mrb[0].mxu0
  %v898 = vadd.f32 %v690, %v897
  %v899 = vpop.f32.mrb[0].mxu0
  %900 = vmatprep.mubr.bf16.mxu0 0
  %901 = vmatmul.mubr.bf16.gmra.mrb[0].mxu0 %v585
  %v902 = vpop.f32.mrb[0].mxu0
  %v903 = vadd.f32 %v695, %v902
  %v904 = vpop.f32.mrb[0].mxu0
  %v905 = vpop.f32.mrb[0].mxu0
  %v906 = vadd.f32 %v698, %v905
  %v907 = vpop.f32.mrb[0].mxu0
  %908 = vmatprep.mubr.bf16.mxu0 0
  %909 = vmatmul.mubr.bf16.gmra.mrb[0].mxu0 %v588
  %v910 = vpop.f32.mrb[0].mxu0
  %v911 = vadd.f32 %v703, %v910
  %v912 = vpop.f32.mrb[0].mxu0
  %v913 = vpop.f32.mrb[0].mxu0
  %v914 = vadd.f32 %v706, %v913
  %v915 = vpop.f32.mrb[0].mxu0
  %916 = vmatprep.mubr.bf16.mxu0 0
  %917 = vmatmul.mubr.bf16.gmra.mrb[0].mxu0 %v591
  %v918 = vpop.f32.mrb[0].mxu0
  %v919 = vadd.f32 %v711, %v918
  %v920 = vpop.f32.mrb[0].mxu0
  %v921 = vpop.f32.mrb[0].mxu0
  %v922 = vadd.f32 %v714, %v921
  %v923 = vpop.f32.mrb[0].mxu0
  %924 = vmatprep.mubr.bf16.mxu0 0
  %925 = vmatmul.mubr.bf16.gmra.mrb[0].mxu0 %v594
  %v926 = vpop.f32.mrb[0].mxu0
  %v927 = vadd.f32 %v719, %v926
  %v928 = vpop.f32.mrb[0].mxu0
  %v929 = vpop.f32.mrb[0].mxu0
  %v930 = vadd.f32 %v722, %v929
  %v931 = vpop.f32.mrb[0].mxu0
  %932 = vmatprep.mubr.bf16.mxu0 0
  %933 = vmatmul.mubr.bf16.gmra.mrb[0].mxu0 %v597
  %v934 = vpop.f32.mrb[0].mxu0
  %v935 = vadd.f32 %v727, %v934
  %v936 = vpop.f32.mrb[0].mxu0
  %v937 = vpop.f32.mrb[0].mxu0
  %v938 = vadd.f32 %v730, %v937
  %v939 = vpop.f32.mrb[0].mxu0
  %940 = vmatprep.mubr.bf16.mxu0 0
  %941 = vmatmul.mubr.bf16.gmra.mrb[0].mxu0 %v600
  %v942 = vpop.f32.mrb[0].mxu0
  %v943 = vadd.f32 %v735, %v942
  %v944 = vpop.f32.mrb[0].mxu0
  %v945 = vpop.f32.mrb[0].mxu0
  %v946 = vadd.f32 %v738, %v945
  %v947 = vpop.f32.mrb[0].mxu0
  %948 = vmatprep.mubr.bf16.mxu0 0
  %949 = vmatmul.mubr.bf16.gmra.mrb[0].mxu0 %v603
  %v950 = vpop.f32.mrb[0].mxu0
  %v951 = vadd.f32 %v743, %v950
  %v952 = vpop.f32.mrb[0].mxu0
  %v953 = vpop.f32.mrb[0].mxu0
  %v954 = vadd.f32 %v746, %v953
  %v955 = vpop.f32.mrb[0].mxu0
  %956 = vmatprep.mubr.bf16.mxu0 0
  %957 = vmatmul.mubr.bf16.gmra.mrb[0].mxu0 %v606
  %v958 = vpop.f32.mrb[0].mxu0
  %v959 = vadd.f32 %v751, %v958
  %v960 = vpop.f32.mrb[0].mxu0
  %v961 = vpop.f32.mrb[0].mxu0
  %v962 = vadd.f32 %v754, %v961
  %v963 = vpop.f32.mrb[0].mxu0
  %964 = vmatprep.mubr.bf16.mxu0 0
  %965 = vmatmul.mubr.bf16.gmra.mrb[0].mxu0 %v609
  %v966 = vpop.f32.mrb[0].mxu0
  %v967 = vadd.f32 %v759, %v966
  %v968 = vpop.f32.mrb[0].mxu0
  %v969 = vpop.f32.mrb[0].mxu0
  %v970 = vadd.f32 %v762, %v969
  %v971 = vpop.f32.mrb[0].mxu0
  %972 = vmatprep.mubr.bf16.mxu0 0
  %973 = vmatmul.mubr.bf16.gmra.mrb[0].mxu0 %v612
  %v974 = vpop.f32.mrb[0].mxu0
  %v975 = vadd.f32 %v767, %v974
  %v976 = vpop.f32.mrb[0].mxu0
  %v977 = vpop.f32.mrb[0].mxu0
  %v978 = vadd.f32 %v770, %v977
  %v979 = vpop.f32.mrb[0].mxu0
  %980 = vmatprep.mubr.bf16.mxu0 0
  %981 = vmatmul.mubr.bf16.gmra.mrb[0].mxu0 %v615
  %v982 = vpop.f32.mrb[0].mxu0
  %v983 = vadd.f32 %v775, %v982
  %v984 = vpop.f32.mrb[0].mxu0
  %v985 = vpop.f32.mrb[0].mxu0
  %v986 = vadd.f32 %v778, %v985
  %v987 = vpop.f32.mrb[0].mxu0
  %988 = vmatprep.mubr.bf16.mxu0 0
  %989 = vmatmul.mubr.bf16.gmra.mrb[0].mxu0 %v618
  %v990 = vpop.f32.mrb[0].mxu0
  %v991 = vadd.f32 %v783, %v990
  %v992 = vpop.f32.mrb[0].mxu0
  %v993 = vpop.f32.mrb[0].mxu0
  %v994 = vadd.f32 %v786, %v993
  %v995 = vpop.f32.mrb[0].mxu0
  %996 = vmatprep.mubr.bf16.mxu0 0
  %997 = vmatmul.mubr.bf16.gmra.mrb[0].mxu0 %v621
  %v998 = vpop.f32.mrb[0].mxu0
  %v999 = vadd.f32 %v791, %v998
  %v1000 = vpop.f32.mrb[0].mxu0
  %v1001 = vpop.f32.mrb[0].mxu0
  %v1002 = vadd.f32 %v794, %v1001
  %v1003 = vpop.f32.mrb[0].mxu0
  %1004 = vmatprep.mubr.bf16.mxu0 0
  %1005 = vmatmul.mubr.bf16.gmra.mrb[0].mxu0 %v624
  %v1006 = vpop.f32.mrb[0].mxu0
  %v1007 = vadd.f32 %v799, %v1006
  %v1008 = vpop.f32.mrb[0].mxu0
  %v1009 = vpop.f32.mrb[0].mxu0
  %v1010 = vadd.f32 %v802, %v1009
  %v1011 = vpop.f32.mrb[0].mxu0
  %1012 = vmatprep.mubr.bf16.mxu0 0
  %1013 = vmatmul.mubr.bf16.gmra.mrb[0].mxu0 %v627
  %v1014 = vpop.f32.mrb[0].mxu0
  %v1015 = vadd.f32 %v807, %v1014
  %v1016 = vpop.f32.mrb[0].mxu0
  %v1017 = vpop.f32.mrb[0].mxu0
  %v1018 = vadd.f32 %v810, %v1017
  %v1019 = vpop.f32.mrb[0].mxu0
  %1020 = vmatprep.mubr.bf16.mxu0 0
  %1021 = vmatmul.mubr.bf16.gmra.mrb[0].mxu0 %v630
  %v1022 = vpop.f32.mrb[0].mxu0
  %v1023 = vadd.f32 %v815, %v1022
  %v1024 = vpop.f32.mrb[0].mxu0
  %v1025 = vpop.f32.mrb[0].mxu0
  %v1026 = vadd.f32 %v818, %v1025
  %v1027 = vpop.f32.mrb[0].mxu0
  %1028 = vmatprep.mubr.bf16.mxu0 0
  %1029 = vmatmul.mubr.bf16.gmra.mrb[0].mxu0 %v633
  %v1030 = vpop.f32.mrb[0].mxu0
  %v1031 = vadd.f32 %v823, %v1030
  %v1032 = vpop.f32.mrb[0].mxu0
  %v1033 = vpop.f32.mrb[0].mxu0
  %v1034 = vadd.f32 %v826, %v1033
  %v1035 = vpop.f32.mrb[0].mxu0
  %1036 = vmatprep.mubr.bf16.mxu0 0
  %1037 = vmatmul.mubr.bf16.gmra.mrb[0].mxu0 %v636
  %v1038 = vpop.f32.mrb[0].mxu0
  %v1039 = vadd.f32 %v831, %v1038
  %v1040 = vpop.f32.mrb[0].mxu0
  %v1041 = vpop.f32.mrb[0].mxu0
  %v1042 = vadd.f32 %v834, %v1041
  %v1043 = vpop.f32.mrb[0].mxu0
  %1044 = vmatprep.mubr.bf16.mxu0 0
  %1045 = vmatmul.mubr.bf16.gmra.mrb[0].mxu0 %v639
  %v1046 = vpop.f32.mrb[0].mxu0
  %v1047 = vadd.f32 %v839, %v1046
  %v1048 = vpop.f32.mrb[0].mxu0
  %v1049 = vpop.f32.mrb[0].mxu0
  %v1050 = vadd.f32 %v842, %v1049
  %v1051 = vpop.f32.mrb[0].mxu0
  %1052 = vmatprep.mubr.bf16.mxu0 0
  %1053 = vmatmul.mubr.bf16.gmra.mrb[0].mxu0 %v642
  %v1054 = vpop.f32.mrb[0].mxu0
  %v1055 = vadd.f32 %v847, %v1054
  %v1056 = vpop.f32.mrb[0].mxu0
  %v1057 = vpop.f32.mrb[0].mxu0
  %v1058 = vpop.f32.mrb[0].mxu0
  %1059 = vdwg.mxu0
  %v1060 = vmax.f32 %v887, 0.0
  %v1061 = vmax.f32 %v890, 0.0
  %v1062 = vmax.f32 %v895, 0.0
  %v1063 = vmax.f32 %v898, 0.0
  %v1064 = vmax.f32 %v903, 0.0
  %v1065 = vmax.f32 %v906, 0.0
  %v1066 = vmax.f32 %v911, 0.0
  %v1067 = vmax.f32 %v914, 0.0
  %v1068 = vmax.f32 %v919, 0.0
  %v1069 = vmax.f32 %v922, 0.0
  %v1070 = vmax.f32 %v927, 0.0
  %v1071 = vmax.f32 %v930, 0.0
  %v1072 = vmax.f32 %v935, 0.0
  %v1073 = vmax.f32 %v938, 0.0
  %v1074 = vmax.f32 %v943, 0.0
  %v1075 = vmax.f32 %v946, 0.0
  %v1076 = vmax.f32 %v951, 0.0
  %v1077 = vmax.f32 %v954, 0.0
  %v1078 = vmax.f32 %v959, 0.0
  %v1079 = vmax.f32 %v962, 0.0
  %v1080 = vmax.f32 %v967, 0.0
  %v1081 = vmax.f32 %v970, 0.0
  %v1082 = vmax.f32 %v975, 0.0
  %v1083 = vmax.f32 %v978, 0.0
  %v1084 = vmax.f32 %v983, 0.0
  %v1085 = vmax.f32 %v986, 0.0
  %v1086 = vmax.f32 %v991, 0.0
  %v1087 = vmax.f32 %v994, 0.0
  %v1088 = vmax.f32 %v999, 0.0
  %v1089 = vmax.f32 %v1002, 0.0
  %v1090 = vmax.f32 %v1007, 0.0
  %v1091 = vmax.f32 %v1010, 0.0
  %v1092 = vmax.f32 %v1015, 0.0
  %v1093 = vmax.f32 %v1018, 0.0
  %v1094 = vmax.f32 %v1023, 0.0
  %v1095 = vmax.f32 %v1026, 0.0
  %v1096 = vmax.f32 %v1031, 0.0
  %v1097 = vmax.f32 %v1034, 0.0
  %v1098 = vmax.f32 %v1039, 0.0
  %v1099 = vmax.f32 %v1042, 0.0
  %v1100 = vmax.f32 %v1047, 0.0
  %v1101 = vmax.f32 %v1050, 0.0
  %v1102 = vmax.f32 %v1055, 0.0
  %1103 = vst.msk [vmem:[%s3] sm:$0xff] %vm577, %v1060
  %1104 = vst.msk [vmem:[%s3 + $0x8] sm:$0xff] %vm577, %v1061
  %1105 = vst.msk [vmem:[%s3 + $0x10] sm:$0xff] %vm577, %v1062
  %1106 = vst.msk [vmem:[%s3 + $0x18] sm:$0xff] %vm577, %v1063
  %1107 = vst.msk [vmem:[%s3 + $0x20] sm:$0xff] %vm577, %v1064
  %1108 = vst.msk [vmem:[%s3 + $0x28] sm:$0xff] %vm577, %v1065
  %1109 = vst.msk [vmem:[%s3 + $0x30] sm:$0xff] %vm577, %v1066
  %1110 = vst.msk [vmem:[%s3 + $0x38] sm:$0xff] %vm577, %v1067
  %1111 = vst.msk [vmem:[%s3 + $0x40] sm:$0xff] %vm577, %v1068
  %1112 = vst.msk [vmem:[%s3 + $0x48] sm:$0xff] %vm577, %v1069
  %1113 = vst.msk [vmem:[%s3 + $0x50] sm:$0xff] %vm577, %v1070
  %1114 = vst.msk [vmem:[%s3 + $0x58] sm:$0xff] %vm577, %v1071
  %1115 = vst.msk [vmem:[%s3 + $0x60] sm:$0xff] %vm577, %v1072
  %1116 = vst.msk [vmem:[%s3 + $0x68] sm:$0xff] %vm577, %v1073
  %1117 = vst.msk [vmem:[%s3 + $0x70] sm:$0xff] %vm577, %v1074
  %1118 = vst.msk [vmem:[%s3 + $0x78] sm:$0xff] %vm577, %v1075
  %1119 = vst.msk [vmem:[%s3 + $0x80] sm:$0xff] %vm577, %v1076
  %1120 = vst.msk [vmem:[%s3 + $0x88] sm:$0xff] %vm577, %v1077
  %1121 = vst.msk [vmem:[%s3 + $0x90] sm:$0xff] %vm577, %v1078
  %1122 = vst.msk [vmem:[%s3 + $0x98] sm:$0xff] %vm577, %v1079
  %1123 = vst.msk [vmem:[%s3 + $0xa0] sm:$0xff] %vm577, %v1080
  %1124 = vst.msk [vmem:[%s3 + $0xa8] sm:$0xff] %vm577, %v1081
  %1125 = vst.msk [vmem:[%s3 + $0xb0] sm:$0xff] %vm577, %v1082
  %1126 = vst.msk [vmem:[%s3 + $0xb8] sm:$0xff] %vm577, %v1083
  %1127 = vst.msk [vmem:[%s3 + $0xc0] sm:$0xff] %vm577, %v1084
  %1128 = vst.msk [vmem:[%s3 + $0xc8] sm:$0xff] %vm577, %v1085
  %1129 = vst.msk [vmem:[%s3 + $0xd0] sm:$0xff] %vm577, %v1086
  %1130 = vst.msk [vmem:[%s3 + $0xd8] sm:$0xff] %vm577, %v1087
  %1131 = vst.msk [vmem:[%s3 + $0xe0] sm:$0xff] %vm577, %v1088
  %1132 = vst.msk [vmem:[%s3 + $0xe8] sm:$0xff] %vm577, %v1089
  %1133 = vst.msk [vmem:[%s3 + $0xf0] sm:$0xff] %vm577, %v1090
  %1134 = vst.msk [vmem:[%s3 + $0xf8] sm:$0xff] %vm577, %v1091
  %1135 = vst.msk [vmem:[%s3 + $0x100] sm:$0xff] %vm577, %v1092
  %1136 = vst.msk [vmem:[%s3 + $0x108] sm:$0xff] %vm577, %v1093
  %1137 = vst.msk [vmem:[%s3 + $0x110] sm:$0xff] %vm577, %v1094
  %1138 = vst.msk [vmem:[%s3 + $0x118] sm:$0xff] %vm577, %v1095
  %1139 = vst.msk [vmem:[%s3 + $0x120] sm:$0xff] %vm577, %v1096
  %1140 = vst.msk [vmem:[%s3 + $0x128] sm:$0xff] %vm577, %v1097
  %1141 = vst.msk [vmem:[%s3 + $0x130] sm:$0xff] %vm577, %v1098
  %1142 = vst.msk [vmem:[%s3 + $0x138] sm:$0xff] %vm577, %v1099
  %1143 = vst.msk [vmem:[%s3 + $0x140] sm:$0xff] %vm577, %v1100
  %1144 = vst.msk [vmem:[%s3 + $0x148] sm:$0xff] %vm577, %v1101
  %1145 = vst.msk [vmem:[%s3 + $0x150] sm:$0xff] %vm577, %v1102
  // Predicated region
  $region14: #{stem_forward.11} parent=0 // pred_check
    _
  $region15: #{stem_forward.11} parent=0 // pred_check_branch
    %1147 = sbr.rel (0) target = $region17
  $region16: #{stem_forward.11} parent=0 // pred_region
    _
  $region17: #{stem_forward.11} parent=0 // pred_fallthru
    _
  // Predicated region
  $region18: #{stem_forward.11} parent=0 // pred_check
    _
  $region19: #{stem_forward.11} parent=0 // pred_check_branch
    %1149 = sbr.rel (0) target = $region21
  $region20: #{stem_forward.11} parent=0 // pred_region
    _
  $region21: #{stem_forward.11} parent=0 // pred_fallthru
    _

// kernel: stem_forward.12
$region0: #{stem_forward.12}
  #allocation0 [shape = 'u32[]', space=smem, size = 0x4, offset = 0x4, fixed_abs, tag = 'smem constant byte address 0x4 - core index']
  #allocation1 [shape = 'u32[144,128]{1,0:T(1,128)}', space=vmem, size = 0x12000, scoped, tag = 'internal scratch']
  %s0 = inlined_call_operand.vmem [shape: bf16[344,288], index: 0, kind: input, shape index: {}]
  %s1 = inlined_call_operand.vmem [shape: bf16[288,64], index: 1, kind: input, shape index: {}]
  %s2 = inlined_call_operand.vmem [shape: f32[1,64], index: 2, kind: input, shape index: {}]
  %s3 = inlined_call_operand.vmem [shape: f32[344,64], index: 3, kind: output, shape index: {}]
  %s4 = sld [smem:[#allocation0]]
  $region22: #{stem_forward.12} parent=0
    _
  %s6 = ssub.s32 1, %s4
  %s7 = scalar_select 0, %s6, %s4
  // Predicated region
  $region2: #{stem_forward.12} parent=0 // pred_check
    _
  $region3: #{stem_forward.12} parent=0 // pred_check_branch
    %9 = sbr.rel (0) target = $region5
  $region4: #{stem_forward.12} parent=0 // pred_region
    _
  $region5: #{stem_forward.12} parent=0 // pred_fallthru
    _
  // Predicated region
  $region6: #{stem_forward.12} parent=0 // pred_check
    _
  $region7: #{stem_forward.12} parent=0 // pred_check_branch
    %11 = sbr.rel (0) target = $region9
  $region8: #{stem_forward.12} parent=0 // pred_region
    _
  $region9: #{stem_forward.12} parent=0 // pred_fallthru
    _
  // Predicated region
  $region10: #{stem_forward.12} parent=0 // pred_check
    _
  $region11: #{stem_forward.12} parent=0 // pred_check_branch
    %13 = sbr.rel (0) target = $region13
  $region12: #{stem_forward.12} parent=0 // pred_region
    _
  $region13: #{stem_forward.12} parent=0 // pred_fallthru
    _
  %v15 = vld [vmem:[%s0] sm:$0xff]
  %v16 = vld [vmem:[%s0 + $0x8] sm:$0xf]
  %v17 = vld [vmem:[%s0 + $0xc] sm:$0xff]
  %v18 = vld [vmem:[%s0 + $0x14] sm:$0xf]
  %v19 = vld [vmem:[%s0 + $0x18] sm:$0xff]
  %v20 = vld [vmem:[%s0 + $0x20] sm:$0xf]
  %v21 = vld [vmem:[%s0 + $0x24] sm:$0xff]
  %v22 = vld [vmem:[%s0 + $0x2c] sm:$0xf]
  %v23 = vld [vmem:[%s0 + $0x30] sm:$0xff]
  %v24 = vld [vmem:[%s0 + $0x38] sm:$0xf]
  %v25 = vld [vmem:[%s0 + $0x3c] sm:$0xff]
  %v26 = vld [vmem:[%s0 + $0x44] sm:$0xf]
  %v27 = vld [vmem:[%s0 + $0x48] sm:$0xff]
  %v28 = vld [vmem:[%s0 + $0x50] sm:$0xf]
  %v29 = vld [vmem:[%s0 + $0x54] sm:$0xff]
  %v30 = vld [vmem:[%s0 + $0x5c] sm:$0xf]
  %v31 = vld [vmem:[%s0 + $0x60] sm:$0xff]
  %v32 = vld [vmem:[%s0 + $0x68] sm:$0xf]
  %v33 = vld [vmem:[%s0 + $0x6c] sm:$0xff]
  %v34 = vld [vmem:[%s0 + $0x74] sm:$0xf]
  %v35 = vld [vmem:[%s0 + $0x78] sm:$0xff]
  %v36 = vld [vmem:[%s0 + $0x80] sm:$0xf]
  %v37 = vld [vmem:[%s0 + $0x84] sm:$0xff]
  %v38 = vld [vmem:[%s0 + $0x8c] sm:$0xf]
  %v39 = vld [vmem:[%s0 + $0x90] sm:$0xff]
  %v40 = vld [vmem:[%s0 + $0x98] sm:$0xf]
  %v41 = vld [vmem:[%s0 + $0x9c] sm:$0xff]
  %v42 = vld [vmem:[%s0 + $0xa4] sm:$0xf]
  %v43 = vld [vmem:[%s0 + $0xa8] sm:$0xff]
  %v44 = vld [vmem:[%s0 + $0xb0] sm:$0xf]
  %v45 = vld [vmem:[%s0 + $0xb4] sm:$0xff]
  %v46 = vld [vmem:[%s0 + $0xbc] sm:$0xf]
  %v47 = vld [vmem:[%s0 + $0xc0] sm:$0xff]
  %v48 = vld [vmem:[%s0 + $0xc8] sm:$0xf]
  %v49 = vld [vmem:[%s0 + $0xcc] sm:$0xff]
  %v50 = vld [vmem:[%s0 + $0xd4] sm:$0xf]
  %v51 = vld [vmem:[%s0 + $0xd8] sm:$0xff]
  %v52 = vld [vmem:[%s0 + $0xe0] sm:$0xf]
  %v53 = vld [vmem:[%s0 + $0xe4] sm:$0xff]
  %v54 = vld [vmem:[%s0 + $0xec] sm:$0xf]
  %v55 = vld [vmem:[%s0 + $0xf0] sm:$0xff]
  %v56 = vld [vmem:[%s0 + $0xf8] sm:$0xf]
  %v57 = vld [vmem:[%s0 + $0xfc] sm:$0xff]
  %v58 = vld [vmem:[%s0 + $0x104] sm:$0xf]
  %v59 = vld [vmem:[%s0 + $0x108] sm:$0xff]
  %v60 = vld [vmem:[%s0 + $0x110] sm:$0xf]
  %v61 = vld [vmem:[%s0 + $0x114] sm:$0xff]
  %v62 = vld [vmem:[%s0 + $0x11c] sm:$0xf]
  %v63 = vld [vmem:[%s0 + $0x120] sm:$0xff]
  %v64 = vld [vmem:[%s0 + $0x128] sm:$0xf]
  %v65 = vld [vmem:[%s0 + $0x12c] sm:$0xff]
  %v66 = vld [vmem:[%s0 + $0x134] sm:$0xf]
  %v67 = vld [vmem:[%s0 + $0x138] sm:$0xff]
  %v68 = vld [vmem:[%s0 + $0x140] sm:$0xf]
  %v69 = vld [vmem:[%s0 + $0x144] sm:$0xff]
  %v70 = vld [vmem:[%s0 + $0x14c] sm:$0xf]
  %v71 = vld [vmem:[%s0 + $0x150] sm:$0xff]
  %v72 = vld [vmem:[%s0 + $0x158] sm:$0xf]
  %v73 = vld [vmem:[%s0 + $0x15c] sm:$0xff]
  %v74 = vld [vmem:[%s0 + $0x164] sm:$0xf]
  %v75 = vld [vmem:[%s0 + $0x168] sm:$0xff]
  %v76 = vld [vmem:[%s0 + $0x170] sm:$0xf]
  %v77 = vld [vmem:[%s0 + $0x174] sm:$0xff]
  %v78 = vld [vmem:[%s0 + $0x17c] sm:$0xf]
  %v79 = vld [vmem:[%s0 + $0x180] sm:$0xff]
  %v80 = vld [vmem:[%s0 + $0x188] sm:$0xf]
  %v81 = vld [vmem:[%s0 + $0x18c] sm:$0xff]
  %v82 = vld [vmem:[%s0 + $0x194] sm:$0xf]
  %v83 = vld [vmem:[%s0 + $0x198] sm:$0xff]
  %v84 = vld [vmem:[%s0 + $0x1a0] sm:$0xf]
  %v85 = vld [vmem:[%s0 + $0x1a4] sm:$0xff]
  %v86 = vld [vmem:[%s0 + $0x1ac] sm:$0xf]
  %v87 = vld [vmem:[%s0 + $0x1b0] sm:$0xff]
  %v88 = vld [vmem:[%s0 + $0x1b8] sm:$0xf]
  %v89 = vld [vmem:[%s0 + $0x1bc] sm:$0xff]
  %v90 = vld [vmem:[%s0 + $0x1c4] sm:$0xf]
  %v91 = vld [vmem:[%s0 + $0x1c8] sm:$0xff]
  %v92 = vld [vmem:[%s0 + $0x1d0] sm:$0xf]
  %v93 = vld [vmem:[%s0 + $0x1d4] sm:$0xff]
  %v94 = vld [vmem:[%s0 + $0x1dc] sm:$0xf]
  %v95 = vld [vmem:[%s0 + $0x1e0] sm:$0xff]
  %v96 = vld [vmem:[%s0 + $0x1e8] sm:$0xf]
  %v97 = vld [vmem:[%s0 + $0x1ec] sm:$0xff]
  %v98 = vld [vmem:[%s0 + $0x1f4] sm:$0xf]
  %v99 = vld [vmem:[%s0 + $0x1f8] sm:$0xff]
  %v100 = vld [vmem:[%s0 + $0x200] sm:$0xf]
  %v101 = vld [vmem:[%s1] sm:$0xf]
  %v102 = vld [vmem:[%s1 + $0x4] sm:$0xf]
  %v103 = vld [vmem:[%s1 + $0x8] sm:$0xf]
  %v104 = vld [vmem:[%s1 + $0xc] sm:$0xf]
  %v105 = vld [vmem:[%s1 + $0x10] sm:$0xf]
  %v106 = vld [vmem:[%s1 + $0x14] sm:$0xf]
  %v107 = vld [vmem:[%s1 + $0x18] sm:$0xf]
  %v108 = vld [vmem:[%s1 + $0x1c] sm:$0xf]
  %v109 = vld [vmem:[%s1 + $0x20] sm:$0xf]
  %v110 = vld [vmem:[%s1 + $0x24] sm:$0xf]
  %v111 = vld [vmem:[%s1 + $0x28] sm:$0xf]
  %v112 = vld [vmem:[%s1 + $0x2c] sm:$0xf]
  %v113 = vld [vmem:[%s1 + $0x30] sm:$0xf]
  %v114 = vld [vmem:[%s1 + $0x34] sm:$0xf]
  %v115 = vld [vmem:[%s1 + $0x38] sm:$0xf]
  %v116 = vld [vmem:[%s1 + $0x3c] sm:$0xf]
  %v117 = vld [vmem:[%s1 + $0x40] sm:$0xf]
  %v118 = vld [vmem:[%s1 + $0x44] sm:$0xf]
  %v119 = vld [vmem:[%s1 + $0x48] sm:$0xf]
  %v120 = vld [vmem:[%s1 + $0x4c] sm:$0xf]
  %v121 = vld [vmem:[%s1 + $0x50] sm:$0xf]
  %v122 = vld [vmem:[%s1 + $0x54] sm:$0xf]
  %v123 = vld [vmem:[%s1 + $0x58] sm:$0xf]
  %v124 = vld [vmem:[%s1 + $0x5c] sm:$0xf]
  %v125 = vld [vmem:[%s1 + $0x60] sm:$0xf]
  %v126 = vld [vmem:[%s1 + $0x64] sm:$0xf]
  %v127 = vld [vmem:[%s1 + $0x68] sm:$0xf]
  %v128 = vld [vmem:[%s1 + $0x6c] sm:$0xf]
  %v129 = vld [vmem:[%s1 + $0x70] sm:$0xf]
  %v130 = vld [vmem:[%s1 + $0x74] sm:$0xf]
  %v131 = vld [vmem:[%s1 + $0x78] sm:$0xf]
  %v132 = vld [vmem:[%s1 + $0x7c] sm:$0xf]
  %v133 = vld [vmem:[%s1 + $0x80] sm:$0xf]
  %v134 = vld [vmem:[%s1 + $0x84] sm:$0xf]
  %v135 = vld [vmem:[%s1 + $0x88] sm:$0xf]
  %v136 = vld [vmem:[%s1 + $0x8c] sm:$0xf]
  %v137 = vld [vmem:[%s2] sm:$0x1]
  %v139 = vlaneseq
  %v140 = vshrl.u32 %v139, 7
  %v141 = vsub.s32 0, %v140
  %v142 = vrot.slane %v137, %v141
  %v230 = vunpack.c.l.b16 %v15
  %v231 = vunpack.c.h.b16 %v15
  %v232 = vunpack.c.l.b16 %v16
  %v233 = vunpack.c.l.b16 %v17
  %v234 = vunpack.c.h.b16 %v17
  %v235 = vunpack.c.l.b16 %v18
  %v236 = vunpack.c.l.b16 %v19
  %v237 = vunpack.c.h.b16 %v19
  %v238 = vunpack.c.l.b16 %v20
  %v239 = vunpack.c.l.b16 %v21
  %v240 = vunpack.c.h.b16 %v21
  %v241 = vunpack.c.l.b16 %v22
  %v242 = vunpack.c.l.b16 %v23
  %v243 = vunpack.c.h.b16 %v23
  %v244 = vunpack.c.l.b16 %v24
  %v245 = vunpack.c.l.b16 %v25
  %v246 = vunpack.c.h.b16 %v25
  %v247 = vunpack.c.l.b16 %v26
  %v248 = vunpack.c.l.b16 %v27
  %v249 = vunpack.c.h.b16 %v27
  %v250 = vunpack.c.l.b16 %v28
  %v251 = vunpack.c.l.b16 %v29
  %v252 = vunpack.c.h.b16 %v29
  %v253 = vunpack.c.l.b16 %v30
  %v254 = vunpack.c.l.b16 %v31
  %v255 = vunpack.c.h.b16 %v31
  %v256 = vunpack.c.l.b16 %v32
  %v257 = vunpack.c.l.b16 %v33
  %v258 = vunpack.c.h.b16 %v33
  %v259 = vunpack.c.l.b16 %v34
  %v260 = vunpack.c.l.b16 %v35
  %v261 = vunpack.c.h.b16 %v35
  %v262 = vunpack.c.l.b16 %v36
  %v263 = vunpack.c.l.b16 %v37
  %v264 = vunpack.c.h.b16 %v37
  %v265 = vunpack.c.l.b16 %v38
  %v266 = vunpack.c.l.b16 %v39
  %v267 = vunpack.c.h.b16 %v39
  %v268 = vunpack.c.l.b16 %v40
  %v269 = vunpack.c.l.b16 %v41
  %v270 = vunpack.c.h.b16 %v41
  %v271 = vunpack.c.l.b16 %v42
  %v272 = vunpack.c.l.b16 %v43
  %v273 = vunpack.c.h.b16 %v43
  %v274 = vunpack.c.l.b16 %v44
  %v275 = vunpack.c.l.b16 %v45
  %v276 = vunpack.c.h.b16 %v45
  %v277 = vunpack.c.l.b16 %v46
  %v278 = vunpack.c.l.b16 %v47
  %v279 = vunpack.c.h.b16 %v47
  %v280 = vunpack.c.l.b16 %v48
  %v281 = vunpack.c.l.b16 %v49
  %v282 = vunpack.c.h.b16 %v49
  %v283 = vunpack.c.l.b16 %v50
  %v284 = vunpack.c.l.b16 %v51
  %v285 = vunpack.c.h.b16 %v51
  %v286 = vunpack.c.l.b16 %v52
  %v287 = vunpack.c.l.b16 %v53
  %v288 = vunpack.c.h.b16 %v53
  %v289 = vunpack.c.l.b16 %v54
  %v290 = vunpack.c.l.b16 %v55
  %v291 = vunpack.c.h.b16 %v55
  %v292 = vunpack.c.l.b16 %v56
  %v293 = vunpack.c.l.b16 %v57
  %v294 = vunpack.c.h.b16 %v57
  %v295 = vunpack.c.l.b16 %v58
  %v296 = vunpack.c.l.b16 %v59
  %v297 = vunpack.c.h.b16 %v59
  %v298 = vunpack.c.l.b16 %v60
  %v299 = vunpack.c.l.b16 %v61
  %v300 = vunpack.c.h.b16 %v61
  %v301 = vunpack.c.l.b16 %v62
  %v302 = vunpack.c.l.b16 %v63
  %v303 = vunpack.c.h.b16 %v63
  %v304 = vunpack.c.l.b16 %v64
  %v305 = vunpack.c.l.b16 %v65
  %v306 = vunpack.c.h.b16 %v65
  %v307 = vunpack.c.l.b16 %v66
  %v308 = vunpack.c.l.b16 %v67
  %v309 = vunpack.c.h.b16 %v67
  %v310 = vunpack.c.l.b16 %v68
  %v311 = vunpack.c.l.b16 %v69
  %v312 = vunpack.c.h.b16 %v69
  %v313 = vunpack.c.l.b16 %v70
  %v314 = vunpack.c.l.b16 %v71
  %v315 = vunpack.c.h.b16 %v71
  %v316 = vunpack.c.l.b16 %v72
  %v317 = vunpack.c.l.b16 %v73
  %v318 = vunpack.c.h.b16 %v73
  %v319 = vunpack.c.l.b16 %v74
  %v320 = vunpack.c.l.b16 %v75
  %v321 = vunpack.c.h.b16 %v75
  %v322 = vunpack.c.l.b16 %v76
  %v323 = vunpack.c.l.b16 %v77
  %v324 = vunpack.c.h.b16 %v77
  %v325 = vunpack.c.l.b16 %v78
  %v326 = vunpack.c.l.b16 %v79
  %v327 = vunpack.c.h.b16 %v79
  %v328 = vunpack.c.l.b16 %v80
  %v329 = vunpack.c.l.b16 %v81
  %v330 = vunpack.c.h.b16 %v81
  %v331 = vunpack.c.l.b16 %v82
  %v332 = vunpack.c.l.b16 %v83
  %v333 = vunpack.c.h.b16 %v83
  %v334 = vunpack.c.l.b16 %v84
  %v335 = vunpack.c.l.b16 %v85
  %v336 = vunpack.c.h.b16 %v85
  %v337 = vunpack.c.l.b16 %v86
  %v338 = vunpack.c.l.b16 %v87
  %v339 = vunpack.c.h.b16 %v87
  %v340 = vunpack.c.l.b16 %v88
  %v341 = vunpack.c.l.b16 %v89
  %v342 = vunpack.c.h.b16 %v89
  %v343 = vunpack.c.l.b16 %v90
  %v344 = vunpack.c.l.b16 %v91
  %v345 = vunpack.c.h.b16 %v91
  %v346 = vunpack.c.l.b16 %v92
  %v347 = vunpack.c.l.b16 %v93
  %v348 = vunpack.c.h.b16 %v93
  %v349 = vunpack.c.l.b16 %v94
  %v350 = vunpack.c.l.b16 %v95
  %v351 = vunpack.c.h.b16 %v95
  %v352 = vunpack.c.l.b16 %v96
  %v353 = vunpack.c.l.b16 %v97
  %v354 = vunpack.c.h.b16 %v97
  %v355 = vunpack.c.l.b16 %v98
  %v356 = vunpack.c.l.b16 %v99
  %v357 = vunpack.c.h.b16 %v99
  %v358 = vunpack.c.l.b16 %v100
  %v359 = vpack.c.b16 %v233, %v230
  %v360 = vpack.c.b16 %v234, %v231
  %v361 = vpack.c.b16 %v235, %v232
  %v362 = vpack.c.b16 %v239, %v236
  %v363 = vpack.c.b16 %v240, %v237
  %v364 = vpack.c.b16 %v241, %v238
  %v365 = vpack.c.b16 %v245, %v242
  %v366 = vpack.c.b16 %v246, %v243
  %v367 = vpack.c.b16 %v247, %v244
  %v368 = vpack.c.b16 %v251, %v248
  %v369 = vpack.c.b16 %v252, %v249
  %v370 = vpack.c.b16 %v253, %v250
  %v371 = vpack.c.b16 %v257, %v254
  %v372 = vpack.c.b16 %v258, %v255
  %v373 = vpack.c.b16 %v259, %v256
  %v374 = vpack.c.b16 %v263, %v260
  %v375 = vpack.c.b16 %v264, %v261
  %v376 = vpack.c.b16 %v265, %v262
  %v377 = vpack.c.b16 %v269, %v266
  %v378 = vpack.c.b16 %v270, %v267
  %v379 = vpack.c.b16 %v271, %v268
  %v380 = vpack.c.b16 %v275, %v272
  %v381 = vpack.c.b16 %v276, %v273
  %v382 = vpack.c.b16 %v277, %v274
  %v383 = vpack.c.b16 %v281, %v278
  %v384 = vpack.c.b16 %v282, %v279
  %v385 = vpack.c.b16 %v283, %v280
  %v386 = vpack.c.b16 %v287, %v284
  %v387 = vpack.c.b16 %v288, %v285
  %v388 = vpack.c.b16 %v289, %v286
  %v389 = vpack.c.b16 %v293, %v290
  %v390 = vpack.c.b16 %v294, %v291
  %v391 = vpack.c.b16 %v295, %v292
  %v392 = vpack.c.b16 %v299, %v296
  %v393 = vpack.c.b16 %v300, %v297
  %v394 = vpack.c.b16 %v301, %v298
  %v395 = vpack.c.b16 %v305, %v302
  %v396 = vpack.c.b16 %v306, %v303
  %v397 = vpack.c.b16 %v307, %v304
  %v398 = vpack.c.b16 %v311, %v308
  %v399 = vpack.c.b16 %v312, %v309
  %v400 = vpack.c.b16 %v313, %v310
  %v401 = vpack.c.b16 %v317, %v314
  %v402 = vpack.c.b16 %v318, %v315
  %v403 = vpack.c.b16 %v319, %v316
  %v404 = vpack.c.b16 %v323, %v320
  %v405 = vpack.c.b16 %v324, %v321
  %v406 = vpack.c.b16 %v325, %v322
  %v407 = vpack.c.b16 %v329, %v326
  %v408 = vpack.c.b16 %v330, %v327
  %v409 = vpack.c.b16 %v331, %v328
  %v410 = vpack.c.b16 %v335, %v332
  %v411 = vpack.c.b16 %v336, %v333
  %v412 = vpack.c.b16 %v337, %v334
  %v413 = vpack.c.b16 %v341, %v338
  %v414 = vpack.c.b16 %v342, %v339
  %v415 = vpack.c.b16 %v343, %v340
  %v416 = vpack.c.b16 %v347, %v344
  %v417 = vpack.c.b16 %v348, %v345
  %v418 = vpack.c.b16 %v349, %v346
  %v419 = vpack.c.b16 %v353, %v350
  %v420 = vpack.c.b16 %v354, %v351
  %v421 = vpack.c.b16 %v355, %v352
  %v422 = vpack.c.b16 %v356, %v356
  %v423 = vpack.c.b16 %v357, %v357
  %v424 = vpack.c.b16 %v358, %v358
  %v505 = vunpack.c.l.b16 %v101
  %v506 = vunpack.c.l.b16 %v102
  %v507 = vunpack.c.l.b16 %v103
  %v508 = vunpack.c.l.b16 %v104
  %v509 = vunpack.c.l.b16 %v105
  %v510 = vunpack.c.l.b16 %v106
  %v511 = vunpack.c.l.b16 %v107
  %v512 = vunpack.c.l.b16 %v108
  %v513 = vunpack.c.l.b16 %v109
  %v514 = vunpack.c.l.b16 %v110
  %v515 = vunpack.c.l.b16 %v111
  %v516 = vunpack.c.l.b16 %v112
  %v517 = vunpack.c.l.b16 %v113
  %v518 = vunpack.c.l.b16 %v114
  %v519 = vunpack.c.l.b16 %v115
  %v520 = vunpack.c.l.b16 %v116
  %v521 = vunpack.c.l.b16 %v117
  %v522 = vunpack.c.l.b16 %v118
  %v523 = vunpack.c.l.b16 %v119
  %v524 = vunpack.c.l.b16 %v120
  %v525 = vunpack.c.l.b16 %v121
  %v526 = vunpack.c.l.b16 %v122
  %v527 = vunpack.c.l.b16 %v123
  %v528 = vunpack.c.l.b16 %v124
  %v529 = vunpack.c.l.b16 %v125
  %v530 = vunpack.c.l.b16 %v126
  %v531 = vunpack.c.l.b16 %v127
  %v532 = vunpack.c.l.b16 %v128
  %v533 = vunpack.c.l.b16 %v129
  %v534 = vunpack.c.l.b16 %v130
  %v535 = vunpack.c.l.b16 %v131
  %v536 = vunpack.c.l.b16 %v132
  %v537 = vunpack.c.l.b16 %v133
  %v538 = vunpack.c.l.b16 %v134
  %v539 = vunpack.c.l.b16 %v135
  %v540 = vunpack.c.l.b16 %v136
  %v541 = vpack.c.b16 %v506, %v505
  %v542 = vpack.c.b16 %v508, %v507
  %v543 = vpack.c.b16 %v510, %v509
  %v544 = vpack.c.b16 %v512, %v511
  %v545 = vpack.c.b16 %v514, %v513
  %v546 = vpack.c.b16 %v516, %v515
  %v547 = vpack.c.b16 %v518, %v517
  %v548 = vpack.c.b16 %v520, %v519
  %v549 = vpack.c.b16 %v522, %v521
  %v550 = vpack.c.b16 %v524, %v523
  %v551 = vpack.c.b16 %v526, %v525
  %v552 = vpack.c.b16 %v528, %v527
  %v553 = vpack.c.b16 %v530, %v529
  %v554 = vpack.c.b16 %v532, %v531
  %v555 = vpack.c.b16 %v534, %v533
  %v556 = vpack.c.b16 %v536, %v535
  %v557 = vpack.c.b16 %v538, %v537
  %v558 = vpack.c.b16 %v540, %v539
  %vm577 = vcmask 261120
  %v579 = vsel %vm577, %v361, 0
  %v582 = vsel %vm577, %v364, 0
  %v585 = vsel %vm577, %v367, 0
  %v588 = vsel %vm577, %v370, 0
  %v591 = vsel %vm577, %v373, 0
  %v594 = vsel %vm577, %v376, 0
  %v597 = vsel %vm577, %v379, 0
  %v600 = vsel %vm577, %v382, 0
  %v603 = vsel %vm577, %v385, 0
  %v606 = vsel %vm577, %v388, 0
  %v609 = vsel %vm577, %v391, 0
  %v612 = vsel %vm577, %v394, 0
  %v615 = vsel %vm577, %v397, 0
  %v618 = vsel %vm577, %v400, 0
  %v621 = vsel %vm577, %v403, 0
  %v624 = vsel %vm577, %v406, 0
  %v627 = vsel %vm577, %v409, 0
  %v630 = vsel %vm577, %v412, 0
  %v633 = vsel %vm577, %v415, 0
  %v636 = vsel %vm577, %v418, 0
  %v639 = vsel %vm577, %v421, 0
  %v642 = vsel %vm577, %v424, 0
  %644 = vmatprep.subr.bf16.mxu0 0
  %645 = vmatpush1.bf16.msra.mxu0 %v541
  %646 = vmatprep.subr.bf16.mxu0 0
  %647 = vmatpush1.bf16.msra.mxu0 %v542
  %648 = vmatprep.subr.bf16.mxu0 0
  %649 = vmatpush1.bf16.msra.mxu0 %v543
  %650 = vmatprep.subr.bf16.mxu0 0
  %651 = vmatpush1.bf16.msra.mxu0 %v544
  %652 = vmatprep.subr.bf16.mxu0 0
  %653 = vmatpush1.bf16.msra.mxu0 %v545
  %654 = vmatprep.subr.bf16.mxu0 0
  %655 = vmatpush1.bf16.msra.mxu0 %v546
  %656 = vmatprep.subr.bf16.mxu0 0
  %657 = vmatpush1.bf16.msra.mxu0 %v547
  %658 = vmatprep.subr.bf16.mxu0 0
  %659 = vmatpush1.bf16.msra.mxu0 %v548
  %660 = vmatprep.subr.bf16.mxu0 0
  %661 = vmatpush1.bf16.msra.mxu0 %v549
  %662 = vmatprep.subr.bf16.mxu0 0
  %663 = vmatpush1.bf16.msra.mxu0 %v550
  %664 = vmatprep.subr.bf16.mxu0 0
  %665 = vmatpush1.bf16.msra.mxu0 %v551
  %666 = vmatprep.subr.bf16.mxu0 0
  %667 = vmatpush1.bf16.msra.mxu0 %v552
  %668 = vmatprep.subr.bf16.mxu0 0
  %669 = vmatpush1.bf16.msra.mxu0 %v553
  %670 = vmatprep.subr.bf16.mxu0 0
  %671 = vmatpush1.bf16.msra.mxu0 %v554
  %672 = vmatprep.subr.bf16.mxu0 0
  %673 = vmatpush1.bf16.msra.mxu0 %v555
  %674 = vmatprep.subr.bf16.mxu0 0
  %675 = vmatpush1.bf16.msra.mxu0 %v556
  %676 = vmatprep.mubr.bf16.mxu0 %v360
  %677 = vmatmul.mubr.bf16.gmra.mrb[0].mxu0 %v359
  %v678 = vpop.f32.mrb[0].mxu0
  %v679 = vadd.f32 %v142, %v678
  %v680 = vpop.f32.mrb[0].mxu0
  %v681 = vpop.f32.mrb[0].mxu0
  %v682 = vadd.f32 %v142, %v681
  %v683 = vpop.f32.mrb[0].mxu0
  %684 = vmatprep.mubr.bf16.mxu0 %v363
  %685 = vmatmul.mubr.bf16.gmra.mrb[0].mxu0 %v362
  %v686 = vpop.f32.mrb[0].mxu0
  %v687 = vadd.f32 %v142, %v686
  %v688 = vpop.f32.mrb[0].mxu0
  %v689 = vpop.f32.mrb[0].mxu0
  %v690 = vadd.f32 %v142, %v689
  %v691 = vpop.f32.mrb[0].mxu0
  %692 = vmatprep.mubr.bf16.mxu0 %v366
  %693 = vmatmul.mubr.bf16.gmra.mrb[0].mxu0 %v365
  %v694 = vpop.f32.mrb[0].mxu0
  %v695 = vadd.f32 %v142, %v694
  %v696 = vpop.f32.mrb[0].mxu0
  %v697 = vpop.f32.mrb[0].mxu0
  %v698 = vadd.f32 %v142, %v697
  %v699 = vpop.f32.mrb[0].mxu0
  %700 = vmatprep.mubr.bf16.mxu0 %v369
  %701 = vmatmul.mubr.bf16.gmra.mrb[0].mxu0 %v368
  %v702 = vpop.f32.mrb[0].mxu0
  %v703 = vadd.f32 %v142, %v702
  %v704 = vpop.f32.mrb[0].mxu0
  %v705 = vpop.f32.mrb[0].mxu0
  %v706 = vadd.f32 %v142, %v705
  %v707 = vpop.f32.mrb[0].mxu0
  %708 = vmatprep.mubr.bf16.mxu0 %v372
  %709 = vmatmul.mubr.bf16.gmra.mrb[0].mxu0 %v371
  %v710 = vpop.f32.mrb[0].mxu0
  %v711 = vadd.f32 %v142, %v710
  %v712 = vpop.f32.mrb[0].mxu0
  %v713 = vpop.f32.mrb[0].mxu0
  %v714 = vadd.f32 %v142, %v713
  %v715 = vpop.f32.mrb[0].mxu0
  %716 = vmatprep.mubr.bf16.mxu0 %v375
  %717 = vmatmul.mubr.bf16.gmra.mrb[0].mxu0 %v374
  %v718 = vpop.f32.mrb[0].mxu0
  %v719 = vadd.f32 %v142, %v718
  %v720 = vpop.f32.mrb[0].mxu0
  %v721 = vpop.f32.mrb[0].mxu0
  %v722 = vadd.f32 %v142, %v721
  %v723 = vpop.f32.mrb[0].mxu0
  %724 = vmatprep.mubr.bf16.mxu0 %v378
  %725 = vmatmul.mubr.bf16.gmra.mrb[0].mxu0 %v377
  %v726 = vpop.f32.mrb[0].mxu0
  %v727 = vadd.f32 %v142, %v726
  %v728 = vpop.f32.mrb[0].mxu0
  %v729 = vpop.f32.mrb[0].mxu0
  %v730 = vadd.f32 %v142, %v729
  %v731 = vpop.f32.mrb[0].mxu0
  %732 = vmatprep.mubr.bf16.mxu0 %v381
  %733 = vmatmul.mubr.bf16.gmra.mrb[0].mxu0 %v380
  %v734 = vpop.f32.mrb[0].mxu0
  %v735 = vadd.f32 %v142, %v734
  %v736 = vpop.f32.mrb[0].mxu0
  %v737 = vpop.f32.mrb[0].mxu0
  %v738 = vadd.f32 %v142, %v737
  %v739 = vpop.f32.mrb[0].mxu0
  %740 = vmatprep.mubr.bf16.mxu0 %v384
  %741 = vmatmul.mubr.bf16.gmra.mrb[0].mxu0 %v383
  %v742 = vpop.f32.mrb[0].mxu0
  %v743 = vadd.f32 %v142, %v742
  %v744 = vpop.f32.mrb[0].mxu0
  %v745 = vpop.f32.mrb[0].mxu0
  %v746 = vadd.f32 %v142, %v745
  %v747 = vpop.f32.mrb[0].mxu0
  %748 = vmatprep.mubr.bf16.mxu0 %v387
  %749 = vmatmul.mubr.bf16.gmra.mrb[0].mxu0 %v386
  %v750 = vpop.f32.mrb[0].mxu0
  %v751 = vadd.f32 %v142, %v750
  %v752 = vpop.f32.mrb[0].mxu0
  %v753 = vpop.f32.mrb[0].mxu0
  %v754 = vadd.f32 %v142, %v753
  %v755 = vpop.f32.mrb[0].mxu0
  %756 = vmatprep.mubr.bf16.mxu0 %v390
  %757 = vmatmul.mubr.bf16.gmra.mrb[0].mxu0 %v389
  %v758 = vpop.f32.mrb[0].mxu0
  %v759 = vadd.f32 %v142, %v758
  %v760 = vpop.f32.mrb[0].mxu0
  %v761 = vpop.f32.mrb[0].mxu0
  %v762 = vadd.f32 %v142, %v761
  %v763 = vpop.f32.mrb[0].mxu0
  %764 = vmatprep.mubr.bf16.mxu0 %v393
  %765 = vmatmul.mubr.bf16.gmra.mrb[0].mxu0 %v392
  %v766 = vpop.f32.mrb[0].mxu0
  %v767 = vadd.f32 %v142, %v766
  %v768 = vpop.f32.mrb[0].mxu0
  %v769 = vpop.f32.mrb[0].mxu0
  %v770 = vadd.f32 %v142, %v769
  %v771 = vpop.f32.mrb[0].mxu0
  %772 = vmatprep.mubr.bf16.mxu0 %v396
  %773 = vmatmul.mubr.bf16.gmra.mrb[0].mxu0 %v395
  %v774 = vpop.f32.mrb[0].mxu0
  %v775 = vadd.f32 %v142, %v774
  %v776 = vpop.f32.mrb[0].mxu0
  %v777 = vpop.f32.mrb[0].mxu0
  %v778 = vadd.f32 %v142, %v777
  %v779 = vpop.f32.mrb[0].mxu0
  %780 = vmatprep.mubr.bf16.mxu0 %v399
  %781 = vmatmul.mubr.bf16.gmra.mrb[0].mxu0 %v398
  %v782 = vpop.f32.mrb[0].mxu0
  %v783 = vadd.f32 %v142, %v782
  %v784 = vpop.f32.mrb[0].mxu0
  %v785 = vpop.f32.mrb[0].mxu0
  %v786 = vadd.f32 %v142, %v785
  %v787 = vpop.f32.mrb[0].mxu0
  %788 = vmatprep.mubr.bf16.mxu0 %v402
  %789 = vmatmul.mubr.bf16.gmra.mrb[0].mxu0 %v401
  %v790 = vpop.f32.mrb[0].mxu0
  %v791 = vadd.f32 %v142, %v790
  %v792 = vpop.f32.mrb[0].mxu0
  %v793 = vpop.f32.mrb[0].mxu0
  %v794 = vadd.f32 %v142, %v793
  %v795 = vpop.f32.mrb[0].mxu0
  %796 = vmatprep.mubr.bf16.mxu0 %v405
  %797 = vmatmul.mubr.bf16.gmra.mrb[0].mxu0 %v404
  %v798 = vpop.f32.mrb[0].mxu0
  %v799 = vadd.f32 %v142, %v798
  %v800 = vpop.f32.mrb[0].mxu0
  %v801 = vpop.f32.mrb[0].mxu0
  %v802 = vadd.f32 %v142, %v801
  %v803 = vpop.f32.mrb[0].mxu0
  %804 = vmatprep.mubr.bf16.mxu0 %v408
  %805 = vmatmul.mubr.bf16.gmra.mrb[0].mxu0 %v407
  %v806 = vpop.f32.mrb[0].mxu0
  %v807 = vadd.f32 %v142, %v806
  %v808 = vpop.f32.mrb[0].mxu0
  %v809 = vpop.f32.mrb[0].mxu0
  %v810 = vadd.f32 %v142, %v809
  %v811 = vpop.f32.mrb[0].mxu0
  %812 = vmatprep.mubr.bf16.mxu0 %v411
  %813 = vmatmul.mubr.bf16.gmra.mrb[0].mxu0 %v410
  %v814 = vpop.f32.mrb[0].mxu0
  %v815 = vadd.f32 %v142, %v814
  %v816 = vpop.f32.mrb[0].mxu0
  %v817 = vpop.f32.mrb[0].mxu0
  %v818 = vadd.f32 %v142, %v817
  %v819 = vpop.f32.mrb[0].mxu0
  %820 = vmatprep.mubr.bf16.mxu0 %v414
  %821 = vmatmul.mubr.bf16.gmra.mrb[0].mxu0 %v413
  %v822 = vpop.f32.mrb[0].mxu0
  %v823 = vadd.f32 %v142, %v822
  %v824 = vpop.f32.mrb[0].mxu0
  %v825 = vpop.f32.mrb[0].mxu0
  %v826 = vadd.f32 %v142, %v825
  %v827 = vpop.f32.mrb[0].mxu0
  %828 = vmatprep.mubr.bf16.mxu0 %v417
  %829 = vmatmul.mubr.bf16.gmra.mrb[0].mxu0 %v416
  %v830 = vpop.f32.mrb[0].mxu0
  %v831 = vadd.f32 %v142, %v830
  %v832 = vpop.f32.mrb[0].mxu0
  %v833 = vpop.f32.mrb[0].mxu0
  %v834 = vadd.f32 %v142, %v833
  %v835 = vpop.f32.mrb[0].mxu0
  %836 = vmatprep.mubr.bf16.mxu0 %v420
  %837 = vmatmul.mubr.bf16.gmra.mrb[0].mxu0 %v419
  %v838 = vpop.f32.mrb[0].mxu0
  %v839 = vadd.f32 %v142, %v838
  %v840 = vpop.f32.mrb[0].mxu0
  %v841 = vpop.f32.mrb[0].mxu0
  %v842 = vadd.f32 %v142, %v841
  %v843 = vpop.f32.mrb[0].mxu0
  %844 = vmatprep.mubr.bf16.mxu0 %v423
  %845 = vmatmul.mubr.bf16.gmra.mrb[0].mxu0 %v422
  %v846 = vpop.f32.mrb[0].mxu0
  %v847 = vadd.f32 %v142, %v846
  %v848 = vpop.f32.mrb[0].mxu0
  %v849 = vpop.f32.mrb[0].mxu0
  %v850 = vpop.f32.mrb[0].mxu0
  %851 = vdwg.mxu0
  %852 = vmatprep.subr.bf16.mxu0 0
  %853 = vmatpush1.bf16.msra.mxu0 %v557
  %854 = vmatprep.subr.bf16.mxu0 0
  %855 = vmatpush1.bf16.msra.mxu0 %v558
  %856 = vmatprep.subr.bf16.mxu0 0
  %857 = vmatpush1.bf16.msra.mxu0 0
  %858 = vmatprep.subr.bf16.mxu0 0
  %859 = vmatpush1.bf16.msra.mxu0 0
  %860 = vmatprep.subr.bf16.mxu0 0
  %861 = vmatpush1.bf16.msra.mxu0 0
  %862 = vmatprep.subr.bf16.mxu0 0
  %863 = vmatpush1.bf16.msra.mxu0 0
  %864 = vmatprep.subr.bf16.mxu0 0
  %865 = vmatpush1.bf16.msra.mxu0 0
  %866 = vmatprep.subr.bf16.mxu0 0
  %867 = vmatpush1.bf16.msra.mxu0 0
  %868 = vmatprep.subr.bf16.mxu0 0
  %869 = vmatpush1.bf16.msra.mxu0 0
  %870 = vmatprep.subr.bf16.mxu0 0
  %871 = vmatpush1.bf16.msra.mxu0 0
  %872 = vmatprep.subr.bf16.mxu0 0
  %873 = vmatpush1.bf16.msra.mxu0 0
  %874 = vmatprep.subr.bf16.mxu0 0
  %875 = vmatpush1.bf16.msra.mxu0 0
  %876 = vmatprep.subr.bf16.mxu0 0
  %877 = vmatpush1.bf16.msra.mxu0 0
  %878 = vmatprep.subr.bf16.mxu0 0
  %879 = vmatpush1.bf16.msra.mxu0 0
  %880 = vmatprep.subr.bf16.mxu0 0
  %881 = vmatpush1.bf16.msra.mxu0 0
  %882 = vmatprep.subr.bf16.mxu0 0
  %883 = vmatpush1.bf16.msra.mxu0 0
  %884 = vmatprep.mubr.bf16.mxu0 0
  %885 = vmatmul.mubr.bf16.gmra.mrb[0].mxu0 %v579
  %v886 = vpop.f32.mrb[0].mxu0
  %v887 = vadd.f32 %v679, %v886
  %v888 = vpop.f32.mrb[0].mxu0
  %v889 = vpop.f32.mrb[0].mxu0
  %v890 = vadd.f32 %v682, %v889
  %v891 = vpop.f32.mrb[0].mxu0
  %892 = vmatprep.mubr.bf16.mxu0 0
  %893 = vmatmul.mubr.bf16.gmra.mrb[0].mxu0 %v582
  %v894 = vpop.f32.mrb[0].mxu0
  %v895 = vadd.f32 %v687, %v894
  %v896 = vpop.f32.mrb[0].mxu0
  %v897 = vpop.f32.mrb[0].mxu0
  %v898 = vadd.f32 %v690, %v897
  %v899 = vpop.f32.mrb[0].mxu0
  %900 = vmatprep.mubr.bf16.mxu0 0
  %901 = vmatmul.mubr.bf16.gmra.mrb[0].mxu0 %v585
  %v902 = vpop.f32.mrb[0].mxu0
  %v903 = vadd.f32 %v695, %v902
  %v904 = vpop.f32.mrb[0].mxu0
  %v905 = vpop.f32.mrb[0].mxu0
  %v906 = vadd.f32 %v698, %v905
  %v907 = vpop.f32.mrb[0].mxu0
  %908 = vmatprep.mubr.bf16.mxu0 0
  %909 = vmatmul.mubr.bf16.gmra.mrb[0].mxu0 %v588
  %v910 = vpop.f32.mrb[0].mxu0
  %v911 = vadd.f32 %v703, %v910
  %v912 = vpop.f32.mrb[0].mxu0
  %v913 = vpop.f32.mrb[0].mxu0
  %v914 = vadd.f32 %v706, %v913
  %v915 = vpop.f32.mrb[0].mxu0
  %916 = vmatprep.mubr.bf16.mxu0 0
  %917 = vmatmul.mubr.bf16.gmra.mrb[0].mxu0 %v591
  %v918 = vpop.f32.mrb[0].mxu0
  %v919 = vadd.f32 %v711, %v918
  %v920 = vpop.f32.mrb[0].mxu0
  %v921 = vpop.f32.mrb[0].mxu0
  %v922 = vadd.f32 %v714, %v921
  %v923 = vpop.f32.mrb[0].mxu0
  %924 = vmatprep.mubr.bf16.mxu0 0
  %925 = vmatmul.mubr.bf16.gmra.mrb[0].mxu0 %v594
  %v926 = vpop.f32.mrb[0].mxu0
  %v927 = vadd.f32 %v719, %v926
  %v928 = vpop.f32.mrb[0].mxu0
  %v929 = vpop.f32.mrb[0].mxu0
  %v930 = vadd.f32 %v722, %v929
  %v931 = vpop.f32.mrb[0].mxu0
  %932 = vmatprep.mubr.bf16.mxu0 0
  %933 = vmatmul.mubr.bf16.gmra.mrb[0].mxu0 %v597
  %v934 = vpop.f32.mrb[0].mxu0
  %v935 = vadd.f32 %v727, %v934
  %v936 = vpop.f32.mrb[0].mxu0
  %v937 = vpop.f32.mrb[0].mxu0
  %v938 = vadd.f32 %v730, %v937
  %v939 = vpop.f32.mrb[0].mxu0
  %940 = vmatprep.mubr.bf16.mxu0 0
  %941 = vmatmul.mubr.bf16.gmra.mrb[0].mxu0 %v600
  %v942 = vpop.f32.mrb[0].mxu0
  %v943 = vadd.f32 %v735, %v942
  %v944 = vpop.f32.mrb[0].mxu0
  %v945 = vpop.f32.mrb[0].mxu0
  %v946 = vadd.f32 %v738, %v945
  %v947 = vpop.f32.mrb[0].mxu0
  %948 = vmatprep.mubr.bf16.mxu0 0
  %949 = vmatmul.mubr.bf16.gmra.mrb[0].mxu0 %v603
  %v950 = vpop.f32.mrb[0].mxu0
  %v951 = vadd.f32 %v743, %v950
  %v952 = vpop.f32.mrb[0].mxu0
  %v953 = vpop.f32.mrb[0].mxu0
  %v954 = vadd.f32 %v746, %v953
  %v955 = vpop.f32.mrb[0].mxu0
  %956 = vmatprep.mubr.bf16.mxu0 0
  %957 = vmatmul.mubr.bf16.gmra.mrb[0].mxu0 %v606
  %v958 = vpop.f32.mrb[0].mxu0
  %v959 = vadd.f32 %v751, %v958
  %v960 = vpop.f32.mrb[0].mxu0
  %v961 = vpop.f32.mrb[0].mxu0
  %v962 = vadd.f32 %v754, %v961
  %v963 = vpop.f32.mrb[0].mxu0
  %964 = vmatprep.mubr.bf16.mxu0 0
  %965 = vmatmul.mubr.bf16.gmra.mrb[0].mxu0 %v609
  %v966 = vpop.f32.mrb[0].mxu0
  %v967 = vadd.f32 %v759, %v966
  %v968 = vpop.f32.mrb[0].mxu0
  %v969 = vpop.f32.mrb[0].mxu0
  %v970 = vadd.f32 %v762, %v969
  %v971 = vpop.f32.mrb[0].mxu0
  %972 = vmatprep.mubr.bf16.mxu0 0
  %973 = vmatmul.mubr.bf16.gmra.mrb[0].mxu0 %v612
  %v974 = vpop.f32.mrb[0].mxu0
  %v975 = vadd.f32 %v767, %v974
  %v976 = vpop.f32.mrb[0].mxu0
  %v977 = vpop.f32.mrb[0].mxu0
  %v978 = vadd.f32 %v770, %v977
  %v979 = vpop.f32.mrb[0].mxu0
  %980 = vmatprep.mubr.bf16.mxu0 0
  %981 = vmatmul.mubr.bf16.gmra.mrb[0].mxu0 %v615
  %v982 = vpop.f32.mrb[0].mxu0
  %v983 = vadd.f32 %v775, %v982
  %v984 = vpop.f32.mrb[0].mxu0
  %v985 = vpop.f32.mrb[0].mxu0
  %v986 = vadd.f32 %v778, %v985
  %v987 = vpop.f32.mrb[0].mxu0
  %988 = vmatprep.mubr.bf16.mxu0 0
  %989 = vmatmul.mubr.bf16.gmra.mrb[0].mxu0 %v618
  %v990 = vpop.f32.mrb[0].mxu0
  %v991 = vadd.f32 %v783, %v990
  %v992 = vpop.f32.mrb[0].mxu0
  %v993 = vpop.f32.mrb[0].mxu0
  %v994 = vadd.f32 %v786, %v993
  %v995 = vpop.f32.mrb[0].mxu0
  %996 = vmatprep.mubr.bf16.mxu0 0
  %997 = vmatmul.mubr.bf16.gmra.mrb[0].mxu0 %v621
  %v998 = vpop.f32.mrb[0].mxu0
  %v999 = vadd.f32 %v791, %v998
  %v1000 = vpop.f32.mrb[0].mxu0
  %v1001 = vpop.f32.mrb[0].mxu0
  %v1002 = vadd.f32 %v794, %v1001
  %v1003 = vpop.f32.mrb[0].mxu0
  %1004 = vmatprep.mubr.bf16.mxu0 0
  %1005 = vmatmul.mubr.bf16.gmra.mrb[0].mxu0 %v624
  %v1006 = vpop.f32.mrb[0].mxu0
  %v1007 = vadd.f32 %v799, %v1006
  %v1008 = vpop.f32.mrb[0].mxu0
  %v1009 = vpop.f32.mrb[0].mxu0
  %v1010 = vadd.f32 %v802, %v1009
  %v1011 = vpop.f32.mrb[0].mxu0
  %1012 = vmatprep.mubr.bf16.mxu0 0
  %1013 = vmatmul.mubr.bf16.gmra.mrb[0].mxu0 %v627
  %v1014 = vpop.f32.mrb[0].mxu0
  %v1015 = vadd.f32 %v807, %v1014
  %v1016 = vpop.f32.mrb[0].mxu0
  %v1017 = vpop.f32.mrb[0].mxu0
  %v1018 = vadd.f32 %v810, %v1017
  %v1019 = vpop.f32.mrb[0].mxu0
  %1020 = vmatprep.mubr.bf16.mxu0 0
  %1021 = vmatmul.mubr.bf16.gmra.mrb[0].mxu0 %v630
  %v1022 = vpop.f32.mrb[0].mxu0
  %v1023 = vadd.f32 %v815, %v1022
  %v1024 = vpop.f32.mrb[0].mxu0
  %v1025 = vpop.f32.mrb[0].mxu0
  %v1026 = vadd.f32 %v818, %v1025
  %v1027 = vpop.f32.mrb[0].mxu0
  %1028 = vmatprep.mubr.bf16.mxu0 0
  %1029 = vmatmul.mubr.bf16.gmra.mrb[0].mxu0 %v633
  %v1030 = vpop.f32.mrb[0].mxu0
  %v1031 = vadd.f32 %v823, %v1030
  %v1032 = vpop.f32.mrb[0].mxu0
  %v1033 = vpop.f32.mrb[0].mxu0
  %v1034 = vadd.f32 %v826, %v1033
  %v1035 = vpop.f32.mrb[0].mxu0
  %1036 = vmatprep.mubr.bf16.mxu0 0
  %1037 = vmatmul.mubr.bf16.gmra.mrb[0].mxu0 %v636
  %v1038 = vpop.f32.mrb[0].mxu0
  %v1039 = vadd.f32 %v831, %v1038
  %v1040 = vpop.f32.mrb[0].mxu0
  %v1041 = vpop.f32.mrb[0].mxu0
  %v1042 = vadd.f32 %v834, %v1041
  %v1043 = vpop.f32.mrb[0].mxu0
  %1044 = vmatprep.mubr.bf16.mxu0 0
  %1045 = vmatmul.mubr.bf16.gmra.mrb[0].mxu0 %v639
  %v1046 = vpop.f32.mrb[0].mxu0
  %v1047 = vadd.f32 %v839, %v1046
  %v1048 = vpop.f32.mrb[0].mxu0
  %v1049 = vpop.f32.mrb[0].mxu0
  %v1050 = vadd.f32 %v842, %v1049
  %v1051 = vpop.f32.mrb[0].mxu0
  %1052 = vmatprep.mubr.bf16.mxu0 0
  %1053 = vmatmul.mubr.bf16.gmra.mrb[0].mxu0 %v642
  %v1054 = vpop.f32.mrb[0].mxu0
  %v1055 = vadd.f32 %v847, %v1054
  %v1056 = vpop.f32.mrb[0].mxu0
  %v1057 = vpop.f32.mrb[0].mxu0
  %v1058 = vpop.f32.mrb[0].mxu0
  %1059 = vdwg.mxu0
  %v1060 = vmax.f32 %v887, 0.0
  %v1061 = vmax.f32 %v890, 0.0
  %v1062 = vmax.f32 %v895, 0.0
  %v1063 = vmax.f32 %v898, 0.0
  %v1064 = vmax.f32 %v903, 0.0
  %v1065 = vmax.f32 %v906, 0.0
  %v1066 = vmax.f32 %v911, 0.0
  %v1067 = vmax.f32 %v914, 0.0
  %v1068 = vmax.f32 %v919, 0.0
  %v1069 = vmax.f32 %v922, 0.0
  %v1070 = vmax.f32 %v927, 0.0
  %v1071 = vmax.f32 %v930, 0.0
  %v1072 = vmax.f32 %v935, 0.0
  %v1073 = vmax.f32 %v938, 0.0
  %v1074 = vmax.f32 %v943, 0.0
  %v1075 = vmax.f32 %v946, 0.0
  %v1076 = vmax.f32 %v951, 0.0
  %v1077 = vmax.f32 %v954, 0.0
  %v1078 = vmax.f32 %v959, 0.0
  %v1079 = vmax.f32 %v962, 0.0
  %v1080 = vmax.f32 %v967, 0.0
  %v1081 = vmax.f32 %v970, 0.0
  %v1082 = vmax.f32 %v975, 0.0
  %v1083 = vmax.f32 %v978, 0.0
  %v1084 = vmax.f32 %v983, 0.0
  %v1085 = vmax.f32 %v986, 0.0
  %v1086 = vmax.f32 %v991, 0.0
  %v1087 = vmax.f32 %v994, 0.0
  %v1088 = vmax.f32 %v999, 0.0
  %v1089 = vmax.f32 %v1002, 0.0
  %v1090 = vmax.f32 %v1007, 0.0
  %v1091 = vmax.f32 %v1010, 0.0
  %v1092 = vmax.f32 %v1015, 0.0
  %v1093 = vmax.f32 %v1018, 0.0
  %v1094 = vmax.f32 %v1023, 0.0
  %v1095 = vmax.f32 %v1026, 0.0
  %v1096 = vmax.f32 %v1031, 0.0
  %v1097 = vmax.f32 %v1034, 0.0
  %v1098 = vmax.f32 %v1039, 0.0
  %v1099 = vmax.f32 %v1042, 0.0
  %v1100 = vmax.f32 %v1047, 0.0
  %v1101 = vmax.f32 %v1050, 0.0
  %v1102 = vmax.f32 %v1055, 0.0
  %vm1103 = vcmask 523264
  %1104 = vst.msk [vmem:[%s3] sm:$0xff] %vm1103, %v1060
  %1105 = vst.msk [vmem:[%s3 + $0x8] sm:$0xff] %vm1103, %v1061
  %1106 = vst.msk [vmem:[%s3 + $0x10] sm:$0xff] %vm1103, %v1062
  %1107 = vst.msk [vmem:[%s3 + $0x18] sm:$0xff] %vm1103, %v1063
  %1108 = vst.msk [vmem:[%s3 + $0x20] sm:$0xff] %vm1103, %v1064
  %1109 = vst.msk [vmem:[%s3 + $0x28] sm:$0xff] %vm1103, %v1065
  %1110 = vst.msk [vmem:[%s3 + $0x30] sm:$0xff] %vm1103, %v1066
  %1111 = vst.msk [vmem:[%s3 + $0x38] sm:$0xff] %vm1103, %v1067
  %1112 = vst.msk [vmem:[%s3 + $0x40] sm:$0xff] %vm1103, %v1068
  %1113 = vst.msk [vmem:[%s3 + $0x48] sm:$0xff] %vm1103, %v1069
  %1114 = vst.msk [vmem:[%s3 + $0x50] sm:$0xff] %vm1103, %v1070
  %1115 = vst.msk [vmem:[%s3 + $0x58] sm:$0xff] %vm1103, %v1071
  %1116 = vst.msk [vmem:[%s3 + $0x60] sm:$0xff] %vm1103, %v1072
  %1117 = vst.msk [vmem:[%s3 + $0x68] sm:$0xff] %vm1103, %v1073
  %1118 = vst.msk [vmem:[%s3 + $0x70] sm:$0xff] %vm1103, %v1074
  %1119 = vst.msk [vmem:[%s3 + $0x78] sm:$0xff] %vm1103, %v1075
  %1120 = vst.msk [vmem:[%s3 + $0x80] sm:$0xff] %vm1103, %v1076
  %1121 = vst.msk [vmem:[%s3 + $0x88] sm:$0xff] %vm1103, %v1077
  %1122 = vst.msk [vmem:[%s3 + $0x90] sm:$0xff] %vm1103, %v1078
  %1123 = vst.msk [vmem:[%s3 + $0x98] sm:$0xff] %vm1103, %v1079
  %1124 = vst.msk [vmem:[%s3 + $0xa0] sm:$0xff] %vm1103, %v1080
  %1125 = vst.msk [vmem:[%s3 + $0xa8] sm:$0xff] %vm1103, %v1081
  %1126 = vst.msk [vmem:[%s3 + $0xb0] sm:$0xff] %vm1103, %v1082
  %1127 = vst.msk [vmem:[%s3 + $0xb8] sm:$0xff] %vm1103, %v1083
  %1128 = vst.msk [vmem:[%s3 + $0xc0] sm:$0xff] %vm1103, %v1084
  %1129 = vst.msk [vmem:[%s3 + $0xc8] sm:$0xff] %vm1103, %v1085
  %1130 = vst.msk [vmem:[%s3 + $0xd0] sm:$0xff] %vm1103, %v1086
  %1131 = vst.msk [vmem:[%s3 + $0xd8] sm:$0xff] %vm1103, %v1087
  %1132 = vst.msk [vmem:[%s3 + $0xe0] sm:$0xff] %vm1103, %v1088
  %1133 = vst.msk [vmem:[%s3 + $0xe8] sm:$0xff] %vm1103, %v1089
  %1134 = vst.msk [vmem:[%s3 + $0xf0] sm:$0xff] %vm1103, %v1090
  %1135 = vst.msk [vmem:[%s3 + $0xf8] sm:$0xff] %vm1103, %v1091
  %1136 = vst.msk [vmem:[%s3 + $0x100] sm:$0xff] %vm1103, %v1092
  %1137 = vst.msk [vmem:[%s3 + $0x108] sm:$0xff] %vm1103, %v1093
  %1138 = vst.msk [vmem:[%s3 + $0x110] sm:$0xff] %vm1103, %v1094
  %1139 = vst.msk [vmem:[%s3 + $0x118] sm:$0xff] %vm1103, %v1095
  %1140 = vst.msk [vmem:[%s3 + $0x120] sm:$0xff] %vm1103, %v1096
  %1141 = vst.msk [vmem:[%s3 + $0x128] sm:$0xff] %vm1103, %v1097
  %1142 = vst.msk [vmem:[%s3 + $0x130] sm:$0xff] %vm1103, %v1098
  %1143 = vst.msk [vmem:[%s3 + $0x138] sm:$0xff] %vm1103, %v1099
  %1144 = vst.msk [vmem:[%s3 + $0x140] sm:$0xff] %vm1103, %v1100
  %1145 = vst.msk [vmem:[%s3 + $0x148] sm:$0xff] %vm1103, %v1101
  %1146 = vst.msk [vmem:[%s3 + $0x150] sm:$0xff] %vm1103, %v1102
  // Predicated region
  $region14: #{stem_forward.12} parent=0 // pred_check
    _
  $region15: #{stem_forward.12} parent=0 // pred_check_branch
    %1148 = sbr.rel (0) target = $region17
  $region16: #{stem_forward.12} parent=0 // pred_region
    _
  $region17: #{stem_forward.12} parent=0 // pred_fallthru
    _
  // Predicated region
  $region18: #{stem_forward.12} parent=0 // pred_check
    _
  $region19: #{stem_forward.12} parent=0 // pred_check_branch
    %1150 = sbr.rel (0) target = $region21
  $region20: #{stem_forward.12} parent=0 // pred_region
    _
  $region21: #{stem_forward.12} parent=0 // pred_fallthru
    _

// kernel: stem_forward.13
$region0: #{stem_forward.13}
  #allocation0 [shape = 'u32[]', space=smem, size = 0x4, offset = 0x4, fixed_abs, tag = 'smem constant byte address 0x4 - core index']
  #allocation1 [shape = 'u32[144,128]{1,0:T(1,128)}', space=vmem, size = 0x12000, scoped, tag = 'internal scratch']
  %s0 = inlined_call_operand.vmem [shape: bf16[72,576], index: 0, kind: input, shape index: {}]
  %s1 = inlined_call_operand.vmem [shape: bf16[576,96], index: 1, kind: input, shape index: {}]
  %s2 = inlined_call_operand.vmem [shape: f32[1,96], index: 2, kind: input, shape index: {}]
  %s3 = inlined_call_operand.vmem [shape: f32[72,96], index: 3, kind: output, shape index: {}]
  %s4 = sld [smem:[#allocation0]]
  $region22: #{stem_forward.13} parent=0
    _
  %s6 = ssub.s32 1, %s4
  %s7 = scalar_select 0, %s6, %s4
  // Predicated region
  $region2: #{stem_forward.13} parent=0 // pred_check
    _
  $region3: #{stem_forward.13} parent=0 // pred_check_branch
    %9 = sbr.rel (0) target = $region5
  $region4: #{stem_forward.13} parent=0 // pred_region
    _
  $region5: #{stem_forward.13} parent=0 // pred_fallthru
    _
  // Predicated region
  $region6: #{stem_forward.13} parent=0 // pred_check
    _
  $region7: #{stem_forward.13} parent=0 // pred_check_branch
    %11 = sbr.rel (0) target = $region9
  $region8: #{stem_forward.13} parent=0 // pred_region
    _
  $region9: #{stem_forward.13} parent=0 // pred_fallthru
    _
  // Predicated region
  $region10: #{stem_forward.13} parent=0 // pred_check
    _
  $region11: #{stem_forward.13} parent=0 // pred_check_branch
    %13 = sbr.rel (0) target = $region13
  $region12: #{stem_forward.13} parent=0 // pred_region
    _
  $region13: #{stem_forward.13} parent=0 // pred_fallthru
    _
  %v15 = vld [vmem:[%s0] sm:$0xff]
  %v16 = vld [vmem:[%s0 + $0x8] sm:$0xff]
  %v17 = vld [vmem:[%s0 + $0x10] sm:$0xf]
  %v18 = vld [vmem:[%s0 + $0x14] sm:$0xff]
  %v19 = vld [vmem:[%s0 + $0x1c] sm:$0xff]
  %v20 = vld [vmem:[%s0 + $0x24] sm:$0xf]
  %v21 = vld [vmem:[%s0 + $0x28] sm:$0xff]
  %v22 = vld [vmem:[%s0 + $0x30] sm:$0xff]
  %v23 = vld [vmem:[%s0 + $0x38] sm:$0xf]
  %v24 = vld [vmem:[%s0 + $0x3c] sm:$0xff]
  %v25 = vld [vmem:[%s0 + $0x44] sm:$0xff]
  %v26 = vld [vmem:[%s0 + $0x4c] sm:$0xf]
  %v27 = vld [vmem:[%s0 + $0x50] sm:$0xff]
  %v28 = vld [vmem:[%s0 + $0x58] sm:$0xff]
  %v29 = vld [vmem:[%s0 + $0x60] sm:$0xf]
  %v30 = vld [vmem:[%s0 + $0x64] sm:$0xff]
  %v31 = vld [vmem:[%s0 + $0x6c] sm:$0xff]
  %v32 = vld [vmem:[%s0 + $0x74] sm:$0xf]
  %v33 = vld [vmem:[%s0 + $0x78] sm:$0xff]
  %v34 = vld [vmem:[%s0 + $0x80] sm:$0xff]
  %v35 = vld [vmem:[%s0 + $0x88] sm:$0xf]
  %v36 = vld [vmem:[%s0 + $0x8c] sm:$0xff]
  %v37 = vld [vmem:[%s0 + $0x94] sm:$0xff]
  %v38 = vld [vmem:[%s0 + $0x9c] sm:$0xf]
  %v39 = vld [vmem:[%s0 + $0xa0] sm:$0xff]
  %v40 = vld [vmem:[%s0 + $0xa8] sm:$0xff]
  %v41 = vld [vmem:[%s0 + $0xb0] sm:$0xf]
  %v42 = vld [vmem:[%s1] sm:$0xf]
  %v43 = vld [vmem:[%s1 + $0x4] sm:$0xf]
  %v44 = vld [vmem:[%s1 + $0x8] sm:$0xf]
  %v45 = vld [vmem:[%s1 + $0xc] sm:$0xf]
  %v46 = vld [vmem:[%s1 + $0x10] sm:$0xf]
  %v47 = vld [vmem:[%s1 + $0x14] sm:$0xf]
  %v48 = vld [vmem:[%s1 + $0x18] sm:$0xf]
  %v49 = vld [vmem:[%s1 + $0x1c] sm:$0xf]
  %v50 = vld [vmem:[%s1 + $0x20] sm:$0xf]
  %v51 = vld [vmem:[%s1 + $0x24] sm:$0xf]
  %v52 = vld [vmem:[%s1 + $0x28] sm:$0xf]
  %v53 = vld [vmem:[%s1 + $0x2c] sm:$0xf]
  %v54 = vld [vmem:[%s1 + $0x30] sm:$0xf]
  %v55 = vld [vmem:[%s1 + $0x34] sm:$0xf]
  %v56 = vld [vmem:[%s1 + $0x38] sm:$0xf]
  %v57 = vld [vmem:[%s1 + $0x3c] sm:$0xf]
  %v58 = vld [vmem:[%s1 + $0x40] sm:$0xf]
  %v59 = vld [vmem:[%s1 + $0x44] sm:$0xf]
  %v60 = vld [vmem:[%s1 + $0x48] sm:$0xf]
  %v61 = vld [vmem:[%s1 + $0x4c] sm:$0xf]
  %v62 = vld [vmem:[%s1 + $0x50] sm:$0xf]
  %v63 = vld [vmem:[%s1 + $0x54] sm:$0xf]
  %v64 = vld [vmem:[%s1 + $0x58] sm:$0xf]
  %v65 = vld [vmem:[%s1 + $0x5c] sm:$0xf]
  %v66 = vld [vmem:[%s1 + $0x60] sm:$0xf]
  %v67 = vld [vmem:[%s1 + $0x64] sm:$0xf]
  %v68 = vld [vmem:[%s1 + $0x68] sm:$0xf]
  %v69 = vld [vmem:[%s1 + $0x6c] sm:$0xf]
  %v70 = vld [vmem:[%s1 + $0x70] sm:$0xf]
  %v71 = vld [vmem:[%s1 + $0x74] sm:$0xf]
  %v72 = vld [vmem:[%s1 + $0x78] sm:$0xf]
  %v73 = vld [vmem:[%s1 + $0x7c] sm:$0xf]
  %v74 = vld [vmem:[%s1 + $0x80] sm:$0xf]
  %v75 = vld [vmem:[%s1 + $0x84] sm:$0xf]
  %v76 = vld [vmem:[%s1 + $0x88] sm:$0xf]
  %v77 = vld [vmem:[%s1 + $0x8c] sm:$0xf]
  %v78 = vld [vmem:[%s1 + $0x90] sm:$0xf]
  %v79 = vld [vmem:[%s1 + $0x94] sm:$0xf]
  %v80 = vld [vmem:[%s1 + $0x98] sm:$0xf]
  %v81 = vld [vmem:[%s1 + $0x9c] sm:$0xf]
  %v82 = vld [vmem:[%s1 + $0xa0] sm:$0xf]
  %v83 = vld [vmem:[%s1 + $0xa4] sm:$0xf]
  %v84 = vld [vmem:[%s1 + $0xa8] sm:$0xf]
  %v85 = vld [vmem:[%s1 + $0xac] sm:$0xf]
  %v86 = vld [vmem:[%s1 + $0xb0] sm:$0xf]
  %v87 = vld [vmem:[%s1 + $0xb4] sm:$0xf]
  %v88 = vld [vmem:[%s1 + $0xb8] sm:$0xf]
  %v89 = vld [vmem:[%s1 + $0xbc] sm:$0xf]
  %v90 = vld [vmem:[%s1 + $0xc0] sm:$0xf]
  %v91 = vld [vmem:[%s1 + $0xc4] sm:$0xf]
  %v92 = vld [vmem:[%s1 + $0xc8] sm:$0xf]
  %v93 = vld [vmem:[%s1 + $0xcc] sm:$0xf]
  %v94 = vld [vmem:[%s1 + $0xd0] sm:$0xf]
  %v95 = vld [vmem:[%s1 + $0xd4] sm:$0xf]
  %v96 = vld [vmem:[%s1 + $0xd8] sm:$0xf]
  %v97 = vld [vmem:[%s1 + $0xdc] sm:$0xf]
  %v98 = vld [vmem:[%s1 + $0xe0] sm:$0xf]
  %v99 = vld [vmem:[%s1 + $0xe4] sm:$0xf]
  %v100 = vld [vmem:[%s1 + $0xe8] sm:$0xf]
  %v101 = vld [vmem:[%s1 + $0xec] sm:$0xf]
  %v102 = vld [vmem:[%s1 + $0xf0] sm:$0xf]
  %v103 = vld [vmem:[%s1 + $0xf4] sm:$0xf]
  %v104 = vld [vmem:[%s1 + $0xf8] sm:$0xf]
  %v105 = vld [vmem:[%s1 + $0xfc] sm:$0xf]
  %v106 = vld [vmem:[%s1 + $0x100] sm:$0xf]
  %v107 = vld [vmem:[%s1 + $0x104] sm:$0xf]
  %v108 = vld [vmem:[%s1 + $0x108] sm:$0xf]
  %v109 = vld [vmem:[%s1 + $0x10c] sm:$0xf]
  %v110 = vld [vmem:[%s1 + $0x110] sm:$0xf]
  %v111 = vld [vmem:[%s1 + $0x114] sm:$0xf]
  %v112 = vld [vmem:[%s1 + $0x118] sm:$0xf]
  %v113 = vld [vmem:[%s1 + $0x11c] sm:$0xf]
  %v114 = vld [vmem:[%s2] sm:$0x1]
  %v116 = vlaneseq
  %v117 = vshrl.u32 %v116, 7
  %v118 = vsub.s32 0, %v117
  %v119 = vrot.slane %v114, %v118
  %v148 = vunpack.c.l.b16 %v15
  %v149 = vunpack.c.h.b16 %v15
  %v150 = vunpack.c.l.b16 %v16
  %v151 = vunpack.c.h.b16 %v16
  %v152 = vunpack.c.l.b16 %v17
  %v153 = vunpack.c.l.b16 %v18
  %v154 = vunpack.c.h.b16 %v18
  %v155 = vunpack.c.l.b16 %v19
  %v156 = vunpack.c.h.b16 %v19
  %v157 = vunpack.c.l.b16 %v20
  %v158 = vunpack.c.l.b16 %v21
  %v159 = vunpack.c.h.b16 %v21
  %v160 = vunpack.c.l.b16 %v22
  %v161 = vunpack.c.h.b16 %v22
  %v162 = vunpack.c.l.b16 %v23
  %v163 = vunpack.c.l.b16 %v24
  %v164 = vunpack.c.h.b16 %v24
  %v165 = vunpack.c.l.b16 %v25
  %v166 = vunpack.c.h.b16 %v25
  %v167 = vunpack.c.l.b16 %v26
  %v168 = vunpack.c.l.b16 %v27
  %v169 = vunpack.c.h.b16 %v27
  %v170 = vunpack.c.l.b16 %v28
  %v171 = vunpack.c.h.b16 %v28
  %v172 = vunpack.c.l.b16 %v29
  %v173 = vunpack.c.l.b16 %v30
  %v174 = vunpack.c.h.b16 %v30
  %v175 = vunpack.c.l.b16 %v31
  %v176 = vunpack.c.h.b16 %v31
  %v177 = vunpack.c.l.b16 %v32
  %v178 = vunpack.c.l.b16 %v33
  %v179 = vunpack.c.h.b16 %v33
  %v180 = vunpack.c.l.b16 %v34
  %v181 = vunpack.c.h.b16 %v34
  %v182 = vunpack.c.l.b16 %v35
  %v183 = vunpack.c.l.b16 %v36
  %v184 = vunpack.c.h.b16 %v36
  %v185 = vunpack.c.l.b16 %v37
  %v186 = vunpack.c.h.b16 %v37
  %v187 = vunpack.c.l.b16 %v38
  %v188 = vunpack.c.l.b16 %v39
  %v189 = vunpack.c.h.b16 %v39
  %v190 = vunpack.c.l.b16 %v40
  %v191 = vunpack.c.h.b16 %v40
  %v192 = vunpack.c.l.b16 %v41
  %v193 = vpack.c.b16 %v153, %v148
  %v194 = vpack.c.b16 %v154, %v149
  %v195 = vpack.c.b16 %v155, %v150
  %v196 = vpack.c.b16 %v156, %v151
  %v197 = vpack.c.b16 %v157, %v152
  %v198 = vpack.c.b16 %v163, %v158
  %v199 = vpack.c.b16 %v164, %v159
  %v200 = vpack.c.b16 %v165, %v160
  %v201 = vpack.c.b16 %v166, %v161
  %v202 = vpack.c.b16 %v167, %v162
  %v203 = vpack.c.b16 %v173, %v168
  %v204 = vpack.c.b16 %v174, %v169
  %v205 = vpack.c.b16 %v175, %v170
  %v206 = vpack.c.b16 %v176, %v171
  %v207 = vpack.c.b16 %v177, %v172
  %v208 = vpack.c.b16 %v183, %v178
  %v209 = vpack.c.b16 %v184, %v179
  %v210 = vpack.c.b16 %v185, %v180
  %v211 = vpack.c.b16 %v186, %v181
  %v212 = vpack.c.b16 %v187, %v182
  %v213 = vpack.c.b16 %v188, %v188
  %v214 = vpack.c.b16 %v189, %v189
  %v215 = vpack.c.b16 %v190, %v190
  %v216 = vpack.c.b16 %v191, %v191
  %v217 = vpack.c.b16 %v192, %v192
  %v310 = vunpack.c.l.b16 %v42
  %v311 = vunpack.c.l.b16 %v43
  %v312 = vunpack.c.l.b16 %v44
  %v313 = vunpack.c.l.b16 %v45
  %v314 = vunpack.c.l.b16 %v46
  %v315 = vunpack.c.l.b16 %v47
  %v316 = vunpack.c.l.b16 %v48
  %v317 = vunpack.c.l.b16 %v49
  %v318 = vunpack.c.l.b16 %v50
  %v319 = vunpack.c.l.b16 %v51
  %v320 = vunpack.c.l.b16 %v52
  %v321 = vunpack.c.l.b16 %v53
  %v322 = vunpack.c.l.b16 %v54
  %v323 = vunpack.c.l.b16 %v55
  %v324 = vunpack.c.l.b16 %v56
  %v325 = vunpack.c.l.b16 %v57
  %v326 = vunpack.c.l.b16 %v58
  %v327 = vunpack.c.l.b16 %v59
  %v328 = vunpack.c.l.b16 %v60
  %v329 = vunpack.c.l.b16 %v61
  %v330 = vunpack.c.l.b16 %v62
  %v331 = vunpack.c.l.b16 %v63
  %v332 = vunpack.c.l.b16 %v64
  %v333 = vunpack.c.l.b16 %v65
  %v334 = vunpack.c.l.b16 %v66
  %v335 = vunpack.c.l.b16 %v67
  %v336 = vunpack.c.l.b16 %v68
  %v337 = vunpack.c.l.b16 %v69
  %v338 = vunpack.c.l.b16 %v70
  %v339 = vunpack.c.l.b16 %v71
  %v340 = vunpack.c.l.b16 %v72
  %v341 = vunpack.c.l.b16 %v73
  %v342 = vunpack.c.l.b16 %v74
  %v343 = vunpack.c.l.b16 %v75
  %v344 = vunpack.c.l.b16 %v76
  %v345 = vunpack.c.l.b16 %v77
  %v346 = vunpack.c.l.b16 %v78
  %v347 = vunpack.c.l.b16 %v79
  %v348 = vunpack.c.l.b16 %v80
  %v349 = vunpack.c.l.b16 %v81
  %v350 = vunpack.c.l.b16 %v82
  %v351 = vunpack.c.l.b16 %v83
  %v352 = vunpack.c.l.b16 %v84
  %v353 = vunpack.c.l.b16 %v85
  %v354 = vunpack.c.l.b16 %v86
  %v355 = vunpack.c.l.b16 %v87
  %v356 = vunpack.c.l.b16 %v88
  %v357 = vunpack.c.l.b16 %v89
  %v358 = vunpack.c.l.b16 %v90
  %v359 = vunpack.c.l.b16 %v91
  %v360 = vunpack.c.l.b16 %v92
  %v361 = vunpack.c.l.b16 %v93
  %v362 = vunpack.c.l.b16 %v94
  %v363 = vunpack.c.l.b16 %v95
  %v364 = vunpack.c.l.b16 %v96
  %v365 = vunpack.c.l.b16 %v97
  %v366 = vunpack.c.l.b16 %v98
  %v367 = vunpack.c.l.b16 %v99
  %v368 = vunpack.c.l.b16 %v100
  %v369 = vunpack.c.l.b16 %v101
  %v370 = vunpack.c.l.b16 %v102
  %v371 = vunpack.c.l.b16 %v103
  %v372 = vunpack.c.l.b16 %v104
  %v373 = vunpack.c.l.b16 %v105
  %v374 = vunpack.c.l.b16 %v106
  %v375 = vunpack.c.l.b16 %v107
  %v376 = vunpack.c.l.b16 %v108
  %v377 = vunpack.c.l.b16 %v109
  %v378 = vunpack.c.l.b16 %v110
  %v379 = vunpack.c.l.b16 %v111
  %v380 = vunpack.c.l.b16 %v112
  %v381 = vunpack.c.l.b16 %v113
  %v382 = vpack.c.b16 %v311, %v310
  %v383 = vpack.c.b16 %v313, %v312
  %v384 = vpack.c.b16 %v315, %v314
  %v385 = vpack.c.b16 %v317, %v316
  %v386 = vpack.c.b16 %v319, %v318
  %v387 = vpack.c.b16 %v321, %v320
  %v388 = vpack.c.b16 %v323, %v322
  %v389 = vpack.c.b16 %v325, %v324
  %v390 = vpack.c.b16 %v327, %v326
  %v391 = vpack.c.b16 %v329, %v328
  %v392 = vpack.c.b16 %v331, %v330
  %v393 = vpack.c.b16 %v333, %v332
  %v394 = vpack.c.b16 %v335, %v334
  %v395 = vpack.c.b16 %v337, %v336
  %v396 = vpack.c.b16 %v339, %v338
  %v397 = vpack.c.b16 %v341, %v340
  %v398 = vpack.c.b16 %v343, %v342
  %v399 = vpack.c.b16 %v345, %v344
  %v400 = vpack.c.b16 %v347, %v346
  %v401 = vpack.c.b16 %v349, %v348
  %v402 = vpack.c.b16 %v351, %v350
  %v403 = vpack.c.b16 %v353, %v352
  %v404 = vpack.c.b16 %v355, %v354
  %v405 = vpack.c.b16 %v357, %v356
  %v406 = vpack.c.b16 %v359, %v358
  %v407 = vpack.c.b16 %v361, %v360
  %v408 = vpack.c.b16 %v363, %v362
  %v409 = vpack.c.b16 %v365, %v364
  %v410 = vpack.c.b16 %v367, %v366
  %v411 = vpack.c.b16 %v369, %v368
  %v412 = vpack.c.b16 %v371, %v370
  %v413 = vpack.c.b16 %v373, %v372
  %v414 = vpack.c.b16 %v375, %v374
  %v415 = vpack.c.b16 %v377, %v376
  %v416 = vpack.c.b16 %v379, %v378
  %v417 = vpack.c.b16 %v381, %v380
  %vm454 = vcmask 523264
  %v456 = vsel %vm454, %v197, 0
  %v459 = vsel %vm454, %v202, 0
  %v462 = vsel %vm454, %v207, 0
  %v465 = vsel %vm454, %v212, 0
  %v468 = vsel %vm454, %v217, 0
  %470 = vmatprep.subr.bf16.mxu0 0
  %471 = vmatpush1.bf16.msra.mxu0 %v382
  %472 = vmatprep.subr.bf16.mxu0 0
  %473 = vmatpush1.bf16.msra.mxu0 %v383
  %474 = vmatprep.subr.bf16.mxu0 0
  %475 = vmatpush1.bf16.msra.mxu0 %v384
  %476 = vmatprep.subr.bf16.mxu0 0
  %477 = vmatpush1.bf16.msra.mxu0 %v385
  %478 = vmatprep.subr.bf16.mxu0 0
  %479 = vmatpush1.bf16.msra.mxu0 %v386
  %480 = vmatprep.subr.bf16.mxu0 0
  %481 = vmatpush1.bf16.msra.mxu0 %v387
  %482 = vmatprep.subr.bf16.mxu0 0
  %483 = vmatpush1.bf16.msra.mxu0 %v388
  %484 = vmatprep.subr.bf16.mxu0 0
  %485 = vmatpush1.bf16.msra.mxu0 %v389
  %486 = vmatprep.subr.bf16.mxu0 0
  %487 = vmatpush1.bf16.msra.mxu0 %v390
  %488 = vmatprep.subr.bf16.mxu0 0
  %489 = vmatpush1.bf16.msra.mxu0 %v391
  %490 = vmatprep.subr.bf16.mxu0 0
  %491 = vmatpush1.bf16.msra.mxu0 %v392
  %492 = vmatprep.subr.bf16.mxu0 0
  %493 = vmatpush1.bf16.msra.mxu0 %v393
  %494 = vmatprep.subr.bf16.mxu0 0
  %495 = vmatpush1.bf16.msra.mxu0 %v394
  %496 = vmatprep.subr.bf16.mxu0 0
  %497 = vmatpush1.bf16.msra.mxu0 %v395
  %498 = vmatprep.subr.bf16.mxu0 0
  %499 = vmatpush1.bf16.msra.mxu0 %v396
  %500 = vmatprep.subr.bf16.mxu0 0
  %501 = vmatpush1.bf16.msra.mxu0 %v397
  %502 = vmatprep.mubr.bf16.mxu0 %v194
  %503 = vmatmul.mubr.bf16.gmra.mrb[0].mxu0 %v193
  %v504 = vpop.f32.mrb[0].mxu0
  %v505 = vadd.f32 %v119, %v504
  %v506 = vpop.f32.mrb[0].mxu0
  %v507 = vpop.f32.mrb[0].mxu0
  %v508 = vadd.f32 %v119, %v507
  %v509 = vpop.f32.mrb[0].mxu0
  %510 = vmatprep.mubr.bf16.mxu0 %v199
  %511 = vmatmul.mubr.bf16.gmra.mrb[0].mxu0 %v198
  %v512 = vpop.f32.mrb[0].mxu0
  %v513 = vadd.f32 %v119, %v512
  %v514 = vpop.f32.mrb[0].mxu0
  %v515 = vpop.f32.mrb[0].mxu0
  %v516 = vadd.f32 %v119, %v515
  %v517 = vpop.f32.mrb[0].mxu0
  %518 = vmatprep.mubr.bf16.mxu0 %v204
  %519 = vmatmul.mubr.bf16.gmra.mrb[0].mxu0 %v203
  %v520 = vpop.f32.mrb[0].mxu0
  %v521 = vadd.f32 %v119, %v520
  %v522 = vpop.f32.mrb[0].mxu0
  %v523 = vpop.f32.mrb[0].mxu0
  %v524 = vadd.f32 %v119, %v523
  %v525 = vpop.f32.mrb[0].mxu0
  %526 = vmatprep.mubr.bf16.mxu0 %v209
  %527 = vmatmul.mubr.bf16.gmra.mrb[0].mxu0 %v208
  %v528 = vpop.f32.mrb[0].mxu0
  %v529 = vadd.f32 %v119, %v528
  %v530 = vpop.f32.mrb[0].mxu0
  %v531 = vpop.f32.mrb[0].mxu0
  %v532 = vadd.f32 %v119, %v531
  %v533 = vpop.f32.mrb[0].mxu0
  %534 = vmatprep.mubr.bf16.mxu0 %v214
  %535 = vmatmul.mubr.bf16.gmra.mrb[0].mxu0 %v213
  %v536 = vpop.f32.mrb[0].mxu0
  %v537 = vadd.f32 %v119, %v536
  %v538 = vpop.f32.mrb[0].mxu0
  %v539 = vpop.f32.mrb[0].mxu0
  %v540 = vpop.f32.mrb[0].mxu0
  %541 = vdwg.mxu0
  %542 = vmatprep.subr.bf16.mxu0 0
  %543 = vmatpush1.bf16.msra.mxu0 %v398
  %544 = vmatprep.subr.bf16.mxu0 0
  %545 = vmatpush1.bf16.msra.mxu0 %v399
  %546 = vmatprep.subr.bf16.mxu0 0
  %547 = vmatpush1.bf16.msra.mxu0 %v400
  %548 = vmatprep.subr.bf16.mxu0 0
  %549 = vmatpush1.bf16.msra.mxu0 %v401
  %550 = vmatprep.subr.bf16.mxu0 0
  %551 = vmatpush1.bf16.msra.mxu0 %v402
  %552 = vmatprep.subr.bf16.mxu0 0
  %553 = vmatpush1.bf16.msra.mxu0 %v403
  %554 = vmatprep.subr.bf16.mxu0 0
  %555 = vmatpush1.bf16.msra.mxu0 %v404
  %556 = vmatprep.subr.bf16.mxu0 0
  %557 = vmatpush1.bf16.msra.mxu0 %v405
  %558 = vmatprep.subr.bf16.mxu0 0
  %559 = vmatpush1.bf16.msra.mxu0 %v406
  %560 = vmatprep.subr.bf16.mxu0 0
  %561 = vmatpush1.bf16.msra.mxu0 %v407
  %562 = vmatprep.subr.bf16.mxu0 0
  %563 = vmatpush1.bf16.msra.mxu0 %v408
  %564 = vmatprep.subr.bf16.mxu0 0
  %565 = vmatpush1.bf16.msra.mxu0 %v409
  %566 = vmatprep.subr.bf16.mxu0 0
  %567 = vmatpush1.bf16.msra.mxu0 %v410
  %568 = vmatprep.subr.bf16.mxu0 0
  %569 = vmatpush1.bf16.msra.mxu0 %v411
  %570 = vmatprep.subr.bf16.mxu0 0
  %571 = vmatpush1.bf16.msra.mxu0 %v412
  %572 = vmatprep.subr.bf16.mxu0 0
  %573 = vmatpush1.bf16.msra.mxu0 %v413
  %574 = vmatprep.mubr.bf16.mxu0 %v196
  %575 = vmatmul.mubr.bf16.gmra.mrb[0].mxu0 %v195
  %v576 = vpop.f32.mrb[0].mxu0
  %v577 = vadd.f32 %v505, %v576
  %v578 = vpop.f32.mrb[0].mxu0
  %v579 = vpop.f32.mrb[0].mxu0
  %v580 = vadd.f32 %v508, %v579
  %v581 = vpop.f32.mrb[0].mxu0
  %582 = vmatprep.mubr.bf16.mxu0 %v201
  %583 = vmatmul.mubr.bf16.gmra.mrb[0].mxu0 %v200
  %v584 = vpop.f32.mrb[0].mxu0
  %v585 = vadd.f32 %v513, %v584
  %v586 = vpop.f32.mrb[0].mxu0
  %v587 = vpop.f32.mrb[0].mxu0
  %v588 = vadd.f32 %v516, %v587
  %v589 = vpop.f32.mrb[0].mxu0
  %590 = vmatprep.mubr.bf16.mxu0 %v206
  %591 = vmatmul.mubr.bf16.gmra.mrb[0].mxu0 %v205
  %v592 = vpop.f32.mrb[0].mxu0
  %v593 = vadd.f32 %v521, %v592
  %v594 = vpop.f32.mrb[0].mxu0
  %v595 = vpop.f32.mrb[0].mxu0
  %v596 = vadd.f32 %v524, %v595
  %v597 = vpop.f32.mrb[0].mxu0
  %598 = vmatprep.mubr.bf16.mxu0 %v211
  %599 = vmatmul.mubr.bf16.gmra.mrb[0].mxu0 %v210
  %v600 = vpop.f32.mrb[0].mxu0
  %v601 = vadd.f32 %v529, %v600
  %v602 = vpop.f32.mrb[0].mxu0
  %v603 = vpop.f32.mrb[0].mxu0
  %v604 = vadd.f32 %v532, %v603
  %v605 = vpop.f32.mrb[0].mxu0
  %606 = vmatprep.mubr.bf16.mxu0 %v216
  %607 = vmatmul.mubr.bf16.gmra.mrb[0].mxu0 %v215
  %v608 = vpop.f32.mrb[0].mxu0
  %v609 = vadd.f32 %v537, %v608
  %v610 = vpop.f32.mrb[0].mxu0
  %v611 = vpop.f32.mrb[0].mxu0
  %v612 = vpop.f32.mrb[0].mxu0
  %613 = vdwg.mxu0
  %614 = vmatprep.subr.bf16.mxu0 0
  %615 = vmatpush1.bf16.msra.mxu0 %v414
  %616 = vmatprep.subr.bf16.mxu0 0
  %617 = vmatpush1.bf16.msra.mxu0 %v415
  %618 = vmatprep.subr.bf16.mxu0 0
  %619 = vmatpush1.bf16.msra.mxu0 %v416
  %620 = vmatprep.subr.bf16.mxu0 0
  %621 = vmatpush1.bf16.msra.mxu0 %v417
  %622 = vmatprep.subr.bf16.mxu0 0
  %623 = vmatpush1.bf16.msra.mxu0 0
  %624 = vmatprep.subr.bf16.mxu0 0
  %625 = vmatpush1.bf16.msra.mxu0 0
  %626 = vmatprep.subr.bf16.mxu0 0
  %627 = vmatpush1.bf16.msra.mxu0 0
  %628 = vmatprep.subr.bf16.mxu0 0
  %629 = vmatpush1.bf16.msra.mxu0 0
  %630 = vmatprep.subr.bf16.mxu0 0
  %631 = vmatpush1.bf16.msra.mxu0 0
  %632 = vmatprep.subr.bf16.mxu0 0
  %633 = vmatpush1.bf16.msra.mxu0 0
  %634 = vmatprep.subr.bf16.mxu0 0
  %635 = vmatpush1.bf16.msra.mxu0 0
  %636 = vmatprep.subr.bf16.mxu0 0
  %637 = vmatpush1.bf16.msra.mxu0 0
  %638 = vmatprep.subr.bf16.mxu0 0
  %639 = vmatpush1.bf16.msra.mxu0 0
  %640 = vmatprep.subr.bf16.mxu0 0
  %641 = vmatpush1.bf16.msra.mxu0 0
  %642 = vmatprep.subr.bf16.mxu0 0
  %643 = vmatpush1.bf16.msra.mxu0 0
  %644 = vmatprep.subr.bf16.mxu0 0
  %645 = vmatpush1.bf16.msra.mxu0 0
  %646 = vmatprep.mubr.bf16.mxu0 0
  %647 = vmatmul.mubr.bf16.gmra.mrb[0].mxu0 %v456
  %v648 = vpop.f32.mrb[0].mxu0
  %v649 = vadd.f32 %v577, %v648
  %v650 = vpop.f32.mrb[0].mxu0
  %v651 = vpop.f32.mrb[0].mxu0
  %v652 = vadd.f32 %v580, %v651
  %v653 = vpop.f32.mrb[0].mxu0
  %654 = vmatprep.mubr.bf16.mxu0 0
  %655 = vmatmul.mubr.bf16.gmra.mrb[0].mxu0 %v459
  %v656 = vpop.f32.mrb[0].mxu0
  %v657 = vadd.f32 %v585, %v656
  %v658 = vpop.f32.mrb[0].mxu0
  %v659 = vpop.f32.mrb[0].mxu0
  %v660 = vadd.f32 %v588, %v659
  %v661 = vpop.f32.mrb[0].mxu0
  %662 = vmatprep.mubr.bf16.mxu0 0
  %663 = vmatmul.mubr.bf16.gmra.mrb[0].mxu0 %v462
  %v664 = vpop.f32.mrb[0].mxu0
  %v665 = vadd.f32 %v593, %v664
  %v666 = vpop.f32.mrb[0].mxu0
  %v667 = vpop.f32.mrb[0].mxu0
  %v668 = vadd.f32 %v596, %v667
  %v669 = vpop.f32.mrb[0].mxu0
  %670 = vmatprep.mubr.bf16.mxu0 0
  %671 = vmatmul.mubr.bf16.gmra.mrb[0].mxu0 %v465
  %v672 = vpop.f32.mrb[0].mxu0
  %v673 = vadd.f32 %v601, %v672
  %v674 = vpop.f32.mrb[0].mxu0
  %v675 = vpop.f32.mrb[0].mxu0
  %v676 = vadd.f32 %v604, %v675
  %v677 = vpop.f32.mrb[0].mxu0
  %678 = vmatprep.mubr.bf16.mxu0 0
  %679 = vmatmul.mubr.bf16.gmra.mrb[0].mxu0 %v468
  %v680 = vpop.f32.mrb[0].mxu0
  %v681 = vadd.f32 %v609, %v680
  %v682 = vpop.f32.mrb[0].mxu0
  %v683 = vpop.f32.mrb[0].mxu0
  %v684 = vpop.f32.mrb[0].mxu0
  %685 = vdwg.mxu0
  %v686 = vmax.f32 %v649, 0.0
  %v687 = vmax.f32 %v652, 0.0
  %v688 = vmax.f32 %v657, 0.0
  %v689 = vmax.f32 %v660, 0.0
  %v690 = vmax.f32 %v665, 0.0
  %v691 = vmax.f32 %v668, 0.0
  %v692 = vmax.f32 %v673, 0.0
  %v693 = vmax.f32 %v676, 0.0
  %v694 = vmax.f32 %v681, 0.0
  %vm695 = vcmask 785408
  %696 = vst.msk [vmem:[%s3] sm:$0xff] %vm695, %v686
  %697 = vst.msk [vmem:[%s3 + $0x8] sm:$0xff] %vm695, %v687
  %698 = vst.msk [vmem:[%s3 + $0x10] sm:$0xff] %vm695, %v688
  %699 = vst.msk [vmem:[%s3 + $0x18] sm:$0xff] %vm695, %v689
  %700 = vst.msk [vmem:[%s3 + $0x20] sm:$0xff] %vm695, %v690
  %701 = vst.msk [vmem:[%s3 + $0x28] sm:$0xff] %vm695, %v691
  %702 = vst.msk [vmem:[%s3 + $0x30] sm:$0xff] %vm695, %v692
  %703 = vst.msk [vmem:[%s3 + $0x38] sm:$0xff] %vm695, %v693
  %704 = vst.msk [vmem:[%s3 + $0x40] sm:$0xff] %vm695, %v694
  // Predicated region
  $region14: #{stem_forward.13} parent=0 // pred_check
    _
  $region15: #{stem_forward.13} parent=0 // pred_check_branch
    %706 = sbr.rel (0) target = $region17
  $region16: #{stem_forward.13} parent=0 // pred_region
    _
  $region17: #{stem_forward.13} parent=0 // pred_fallthru
    _
  // Predicated region
  $region18: #{stem_forward.13} parent=0 // pred_check
    _
  $region19: #{stem_forward.13} parent=0 // pred_check_branch
    %708 = sbr.rel (0) target = $region21
  $region20: #{stem_forward.13} parent=0 // pred_region
    _
  $region21: #{stem_forward.13} parent=0 // pred_fallthru
    _

// kernel: stem_forward.14
$region0: #{stem_forward.14}
  #allocation0 [shape = 'u32[]', space=smem, size = 0x4, offset = 0x4, fixed_abs, tag = 'smem constant byte address 0x4 - core index']
  #allocation1 [shape = 'u32[144,128]{1,0:T(1,128)}', space=vmem, size = 0x12000, scoped, tag = 'internal scratch']
  %s0 = inlined_call_operand.vmem [shape: bf16[72,160], index: 0, kind: input, shape index: {}]
  %s1 = inlined_call_operand.vmem [shape: bf16[160,128], index: 1, kind: input, shape index: {}]
  %s2 = inlined_call_operand.vmem [shape: f32[1,128], index: 2, kind: input, shape index: {}]
  %s3 = inlined_call_operand.vmem [shape: f32[72,128], index: 3, kind: output, shape index: {}]
  %s4 = sld [smem:[#allocation0]]
  $region22: #{stem_forward.14} parent=0
    _
  %s6 = ssub.s32 1, %s4
  %s7 = scalar_select 0, %s6, %s4
  // Predicated region
  $region2: #{stem_forward.14} parent=0 // pred_check
    _
  $region3: #{stem_forward.14} parent=0 // pred_check_branch
    %9 = sbr.rel (0) target = $region5
  $region4: #{stem_forward.14} parent=0 // pred_region
    _
  $region5: #{stem_forward.14} parent=0 // pred_fallthru
    _
  // Predicated region
  $region6: #{stem_forward.14} parent=0 // pred_check
    _
  $region7: #{stem_forward.14} parent=0 // pred_check_branch
    %11 = sbr.rel (0) target = $region9
  $region8: #{stem_forward.14} parent=0 // pred_region
    _
  $region9: #{stem_forward.14} parent=0 // pred_fallthru
    _
  // Predicated region
  $region10: #{stem_forward.14} parent=0 // pred_check
    _
  $region11: #{stem_forward.14} parent=0 // pred_check_branch
    %13 = sbr.rel (0) target = $region13
  $region12: #{stem_forward.14} parent=0 // pred_region
    _
  $region13: #{stem_forward.14} parent=0 // pred_fallthru
    _
  %v15 = vld [vmem:[%s0] sm:$0xff]
  %v16 = vld [vmem:[%s0 + $0x8] sm:$0xff]
  %v17 = vld [vmem:[%s0 + $0x10] sm:$0xff]
  %v18 = vld [vmem:[%s0 + $0x18] sm:$0xff]
  %v19 = vld [vmem:[%s0 + $0x20] sm:$0xff]
  %v20 = vld [vmem:[%s0 + $0x28] sm:$0xff]
  %v21 = vld [vmem:[%s0 + $0x30] sm:$0xff]
  %v22 = vld [vmem:[%s0 + $0x38] sm:$0xff]
  %v23 = vld [vmem:[%s0 + $0x40] sm:$0xff]
  %v24 = vld [vmem:[%s1] sm:$0xf]
  %v25 = vld [vmem:[%s1 + $0x4] sm:$0xf]
  %v26 = vld [vmem:[%s1 + $0x8] sm:$0xf]
  %v27 = vld [vmem:[%s1 + $0xc] sm:$0xf]
  %v28 = vld [vmem:[%s1 + $0x10] sm:$0xf]
  %v29 = vld [vmem:[%s1 + $0x14] sm:$0xf]
  %v30 = vld [vmem:[%s1 + $0x18] sm:$0xf]
  %v31 = vld [vmem:[%s1 + $0x1c] sm:$0xf]
  %v32 = vld [vmem:[%s1 + $0x20] sm:$0xf]
  %v33 = vld [vmem:[%s1 + $0x24] sm:$0xf]
  %v34 = vld [vmem:[%s1 + $0x28] sm:$0xf]
  %v35 = vld [vmem:[%s1 + $0x2c] sm:$0xf]
  %v36 = vld [vmem:[%s1 + $0x30] sm:$0xf]
  %v37 = vld [vmem:[%s1 + $0x34] sm:$0xf]
  %v38 = vld [vmem:[%s1 + $0x38] sm:$0xf]
  %v39 = vld [vmem:[%s1 + $0x3c] sm:$0xf]
  %v40 = vld [vmem:[%s1 + $0x40] sm:$0xf]
  %v41 = vld [vmem:[%s1 + $0x44] sm:$0xf]
  %v42 = vld [vmem:[%s1 + $0x48] sm:$0xf]
  %v43 = vld [vmem:[%s1 + $0x4c] sm:$0xf]
  %v44 = vld [vmem:[%s2] sm:$0x1]
  %v46 = vlaneseq
  %v47 = vshrl.u32 %v46, 7
  %v48 = vsub.s32 0, %v47
  %v49 = vrot.slane %v44, %v48
  %v60 = vunpack.c.l.b16 %v15
  %v61 = vunpack.c.h.b16 %v15
  %v62 = vunpack.c.l.b16 %v16
  %v63 = vunpack.c.h.b16 %v16
  %v64 = vunpack.c.l.b16 %v17
  %v65 = vunpack.c.h.b16 %v17
  %v66 = vunpack.c.l.b16 %v18
  %v67 = vunpack.c.h.b16 %v18
  %v68 = vunpack.c.l.b16 %v19
  %v69 = vunpack.c.h.b16 %v19
  %v70 = vunpack.c.l.b16 %v20
  %v71 = vunpack.c.h.b16 %v20
  %v72 = vunpack.c.l.b16 %v21
  %v73 = vunpack.c.h.b16 %v21
  %v74 = vunpack.c.l.b16 %v22
  %v75 = vunpack.c.h.b16 %v22
  %v76 = vunpack.c.l.b16 %v23
  %v77 = vunpack.c.h.b16 %v23
  %v78 = vpack.c.b16 %v62, %v60
  %v79 = vpack.c.b16 %v63, %v61
  %v80 = vpack.c.b16 %v66, %v64
  %v81 = vpack.c.b16 %v67, %v65
  %v82 = vpack.c.b16 %v70, %v68
  %v83 = vpack.c.b16 %v71, %v69
  %v84 = vpack.c.b16 %v74, %v72
  %v85 = vpack.c.b16 %v75, %v73
  %v86 = vpack.c.b16 %v76, %v76
  %v87 = vpack.c.b16 %v77, %v77
  %v113 = vunpack.c.l.b16 %v24
  %v114 = vunpack.c.l.b16 %v25
  %v115 = vunpack.c.l.b16 %v26
  %v116 = vunpack.c.l.b16 %v27
  %v117 = vunpack.c.l.b16 %v28
  %v118 = vunpack.c.l.b16 %v29
  %v119 = vunpack.c.l.b16 %v30
  %v120 = vunpack.c.l.b16 %v31
  %v121 = vunpack.c.l.b16 %v32
  %v122 = vunpack.c.l.b16 %v33
  %v123 = vunpack.c.l.b16 %v34
  %v124 = vunpack.c.l.b16 %v35
  %v125 = vunpack.c.l.b16 %v36
  %v126 = vunpack.c.l.b16 %v37
  %v127 = vunpack.c.l.b16 %v38
  %v128 = vunpack.c.l.b16 %v39
  %v129 = vunpack.c.l.b16 %v40
  %v130 = vunpack.c.l.b16 %v41
  %v131 = vunpack.c.l.b16 %v42
  %v132 = vunpack.c.l.b16 %v43
  %v133 = vpack.c.b16 %v114, %v113
  %v134 = vpack.c.b16 %v116, %v115
  %v135 = vpack.c.b16 %v118, %v117
  %v136 = vpack.c.b16 %v120, %v119
  %v137 = vpack.c.b16 %v122, %v121
  %v138 = vpack.c.b16 %v124, %v123
  %v139 = vpack.c.b16 %v126, %v125
  %v140 = vpack.c.b16 %v128, %v127
  %v141 = vpack.c.b16 %v130, %v129
  %v142 = vpack.c.b16 %v132, %v131
  %vm153 = vcmask 261120
  %v155 = vsel %vm153, %v79, 0
  %v158 = vsel %vm153, %v81, 0
  %v161 = vsel %vm153, %v83, 0
  %v164 = vsel %vm153, %v85, 0
  %v167 = vsel %vm153, %v87, 0
  %169 = vmatprep.subr.bf16.mxu0 0
  %170 = vmatpush1.bf16.msra.mxu0 %v133
  %171 = vmatprep.subr.bf16.mxu0 0
  %172 = vmatpush1.bf16.msra.mxu0 %v134
  %173 = vmatprep.subr.bf16.mxu0 0
  %174 = vmatpush1.bf16.msra.mxu0 %v135
  %175 = vmatprep.subr.bf16.mxu0 0
  %176 = vmatpush1.bf16.msra.mxu0 %v136
  %177 = vmatprep.subr.bf16.mxu0 0
  %178 = vmatpush1.bf16.msra.mxu0 %v137
  %179 = vmatprep.subr.bf16.mxu0 0
  %180 = vmatpush1.bf16.msra.mxu0 %v138
  %181 = vmatprep.subr.bf16.mxu0 0
  %182 = vmatpush1.bf16.msra.mxu0 %v139
  %183 = vmatprep.subr.bf16.mxu0 0
  %184 = vmatpush1.bf16.msra.mxu0 %v140
  %185 = vmatprep.subr.bf16.mxu0 0
  %186 = vmatpush1.bf16.msra.mxu0 %v141
  %187 = vmatprep.subr.bf16.mxu0 0
  %188 = vmatpush1.bf16.msra.mxu0 %v142
  %189 = vmatprep.subr.bf16.mxu0 0
  %190 = vmatpush1.bf16.msra.mxu0 0
  %191 = vmatprep.subr.bf16.mxu0 0
  %192 = vmatpush1.bf16.msra.mxu0 0
  %193 = vmatprep.subr.bf16.mxu0 0
  %194 = vmatpush1.bf16.msra.mxu0 0
  %195 = vmatprep.subr.bf16.mxu0 0
  %196 = vmatpush1.bf16.msra.mxu0 0
  %197 = vmatprep.subr.bf16.mxu0 0
  %198 = vmatpush1.bf16.msra.mxu0 0
  %199 = vmatprep.subr.bf16.mxu0 0
  %200 = vmatpush1.bf16.msra.mxu0 0
  %201 = vmatprep.mubr.bf16.mxu0 %v155
  %202 = vmatmul.mubr.bf16.gmra.mrb[0].mxu0 %v78
  %v203 = vpop.f32.mrb[0].mxu0
  %v204 = vadd.f32 %v49, %v203
  %v205 = vpop.f32.mrb[0].mxu0
  %v206 = vpop.f32.mrb[0].mxu0
  %v207 = vadd.f32 %v49, %v206
  %v208 = vpop.f32.mrb[0].mxu0
  %209 = vmatprep.mubr.bf16.mxu0 %v158
  %210 = vmatmul.mubr.bf16.gmra.mrb[0].mxu0 %v80
  %v211 = vpop.f32.mrb[0].mxu0
  %v212 = vadd.f32 %v49, %v211
  %v213 = vpop.f32.mrb[0].mxu0
  %v214 = vpop.f32.mrb[0].mxu0
  %v215 = vadd.f32 %v49, %v214
  %v216 = vpop.f32.mrb[0].mxu0
  %217 = vmatprep.mubr.bf16.mxu0 %v161
  %218 = vmatmul.mubr.bf16.gmra.mrb[0].mxu0 %v82
  %v219 = vpop.f32.mrb[0].mxu0
  %v220 = vadd.f32 %v49, %v219
  %v221 = vpop.f32.mrb[0].mxu0
  %v222 = vpop.f32.mrb[0].mxu0
  %v223 = vadd.f32 %v49, %v222
  %v224 = vpop.f32.mrb[0].mxu0
  %225 = vmatprep.mubr.bf16.mxu0 %v164
  %226 = vmatmul.mubr.bf16.gmra.mrb[0].mxu0 %v84
  %v227 = vpop.f32.mrb[0].mxu0
  %v228 = vadd.f32 %v49, %v227
  %v229 = vpop.f32.mrb[0].mxu0
  %v230 = vpop.f32.mrb[0].mxu0
  %v231 = vadd.f32 %v49, %v230
  %v232 = vpop.f32.mrb[0].mxu0
  %233 = vmatprep.mubr.bf16.mxu0 %v167
  %234 = vmatmul.mubr.bf16.gmra.mrb[0].mxu0 %v86
  %v235 = vpop.f32.mrb[0].mxu0
  %v236 = vadd.f32 %v49, %v235
  %v237 = vpop.f32.mrb[0].mxu0
  %v238 = vpop.f32.mrb[0].mxu0
  %v239 = vpop.f32.mrb[0].mxu0
  %240 = vdwg.mxu0
  %v241 = vmax.f32 %v204, 0.0
  %v242 = vmax.f32 %v207, 0.0
  %v243 = vmax.f32 %v212, 0.0
  %v244 = vmax.f32 %v215, 0.0
  %v245 = vmax.f32 %v220, 0.0
  %v246 = vmax.f32 %v223, 0.0
  %v247 = vmax.f32 %v228, 0.0
  %v248 = vmax.f32 %v231, 0.0
  %v249 = vmax.f32 %v236, 0.0
  %250 = vst [vmem:[%s3] sm:$0xff] %v241
  %251 = vst [vmem:[%s3 + $0x8] sm:$0xff] %v242
  %252 = vst [vmem:[%s3 + $0x10] sm:$0xff] %v243
  %253 = vst [vmem:[%s3 + $0x18] sm:$0xff] %v244
  %254 = vst [vmem:[%s3 + $0x20] sm:$0xff] %v245
  %255 = vst [vmem:[%s3 + $0x28] sm:$0xff] %v246
  %256 = vst [vmem:[%s3 + $0x30] sm:$0xff] %v247
  %257 = vst [vmem:[%s3 + $0x38] sm:$0xff] %v248
  %258 = vst [vmem:[%s3 + $0x40] sm:$0xff] %v249
  // Predicated region
  $region14: #{stem_forward.14} parent=0 // pred_check
    _
  $region15: #{stem_forward.14} parent=0 // pred_check_branch
    %260 = sbr.rel (0) target = $region17
  $region16: #{stem_forward.14} parent=0 // pred_region
    _
  $region17: #{stem_forward.14} parent=0 // pred_fallthru
    _
  // Predicated region
  $region18: #{stem_forward.14} parent=0 // pred_check
    _
  $region19: #{stem_forward.14} parent=0 // pred_check_branch
    %262 = sbr.rel (0) target = $region21
  $region20: #{stem_forward.14} parent=0 // pred_region
    _
  $region21: #{stem_forward.14} parent=0 // pred_fallthru
    _

// kernel: stem_forward.15
$region0: #{stem_forward.15}
  #allocation0 [shape = 'u32[]', space=smem, size = 0x4, offset = 0x4, fixed_abs, tag = 'smem constant byte address 0x4 - core index']
  #allocation1 [shape = 'u32[144,128]{1,0:T(1,128)}', space=vmem, size = 0x12000, scoped, tag = 'internal scratch']
  %s0 = inlined_call_operand.vmem [shape: bf16[32,576], index: 0, kind: input, shape index: {}]
  %s1 = inlined_call_operand.vmem [shape: bf16[576,96], index: 1, kind: input, shape index: {}]
  %s2 = inlined_call_operand.vmem [shape: f32[1,96], index: 2, kind: input, shape index: {}]
  %s3 = inlined_call_operand.vmem [shape: f32[32,96], index: 3, kind: output, shape index: {}]
  %s4 = sld [smem:[#allocation0]]
  $region22: #{stem_forward.15} parent=0
    _
  %s6 = ssub.s32 1, %s4
  %s7 = scalar_select 0, %s6, %s4
  // Predicated region
  $region2: #{stem_forward.15} parent=0 // pred_check
    _
  $region3: #{stem_forward.15} parent=0 // pred_check_branch
    %9 = sbr.rel (0) target = $region5
  $region4: #{stem_forward.15} parent=0 // pred_region
    _
  $region5: #{stem_forward.15} parent=0 // pred_fallthru
    _
  // Predicated region
  $region6: #{stem_forward.15} parent=0 // pred_check
    _
  $region7: #{stem_forward.15} parent=0 // pred_check_branch
    %11 = sbr.rel (0) target = $region9
  $region8: #{stem_forward.15} parent=0 // pred_region
    _
  $region9: #{stem_forward.15} parent=0 // pred_fallthru
    _
  // Predicated region
  $region10: #{stem_forward.15} parent=0 // pred_check
    _
  $region11: #{stem_forward.15} parent=0 // pred_check_branch
    %13 = sbr.rel (0) target = $region13
  $region12: #{stem_forward.15} parent=0 // pred_region
    _
  $region13: #{stem_forward.15} parent=0 // pred_fallthru
    _
  %v15 = vld [vmem:[%s0] sm:$0xff]
  %v16 = vld [vmem:[%s0 + $0x8] sm:$0xff]
  %v17 = vld [vmem:[%s0 + $0x10] sm:$0xf]
  %v18 = vld [vmem:[%s0 + $0x14] sm:$0xff]
  %v19 = vld [vmem:[%s0 + $0x1c] sm:$0xff]
  %v20 = vld [vmem:[%s0 + $0x24] sm:$0xf]
  %v21 = vld [vmem:[%s0 + $0x28] sm:$0xff]
  %v22 = vld [vmem:[%s0 + $0x30] sm:$0xff]
  %v23 = vld [vmem:[%s0 + $0x38] sm:$0xf]
  %v24 = vld [vmem:[%s0 + $0x3c] sm:$0xff]
  %v25 = vld [vmem:[%s0 + $0x44] sm:$0xff]
  %v26 = vld [vmem:[%s0 + $0x4c] sm:$0xf]
  %v27 = vld [vmem:[%s1] sm:$0xf]
  %v28 = vld [vmem:[%s1 + $0x4] sm:$0xf]
  %v29 = vld [vmem:[%s1 + $0x8] sm:$0xf]
  %v30 = vld [vmem:[%s1 + $0xc] sm:$0xf]
  %v31 = vld [vmem:[%s1 + $0x10] sm:$0xf]
  %v32 = vld [vmem:[%s1 + $0x14] sm:$0xf]
  %v33 = vld [vmem:[%s1 + $0x18] sm:$0xf]
  %v34 = vld [vmem:[%s1 + $0x1c] sm:$0xf]
  %v35 = vld [vmem:[%s1 + $0x20] sm:$0xf]
  %v36 = vld [vmem:[%s1 + $0x24] sm:$0xf]
  %v37 = vld [vmem:[%s1 + $0x28] sm:$0xf]
  %v38 = vld [vmem:[%s1 + $0x2c] sm:$0xf]
  %v39 = vld [vmem:[%s1 + $0x30] sm:$0xf]
  %v40 = vld [vmem:[%s1 + $0x34] sm:$0xf]
  %v41 = vld [vmem:[%s1 + $0x38] sm:$0xf]
  %v42 = vld [vmem:[%s1 + $0x3c] sm:$0xf]
  %v43 = vld [vmem:[%s1 + $0x40] sm:$0xf]
  %v44 = vld [vmem:[%s1 + $0x44] sm:$0xf]
  %v45 = vld [vmem:[%s1 + $0x48] sm:$0xf]
  %v46 = vld [vmem:[%s1 + $0x4c] sm:$0xf]
  %v47 = vld [vmem:[%s1 + $0x50] sm:$0xf]
  %v48 = vld [vmem:[%s1 + $0x54] sm:$0xf]
  %v49 = vld [vmem:[%s1 + $0x58] sm:$0xf]
  %v50 = vld [vmem:[%s1 + $0x5c] sm:$0xf]
  %v51 = vld [vmem:[%s1 + $0x60] sm:$0xf]
  %v52 = vld [vmem:[%s1 + $0x64] sm:$0xf]
  %v53 = vld [vmem:[%s1 + $0x68] sm:$0xf]
  %v54 = vld [vmem:[%s1 + $0x6c] sm:$0xf]
  %v55 = vld [vmem:[%s1 + $0x70] sm:$0xf]
  %v56 = vld [vmem:[%s1 + $0x74] sm:$0xf]
  %v57 = vld [vmem:[%s1 + $0x78] sm:$0xf]
  %v58 = vld [vmem:[%s1 + $0x7c] sm:$0xf]
  %v59 = vld [vmem:[%s1 + $0x80] sm:$0xf]
  %v60 = vld [vmem:[%s1 + $0x84] sm:$0xf]
  %v61 = vld [vmem:[%s1 + $0x88] sm:$0xf]
  %v62 = vld [vmem:[%s1 + $0x8c] sm:$0xf]
  %v63 = vld [vmem:[%s1 + $0x90] sm:$0xf]
  %v64 = vld [vmem:[%s1 + $0x94] sm:$0xf]
  %v65 = vld [vmem:[%s1 + $0x98] sm:$0xf]
  %v66 = vld [vmem:[%s1 + $0x9c] sm:$0xf]
  %v67 = vld [vmem:[%s1 + $0xa0] sm:$0xf]
  %v68 = vld [vmem:[%s1 + $0xa4] sm:$0xf]
  %v69 = vld [vmem:[%s1 + $0xa8] sm:$0xf]
  %v70 = vld [vmem:[%s1 + $0xac] sm:$0xf]
  %v71 = vld [vmem:[%s1 + $0xb0] sm:$0xf]
  %v72 = vld [vmem:[%s1 + $0xb4] sm:$0xf]
  %v73 = vld [vmem:[%s1 + $0xb8] sm:$0xf]
  %v74 = vld [vmem:[%s1 + $0xbc] sm:$0xf]
  %v75 = vld [vmem:[%s1 + $0xc0] sm:$0xf]
  %v76 = vld [vmem:[%s1 + $0xc4] sm:$0xf]
  %v77 = vld [vmem:[%s1 + $0xc8] sm:$0xf]
  %v78 = vld [vmem:[%s1 + $0xcc] sm:$0xf]
  %v79 = vld [vmem:[%s1 + $0xd0] sm:$0xf]
  %v80 = vld [vmem:[%s1 + $0xd4] sm:$0xf]
  %v81 = vld [vmem:[%s1 + $0xd8] sm:$0xf]
  %v82 = vld [vmem:[%s1 + $0xdc] sm:$0xf]
  %v83 = vld [vmem:[%s1 + $0xe0] sm:$0xf]
  %v84 = vld [vmem:[%s1 + $0xe4] sm:$0xf]
  %v85 = vld [vmem:[%s1 + $0xe8] sm:$0xf]
  %v86 = vld [vmem:[%s1 + $0xec] sm:$0xf]
  %v87 = vld [vmem:[%s1 + $0xf0] sm:$0xf]
  %v88 = vld [vmem:[%s1 + $0xf4] sm:$0xf]
  %v89 = vld [vmem:[%s1 + $0xf8] sm:$0xf]
  %v90 = vld [vmem:[%s1 + $0xfc] sm:$0xf]
  %v91 = vld [vmem:[%s1 + $0x100] sm:$0xf]
  %v92 = vld [vmem:[%s1 + $0x104] sm:$0xf]
  %v93 = vld [vmem:[%s1 + $0x108] sm:$0xf]
  %v94 = vld [vmem:[%s1 + $0x10c] sm:$0xf]
  %v95 = vld [vmem:[%s1 + $0x110] sm:$0xf]
  %v96 = vld [vmem:[%s1 + $0x114] sm:$0xf]
  %v97 = vld [vmem:[%s1 + $0x118] sm:$0xf]
  %v98 = vld [vmem:[%s1 + $0x11c] sm:$0xf]
  %v99 = vld [vmem:[%s2] sm:$0x1]
  %v101 = vlaneseq
  %v102 = vshrl.u32 %v101, 7
  %v103 = vsub.s32 0, %v102
  %v104 = vrot.slane %v99, %v103
  %v118 = vunpack.c.l.b16 %v15
  %v119 = vunpack.c.h.b16 %v15
  %v120 = vunpack.c.l.b16 %v16
  %v121 = vunpack.c.h.b16 %v16
  %v122 = vunpack.c.l.b16 %v17
  %v123 = vunpack.c.l.b16 %v18
  %v124 = vunpack.c.h.b16 %v18
  %v125 = vunpack.c.l.b16 %v19
  %v126 = vunpack.c.h.b16 %v19
  %v127 = vunpack.c.l.b16 %v20
  %v128 = vunpack.c.l.b16 %v21
  %v129 = vunpack.c.h.b16 %v21
  %v130 = vunpack.c.l.b16 %v22
  %v131 = vunpack.c.h.b16 %v22
  %v132 = vunpack.c.l.b16 %v23
  %v133 = vunpack.c.l.b16 %v24
  %v134 = vunpack.c.h.b16 %v24
  %v135 = vunpack.c.l.b16 %v25
  %v136 = vunpack.c.h.b16 %v25
  %v137 = vunpack.c.l.b16 %v26
  %v138 = vpack.c.b16 %v123, %v118
  %v139 = vpack.c.b16 %v124, %v119
  %v140 = vpack.c.b16 %v125, %v120
  %v141 = vpack.c.b16 %v126, %v121
  %v142 = vpack.c.b16 %v127, %v122
  %v143 = vpack.c.b16 %v133, %v128
  %v144 = vpack.c.b16 %v134, %v129
  %v145 = vpack.c.b16 %v135, %v130
  %v146 = vpack.c.b16 %v136, %v131
  %v147 = vpack.c.b16 %v137, %v132
  %v228 = vunpack.c.l.b16 %v27
  %v229 = vunpack.c.l.b16 %v28
  %v230 = vunpack.c.l.b16 %v29
  %v231 = vunpack.c.l.b16 %v30
  %v232 = vunpack.c.l.b16 %v31
  %v233 = vunpack.c.l.b16 %v32
  %v234 = vunpack.c.l.b16 %v33
  %v235 = vunpack.c.l.b16 %v34
  %v236 = vunpack.c.l.b16 %v35
  %v237 = vunpack.c.l.b16 %v36
  %v238 = vunpack.c.l.b16 %v37
  %v239 = vunpack.c.l.b16 %v38
  %v240 = vunpack.c.l.b16 %v39
  %v241 = vunpack.c.l.b16 %v40
  %v242 = vunpack.c.l.b16 %v41
  %v243 = vunpack.c.l.b16 %v42
  %v244 = vunpack.c.l.b16 %v43
  %v245 = vunpack.c.l.b16 %v44
  %v246 = vunpack.c.l.b16 %v45
  %v247 = vunpack.c.l.b16 %v46
  %v248 = vunpack.c.l.b16 %v47
  %v249 = vunpack.c.l.b16 %v48
  %v250 = vunpack.c.l.b16 %v49
  %v251 = vunpack.c.l.b16 %v50
  %v252 = vunpack.c.l.b16 %v51
  %v253 = vunpack.c.l.b16 %v52
  %v254 = vunpack.c.l.b16 %v53
  %v255 = vunpack.c.l.b16 %v54
  %v256 = vunpack.c.l.b16 %v55
  %v257 = vunpack.c.l.b16 %v56
  %v258 = vunpack.c.l.b16 %v57
  %v259 = vunpack.c.l.b16 %v58
  %v260 = vunpack.c.l.b16 %v59
  %v261 = vunpack.c.l.b16 %v60
  %v262 = vunpack.c.l.b16 %v61
  %v263 = vunpack.c.l.b16 %v62
  %v264 = vunpack.c.l.b16 %v63
  %v265 = vunpack.c.l.b16 %v64
  %v266 = vunpack.c.l.b16 %v65
  %v267 = vunpack.c.l.b16 %v66
  %v268 = vunpack.c.l.b16 %v67
  %v269 = vunpack.c.l.b16 %v68
  %v270 = vunpack.c.l.b16 %v69
  %v271 = vunpack.c.l.b16 %v70
  %v272 = vunpack.c.l.b16 %v71
  %v273 = vunpack.c.l.b16 %v72
  %v274 = vunpack.c.l.b16 %v73
  %v275 = vunpack.c.l.b16 %v74
  %v276 = vunpack.c.l.b16 %v75
  %v277 = vunpack.c.l.b16 %v76
  %v278 = vunpack.c.l.b16 %v77
  %v279 = vunpack.c.l.b16 %v78
  %v280 = vunpack.c.l.b16 %v79
  %v281 = vunpack.c.l.b16 %v80
  %v282 = vunpack.c.l.b16 %v81
  %v283 = vunpack.c.l.b16 %v82
  %v284 = vunpack.c.l.b16 %v83
  %v285 = vunpack.c.l.b16 %v84
  %v286 = vunpack.c.l.b16 %v85
  %v287 = vunpack.c.l.b16 %v86
  %v288 = vunpack.c.l.b16 %v87
  %v289 = vunpack.c.l.b16 %v88
  %v290 = vunpack.c.l.b16 %v89
  %v291 = vunpack.c.l.b16 %v90
  %v292 = vunpack.c.l.b16 %v91
  %v293 = vunpack.c.l.b16 %v92
  %v294 = vunpack.c.l.b16 %v93
  %v295 = vunpack.c.l.b16 %v94
  %v296 = vunpack.c.l.b16 %v95
  %v297 = vunpack.c.l.b16 %v96
  %v298 = vunpack.c.l.b16 %v97
  %v299 = vunpack.c.l.b16 %v98
  %v300 = vpack.c.b16 %v229, %v228
  %v301 = vpack.c.b16 %v231, %v230
  %v302 = vpack.c.b16 %v233, %v232
  %v303 = vpack.c.b16 %v235, %v234
  %v304 = vpack.c.b16 %v237, %v236
  %v305 = vpack.c.b16 %v239, %v238
  %v306 = vpack.c.b16 %v241, %v240
  %v307 = vpack.c.b16 %v243, %v242
  %v308 = vpack.c.b16 %v245, %v244
  %v309 = vpack.c.b16 %v247, %v246
  %v310 = vpack.c.b16 %v249, %v248
  %v311 = vpack.c.b16 %v251, %v250
  %v312 = vpack.c.b16 %v253, %v252
  %v313 = vpack.c.b16 %v255, %v254
  %v314 = vpack.c.b16 %v257, %v256
  %v315 = vpack.c.b16 %v259, %v258
  %v316 = vpack.c.b16 %v261, %v260
  %v317 = vpack.c.b16 %v263, %v262
  %v318 = vpack.c.b16 %v265, %v264
  %v319 = vpack.c.b16 %v267, %v266
  %v320 = vpack.c.b16 %v269, %v268
  %v321 = vpack.c.b16 %v271, %v270
  %v322 = vpack.c.b16 %v273, %v272
  %v323 = vpack.c.b16 %v275, %v274
  %v324 = vpack.c.b16 %v277, %v276
  %v325 = vpack.c.b16 %v279, %v278
  %v326 = vpack.c.b16 %v281, %v280
  %v327 = vpack.c.b16 %v283, %v282
  %v328 = vpack.c.b16 %v285, %v284
  %v329 = vpack.c.b16 %v287, %v286
  %v330 = vpack.c.b16 %v289, %v288
  %v331 = vpack.c.b16 %v291, %v290
  %v332 = vpack.c.b16 %v293, %v292
  %v333 = vpack.c.b16 %v295, %v294
  %v334 = vpack.c.b16 %v297, %v296
  %v335 = vpack.c.b16 %v299, %v298
  %vm372 = vcmask 523264
  %v374 = vsel %vm372, %v142, 0
  %v377 = vsel %vm372, %v147, 0
  %379 = vmatprep.subr.bf16.mxu0 0
  %380 = vmatpush1.bf16.msra.mxu0 %v300
  %381 = vmatprep.subr.bf16.mxu0 0
  %382 = vmatpush1.bf16.msra.mxu0 %v301
  %383 = vmatprep.subr.bf16.mxu0 0
  %384 = vmatpush1.bf16.msra.mxu0 %v302
  %385 = vmatprep.subr.bf16.mxu0 0
  %386 = vmatpush1.bf16.msra.mxu0 %v303
  %387 = vmatprep.subr.bf16.mxu0 0
  %388 = vmatpush1.bf16.msra.mxu0 %v304
  %389 = vmatprep.subr.bf16.mxu0 0
  %390 = vmatpush1.bf16.msra.mxu0 %v305
  %391 = vmatprep.subr.bf16.mxu0 0
  %392 = vmatpush1.bf16.msra.mxu0 %v306
  %393 = vmatprep.subr.bf16.mxu0 0
  %394 = vmatpush1.bf16.msra.mxu0 %v307
  %395 = vmatprep.subr.bf16.mxu0 0
  %396 = vmatpush1.bf16.msra.mxu0 %v308
  %397 = vmatprep.subr.bf16.mxu0 0
  %398 = vmatpush1.bf16.msra.mxu0 %v309
  %399 = vmatprep.subr.bf16.mxu0 0
  %400 = vmatpush1.bf16.msra.mxu0 %v310
  %401 = vmatprep.subr.bf16.mxu0 0
  %402 = vmatpush1.bf16.msra.mxu0 %v311
  %403 = vmatprep.subr.bf16.mxu0 0
  %404 = vmatpush1.bf16.msra.mxu0 %v312
  %405 = vmatprep.subr.bf16.mxu0 0
  %406 = vmatpush1.bf16.msra.mxu0 %v313
  %407 = vmatprep.subr.bf16.mxu0 0
  %408 = vmatpush1.bf16.msra.mxu0 %v314
  %409 = vmatprep.subr.bf16.mxu0 0
  %410 = vmatpush1.bf16.msra.mxu0 %v315
  %411 = vmatprep.mubr.bf16.mxu0 %v139
  %412 = vmatmul.mubr.bf16.gmra.mrb[0].mxu0 %v138
  %v413 = vpop.f32.mrb[0].mxu0
  %v414 = vadd.f32 %v104, %v413
  %v415 = vpop.f32.mrb[0].mxu0
  %v416 = vpop.f32.mrb[0].mxu0
  %v417 = vadd.f32 %v104, %v416
  %v418 = vpop.f32.mrb[0].mxu0
  %419 = vmatprep.mubr.bf16.mxu0 %v144
  %420 = vmatmul.mubr.bf16.gmra.mrb[0].mxu0 %v143
  %v421 = vpop.f32.mrb[0].mxu0
  %v422 = vadd.f32 %v104, %v421
  %v423 = vpop.f32.mrb[0].mxu0
  %v424 = vpop.f32.mrb[0].mxu0
  %v425 = vadd.f32 %v104, %v424
  %v426 = vpop.f32.mrb[0].mxu0
  %427 = vdwg.mxu0
  %428 = vmatprep.subr.bf16.mxu0 0
  %429 = vmatpush1.bf16.msra.mxu0 %v316
  %430 = vmatprep.subr.bf16.mxu0 0
  %431 = vmatpush1.bf16.msra.mxu0 %v317
  %432 = vmatprep.subr.bf16.mxu0 0
  %433 = vmatpush1.bf16.msra.mxu0 %v318
  %434 = vmatprep.subr.bf16.mxu0 0
  %435 = vmatpush1.bf16.msra.mxu0 %v319
  %436 = vmatprep.subr.bf16.mxu0 0
  %437 = vmatpush1.bf16.msra.mxu0 %v320
  %438 = vmatprep.subr.bf16.mxu0 0
  %439 = vmatpush1.bf16.msra.mxu0 %v321
  %440 = vmatprep.subr.bf16.mxu0 0
  %441 = vmatpush1.bf16.msra.mxu0 %v322
  %442 = vmatprep.subr.bf16.mxu0 0
  %443 = vmatpush1.bf16.msra.mxu0 %v323
  %444 = vmatprep.subr.bf16.mxu0 0
  %445 = vmatpush1.bf16.msra.mxu0 %v324
  %446 = vmatprep.subr.bf16.mxu0 0
  %447 = vmatpush1.bf16.msra.mxu0 %v325
  %448 = vmatprep.subr.bf16.mxu0 0
  %449 = vmatpush1.bf16.msra.mxu0 %v326
  %450 = vmatprep.subr.bf16.mxu0 0
  %451 = vmatpush1.bf16.msra.mxu0 %v327
  %452 = vmatprep.subr.bf16.mxu0 0
  %453 = vmatpush1.bf16.msra.mxu0 %v328
  %454 = vmatprep.subr.bf16.mxu0 0
  %455 = vmatpush1.bf16.msra.mxu0 %v329
  %456 = vmatprep.subr.bf16.mxu0 0
  %457 = vmatpush1.bf16.msra.mxu0 %v330
  %458 = vmatprep.subr.bf16.mxu0 0
  %459 = vmatpush1.bf16.msra.mxu0 %v331
  %460 = vmatprep.mubr.bf16.mxu0 %v141
  %461 = vmatmul.mubr.bf16.gmra.mrb[0].mxu0 %v140
  %v462 = vpop.f32.mrb[0].mxu0
  %v463 = vadd.f32 %v414, %v462
  %v464 = vpop.f32.mrb[0].mxu0
  %v465 = vpop.f32.mrb[0].mxu0
  %v466 = vadd.f32 %v417, %v465
  %v467 = vpop.f32.mrb[0].mxu0
  %468 = vmatprep.mubr.bf16.mxu0 %v146
  %469 = vmatmul.mubr.bf16.gmra.mrb[0].mxu0 %v145
  %v470 = vpop.f32.mrb[0].mxu0
  %v471 = vadd.f32 %v422, %v470
  %v472 = vpop.f32.mrb[0].mxu0
  %v473 = vpop.f32.mrb[0].mxu0
  %v474 = vadd.f32 %v425, %v473
  %v475 = vpop.f32.mrb[0].mxu0
  %476 = vdwg.mxu0
  %477 = vmatprep.subr.bf16.mxu0 0
  %478 = vmatpush1.bf16.msra.mxu0 %v332
  %479 = vmatprep.subr.bf16.mxu0 0
  %480 = vmatpush1.bf16.msra.mxu0 %v333
  %481 = vmatprep.subr.bf16.mxu0 0
  %482 = vmatpush1.bf16.msra.mxu0 %v334
  %483 = vmatprep.subr.bf16.mxu0 0
  %484 = vmatpush1.bf16.msra.mxu0 %v335
  %485 = vmatprep.subr.bf16.mxu0 0
  %486 = vmatpush1.bf16.msra.mxu0 0
  %487 = vmatprep.subr.bf16.mxu0 0
  %488 = vmatpush1.bf16.msra.mxu0 0
  %489 = vmatprep.subr.bf16.mxu0 0
  %490 = vmatpush1.bf16.msra.mxu0 0
  %491 = vmatprep.subr.bf16.mxu0 0
  %492 = vmatpush1.bf16.msra.mxu0 0
  %493 = vmatprep.subr.bf16.mxu0 0
  %494 = vmatpush1.bf16.msra.mxu0 0
  %495 = vmatprep.subr.bf16.mxu0 0
  %496 = vmatpush1.bf16.msra.mxu0 0
  %497 = vmatprep.subr.bf16.mxu0 0
  %498 = vmatpush1.bf16.msra.mxu0 0
  %499 = vmatprep.subr.bf16.mxu0 0
  %500 = vmatpush1.bf16.msra.mxu0 0
  %501 = vmatprep.subr.bf16.mxu0 0
  %502 = vmatpush1.bf16.msra.mxu0 0
  %503 = vmatprep.subr.bf16.mxu0 0
  %504 = vmatpush1.bf16.msra.mxu0 0
  %505 = vmatprep.subr.bf16.mxu0 0
  %506 = vmatpush1.bf16.msra.mxu0 0
  %507 = vmatprep.subr.bf16.mxu0 0
  %508 = vmatpush1.bf16.msra.mxu0 0
  %509 = vmatprep.mubr.bf16.mxu0 0
  %510 = vmatmul.mubr.bf16.gmra.mrb[0].mxu0 %v374
  %v511 = vpop.f32.mrb[0].mxu0
  %v512 = vadd.f32 %v463, %v511
  %v513 = vpop.f32.mrb[0].mxu0
  %v514 = vpop.f32.mrb[0].mxu0
  %v515 = vadd.f32 %v466, %v514
  %v516 = vpop.f32.mrb[0].mxu0
  %517 = vmatprep.mubr.bf16.mxu0 0
  %518 = vmatmul.mubr.bf16.gmra.mrb[0].mxu0 %v377
  %v519 = vpop.f32.mrb[0].mxu0
  %v520 = vadd.f32 %v471, %v519
  %v521 = vpop.f32.mrb[0].mxu0
  %v522 = vpop.f32.mrb[0].mxu0
  %v523 = vadd.f32 %v474, %v522
  %v524 = vpop.f32.mrb[0].mxu0
  %525 = vdwg.mxu0
  %v526 = vmax.f32 %v512, 0.0
  %v527 = vmax.f32 %v515, 0.0
  %v528 = vmax.f32 %v520, 0.0
  %v529 = vmax.f32 %v523, 0.0
  %vm530 = vcmask 785408
  %531 = vst.msk [vmem:[%s3] sm:$0xff] %vm530, %v526
  %532 = vst.msk [vmem:[%s3 + $0x8] sm:$0xff] %vm530, %v527
  %533 = vst.msk [vmem:[%s3 + $0x10] sm:$0xff] %vm530, %v528
  %534 = vst.msk [vmem:[%s3 + $0x18] sm:$0xff] %vm530, %v529
  // Predicated region
  $region14: #{stem_forward.15} parent=0 // pred_check
    _
  $region15: #{stem_forward.15} parent=0 // pred_check_branch
    %536 = sbr.rel (0) target = $region17
  $region16: #{stem_forward.15} parent=0 // pred_region
    _
  $region17: #{stem_forward.15} parent=0 // pred_fallthru
    _
  // Predicated region
  $region18: #{stem_forward.15} parent=0 // pred_check
    _
  $region19: #{stem_forward.15} parent=0 // pred_check_branch
    %538 = sbr.rel (0) target = $region21
  $region20: #{stem_forward.15} parent=0 // pred_region
    _
  $region21: #{stem_forward.15} parent=0 // pred_fallthru
    _

// kernel: stem_forward.16
$region0: #{stem_forward.16}
  #allocation0 [shape = 'u32[]', space=smem, size = 0x4, offset = 0x4, fixed_abs, tag = 'smem constant byte address 0x4 - core index']
  #allocation1 [shape = 'u32[144,128]{1,0:T(1,128)}', space=vmem, size = 0x12000, scoped, tag = 'internal scratch']
  %s0 = inlined_call_operand.vmem [shape: bf16[72,448], index: 0, kind: input, shape index: {}]
  %s1 = inlined_call_operand.vmem [shape: bf16[448,64], index: 1, kind: input, shape index: {}]
  %s2 = inlined_call_operand.vmem [shape: f32[1,64], index: 2, kind: input, shape index: {}]
  %s3 = inlined_call_operand.vmem [shape: f32[72,64], index: 3, kind: output, shape index: {}]
  %s4 = sld [smem:[#allocation0]]
  $region22: #{stem_forward.16} parent=0
    _
  %s6 = ssub.s32 1, %s4
  %s7 = scalar_select 0, %s6, %s4
  // Predicated region
  $region2: #{stem_forward.16} parent=0 // pred_check
    _
  $region3: #{stem_forward.16} parent=0 // pred_check_branch
    %9 = sbr.rel (0) target = $region5
  $region4: #{stem_forward.16} parent=0 // pred_region
    _
  $region5: #{stem_forward.16} parent=0 // pred_fallthru
    _
  // Predicated region
  $region6: #{stem_forward.16} parent=0 // pred_check
    _
  $region7: #{stem_forward.16} parent=0 // pred_check_branch
    %11 = sbr.rel (0) target = $region9
  $region8: #{stem_forward.16} parent=0 // pred_region
    _
  $region9: #{stem_forward.16} parent=0 // pred_fallthru
    _
  // Predicated region
  $region10: #{stem_forward.16} parent=0 // pred_check
    _
  $region11: #{stem_forward.16} parent=0 // pred_check_branch
    %13 = sbr.rel (0) target = $region13
  $region12: #{stem_forward.16} parent=0 // pred_region
    _
  $region13: #{stem_forward.16} parent=0 // pred_fallthru
    _
  %v15 = vld [vmem:[%s0] sm:$0xff]
  %v16 = vld [vmem:[%s0 + $0x8] sm:$0xff]
  %v17 = vld [vmem:[%s0 + $0x10] sm:$0xff]
  %v18 = vld [vmem:[%s0 + $0x18] sm:$0xff]
  %v19 = vld [vmem:[%s0 + $0x20] sm:$0xff]
  %v20 = vld [vmem:[%s0 + $0x28] sm:$0xff]
  %v21 = vld [vmem:[%s0 + $0x30] sm:$0xff]
  %v22 = vld [vmem:[%s0 + $0x38] sm:$0xff]
  %v23 = vld [vmem:[%s0 + $0x40] sm:$0xff]
  %v24 = vld [vmem:[%s0 + $0x48] sm:$0xff]
  %v25 = vld [vmem:[%s0 + $0x50] sm:$0xff]
  %v26 = vld [vmem:[%s0 + $0x58] sm:$0xff]
  %v27 = vld [vmem:[%s0 + $0x60] sm:$0xff]
  %v28 = vld [vmem:[%s0 + $0x68] sm:$0xff]
  %v29 = vld [vmem:[%s0 + $0x70] sm:$0xff]
  %v30 = vld [vmem:[%s0 + $0x78] sm:$0xff]
  %v31 = vld [vmem:[%s0 + $0x80] sm:$0xff]
  %v32 = vld [vmem:[%s0 + $0x88] sm:$0xff]
  %v33 = vld [vmem:[%s1] sm:$0xf]
  %v34 = vld [vmem:[%s1 + $0x4] sm:$0xf]
  %v35 = vld [vmem:[%s1 + $0x8] sm:$0xf]
  %v36 = vld [vmem:[%s1 + $0xc] sm:$0xf]
  %v37 = vld [vmem:[%s1 + $0x10] sm:$0xf]
  %v38 = vld [vmem:[%s1 + $0x14] sm:$0xf]
  %v39 = vld [vmem:[%s1 + $0x18] sm:$0xf]
  %v40 = vld [vmem:[%s1 + $0x1c] sm:$0xf]
  %v41 = vld [vmem:[%s1 + $0x20] sm:$0xf]
  %v42 = vld [vmem:[%s1 + $0x24] sm:$0xf]
  %v43 = vld [vmem:[%s1 + $0x28] sm:$0xf]
  %v44 = vld [vmem:[%s1 + $0x2c] sm:$0xf]
  %v45 = vld [vmem:[%s1 + $0x30] sm:$0xf]
  %v46 = vld [vmem:[%s1 + $0x34] sm:$0xf]
  %v47 = vld [vmem:[%s1 + $0x38] sm:$0xf]
  %v48 = vld [vmem:[%s1 + $0x3c] sm:$0xf]
  %v49 = vld [vmem:[%s1 + $0x40] sm:$0xf]
  %v50 = vld [vmem:[%s1 + $0x44] sm:$0xf]
  %v51 = vld [vmem:[%s1 + $0x48] sm:$0xf]
  %v52 = vld [vmem:[%s1 + $0x4c] sm:$0xf]
  %v53 = vld [vmem:[%s1 + $0x50] sm:$0xf]
  %v54 = vld [vmem:[%s1 + $0x54] sm:$0xf]
  %v55 = vld [vmem:[%s1 + $0x58] sm:$0xf]
  %v56 = vld [vmem:[%s1 + $0x5c] sm:$0xf]
  %v57 = vld [vmem:[%s1 + $0x60] sm:$0xf]
  %v58 = vld [vmem:[%s1 + $0x64] sm:$0xf]
  %v59 = vld [vmem:[%s1 + $0x68] sm:$0xf]
  %v60 = vld [vmem:[%s1 + $0x6c] sm:$0xf]
  %v61 = vld [vmem:[%s1 + $0x70] sm:$0xf]
  %v62 = vld [vmem:[%s1 + $0x74] sm:$0xf]
  %v63 = vld [vmem:[%s1 + $0x78] sm:$0xf]
  %v64 = vld [vmem:[%s1 + $0x7c] sm:$0xf]
  %v65 = vld [vmem:[%s1 + $0x80] sm:$0xf]
  %v66 = vld [vmem:[%s1 + $0x84] sm:$0xf]
  %v67 = vld [vmem:[%s1 + $0x88] sm:$0xf]
  %v68 = vld [vmem:[%s1 + $0x8c] sm:$0xf]
  %v69 = vld [vmem:[%s1 + $0x90] sm:$0xf]
  %v70 = vld [vmem:[%s1 + $0x94] sm:$0xf]
  %v71 = vld [vmem:[%s1 + $0x98] sm:$0xf]
  %v72 = vld [vmem:[%s1 + $0x9c] sm:$0xf]
  %v73 = vld [vmem:[%s1 + $0xa0] sm:$0xf]
  %v74 = vld [vmem:[%s1 + $0xa4] sm:$0xf]
  %v75 = vld [vmem:[%s1 + $0xa8] sm:$0xf]
  %v76 = vld [vmem:[%s1 + $0xac] sm:$0xf]
  %v77 = vld [vmem:[%s1 + $0xb0] sm:$0xf]
  %v78 = vld [vmem:[%s1 + $0xb4] sm:$0xf]
  %v79 = vld [vmem:[%s1 + $0xb8] sm:$0xf]
  %v80 = vld [vmem:[%s1 + $0xbc] sm:$0xf]
  %v81 = vld [vmem:[%s1 + $0xc0] sm:$0xf]
  %v82 = vld [vmem:[%s1 + $0xc4] sm:$0xf]
  %v83 = vld [vmem:[%s1 + $0xc8] sm:$0xf]
  %v84 = vld [vmem:[%s1 + $0xcc] sm:$0xf]
  %v85 = vld [vmem:[%s1 + $0xd0] sm:$0xf]
  %v86 = vld [vmem:[%s1 + $0xd4] sm:$0xf]
  %v87 = vld [vmem:[%s1 + $0xd8] sm:$0xf]
  %v88 = vld [vmem:[%s1 + $0xdc] sm:$0xf]
  %v89 = vld [vmem:[%s2] sm:$0x1]
  %v91 = vlaneseq
  %v92 = vshrl.u32 %v91, 7
  %v93 = vsub.s32 0, %v92
  %v94 = vrot.slane %v89, %v93
  %v114 = vunpack.c.l.b16 %v15
  %v115 = vunpack.c.h.b16 %v15
  %v116 = vunpack.c.l.b16 %v16
  %v117 = vunpack.c.h.b16 %v16
  %v118 = vunpack.c.l.b16 %v17
  %v119 = vunpack.c.h.b16 %v17
  %v120 = vunpack.c.l.b16 %v18
  %v121 = vunpack.c.h.b16 %v18
  %v122 = vunpack.c.l.b16 %v19
  %v123 = vunpack.c.h.b16 %v19
  %v124 = vunpack.c.l.b16 %v20
  %v125 = vunpack.c.h.b16 %v20
  %v126 = vunpack.c.l.b16 %v21
  %v127 = vunpack.c.h.b16 %v21
  %v128 = vunpack.c.l.b16 %v22
  %v129 = vunpack.c.h.b16 %v22
  %v130 = vunpack.c.l.b16 %v23
  %v131 = vunpack.c.h.b16 %v23
  %v132 = vunpack.c.l.b16 %v24
  %v133 = vunpack.c.h.b16 %v24
  %v134 = vunpack.c.l.b16 %v25
  %v135 = vunpack.c.h.b16 %v25
  %v136 = vunpack.c.l.b16 %v26
  %v137 = vunpack.c.h.b16 %v26
  %v138 = vunpack.c.l.b16 %v27
  %v139 = vunpack.c.h.b16 %v27
  %v140 = vunpack.c.l.b16 %v28
  %v141 = vunpack.c.h.b16 %v28
  %v142 = vunpack.c.l.b16 %v29
  %v143 = vunpack.c.h.b16 %v29
  %v144 = vunpack.c.l.b16 %v30
  %v145 = vunpack.c.h.b16 %v30
  %v146 = vunpack.c.l.b16 %v31
  %v147 = vunpack.c.h.b16 %v31
  %v148 = vunpack.c.l.b16 %v32
  %v149 = vunpack.c.h.b16 %v32
  %v150 = vpack.c.b16 %v118, %v114
  %v151 = vpack.c.b16 %v119, %v115
  %v152 = vpack.c.b16 %v120, %v116
  %v153 = vpack.c.b16 %v121, %v117
  %v154 = vpack.c.b16 %v126, %v122
  %v155 = vpack.c.b16 %v127, %v123
  %v156 = vpack.c.b16 %v128, %v124
  %v157 = vpack.c.b16 %v129, %v125
  %v158 = vpack.c.b16 %v134, %v130
  %v159 = vpack.c.b16 %v135, %v131
  %v160 = vpack.c.b16 %v136, %v132
  %v161 = vpack.c.b16 %v137, %v133
  %v162 = vpack.c.b16 %v142, %v138
  %v163 = vpack.c.b16 %v143, %v139
  %v164 = vpack.c.b16 %v144, %v140
  %v165 = vpack.c.b16 %v145, %v141
  %v166 = vpack.c.b16 %v146, %v146
  %v167 = vpack.c.b16 %v147, %v147
  %v168 = vpack.c.b16 %v148, %v148
  %v169 = vpack.c.b16 %v149, %v149
  %v241 = vunpack.c.l.b16 %v33
  %v242 = vunpack.c.l.b16 %v34
  %v243 = vunpack.c.l.b16 %v35
  %v244 = vunpack.c.l.b16 %v36
  %v245 = vunpack.c.l.b16 %v37
  %v246 = vunpack.c.l.b16 %v38
  %v247 = vunpack.c.l.b16 %v39
  %v248 = vunpack.c.l.b16 %v40
  %v249 = vunpack.c.l.b16 %v41
  %v250 = vunpack.c.l.b16 %v42
  %v251 = vunpack.c.l.b16 %v43
  %v252 = vunpack.c.l.b16 %v44
  %v253 = vunpack.c.l.b16 %v45
  %v254 = vunpack.c.l.b16 %v46
  %v255 = vunpack.c.l.b16 %v47
  %v256 = vunpack.c.l.b16 %v48
  %v257 = vunpack.c.l.b16 %v49
  %v258 = vunpack.c.l.b16 %v50
  %v259 = vunpack.c.l.b16 %v51
  %v260 = vunpack.c.l.b16 %v52
  %v261 = vunpack.c.l.b16 %v53
  %v262 = vunpack.c.l.b16 %v54
  %v263 = vunpack.c.l.b16 %v55
  %v264 = vunpack.c.l.b16 %v56
  %v265 = vunpack.c.l.b16 %v57
  %v266 = vunpack.c.l.b16 %v58
  %v267 = vunpack.c.l.b16 %v59
  %v268 = vunpack.c.l.b16 %v60
  %v269 = vunpack.c.l.b16 %v61
  %v270 = vunpack.c.l.b16 %v62
  %v271 = vunpack.c.l.b16 %v63
  %v272 = vunpack.c.l.b16 %v64
  %v273 = vunpack.c.l.b16 %v65
  %v274 = vunpack.c.l.b16 %v66
  %v275 = vunpack.c.l.b16 %v67
  %v276 = vunpack.c.l.b16 %v68
  %v277 = vunpack.c.l.b16 %v69
  %v278 = vunpack.c.l.b16 %v70
  %v279 = vunpack.c.l.b16 %v71
  %v280 = vunpack.c.l.b16 %v72
  %v281 = vunpack.c.l.b16 %v73
  %v282 = vunpack.c.l.b16 %v74
  %v283 = vunpack.c.l.b16 %v75
  %v284 = vunpack.c.l.b16 %v76
  %v285 = vunpack.c.l.b16 %v77
  %v286 = vunpack.c.l.b16 %v78
  %v287 = vunpack.c.l.b16 %v79
  %v288 = vunpack.c.l.b16 %v80
  %v289 = vunpack.c.l.b16 %v81
  %v290 = vunpack.c.l.b16 %v82
  %v291 = vunpack.c.l.b16 %v83
  %v292 = vunpack.c.l.b16 %v84
  %v293 = vunpack.c.l.b16 %v85
  %v294 = vunpack.c.l.b16 %v86
  %v295 = vunpack.c.l.b16 %v87
  %v296 = vunpack.c.l.b16 %v88
  %v297 = vpack.c.b16 %v242, %v241
  %v298 = vpack.c.b16 %v244, %v243
  %v299 = vpack.c.b16 %v246, %v245
  %v300 = vpack.c.b16 %v248, %v247
  %v301 = vpack.c.b16 %v250, %v249
  %v302 = vpack.c.b16 %v252, %v251
  %v303 = vpack.c.b16 %v254, %v253
  %v304 = vpack.c.b16 %v256, %v255
  %v305 = vpack.c.b16 %v258, %v257
  %v306 = vpack.c.b16 %v260, %v259
  %v307 = vpack.c.b16 %v262, %v261
  %v308 = vpack.c.b16 %v264, %v263
  %v309 = vpack.c.b16 %v266, %v265
  %v310 = vpack.c.b16 %v268, %v267
  %v311 = vpack.c.b16 %v270, %v269
  %v312 = vpack.c.b16 %v272, %v271
  %v313 = vpack.c.b16 %v274, %v273
  %v314 = vpack.c.b16 %v276, %v275
  %v315 = vpack.c.b16 %v278, %v277
  %v316 = vpack.c.b16 %v280, %v279
  %v317 = vpack.c.b16 %v282, %v281
  %v318 = vpack.c.b16 %v284, %v283
  %v319 = vpack.c.b16 %v286, %v285
  %v320 = vpack.c.b16 %v288, %v287
  %v321 = vpack.c.b16 %v290, %v289
  %v322 = vpack.c.b16 %v292, %v291
  %v323 = vpack.c.b16 %v294, %v293
  %v324 = vpack.c.b16 %v296, %v295
  %vm353 = vcmask 523264
  %v355 = vsel %vm353, %v153, 0
  %v358 = vsel %vm353, %v157, 0
  %v361 = vsel %vm353, %v161, 0
  %v364 = vsel %vm353, %v165, 0
  %v367 = vsel %vm353, %v169, 0
  %369 = vmatprep.subr.bf16.mxu0 0
  %370 = vmatpush1.bf16.msra.mxu0 %v297
  %371 = vmatprep.subr.bf16.mxu0 0
  %372 = vmatpush1.bf16.msra.mxu0 %v298
  %373 = vmatprep.subr.bf16.mxu0 0
  %374 = vmatpush1.bf16.msra.mxu0 %v299
  %375 = vmatprep.subr.bf16.mxu0 0
  %376 = vmatpush1.bf16.msra.mxu0 %v300
  %377 = vmatprep.subr.bf16.mxu0 0
  %378 = vmatpush1.bf16.msra.mxu0 %v301
  %379 = vmatprep.subr.bf16.mxu0 0
  %380 = vmatpush1.bf16.msra.mxu0 %v302
  %381 = vmatprep.subr.bf16.mxu0 0
  %382 = vmatpush1.bf16.msra.mxu0 %v303
  %383 = vmatprep.subr.bf16.mxu0 0
  %384 = vmatpush1.bf16.msra.mxu0 %v304
  %385 = vmatprep.subr.bf16.mxu0 0
  %386 = vmatpush1.bf16.msra.mxu0 %v305
  %387 = vmatprep.subr.bf16.mxu0 0
  %388 = vmatpush1.bf16.msra.mxu0 %v306
  %389 = vmatprep.subr.bf16.mxu0 0
  %390 = vmatpush1.bf16.msra.mxu0 %v307
  %391 = vmatprep.subr.bf16.mxu0 0
  %392 = vmatpush1.bf16.msra.mxu0 %v308
  %393 = vmatprep.subr.bf16.mxu0 0
  %394 = vmatpush1.bf16.msra.mxu0 %v309
  %395 = vmatprep.subr.bf16.mxu0 0
  %396 = vmatpush1.bf16.msra.mxu0 %v310
  %397 = vmatprep.subr.bf16.mxu0 0
  %398 = vmatpush1.bf16.msra.mxu0 %v311
  %399 = vmatprep.subr.bf16.mxu0 0
  %400 = vmatpush1.bf16.msra.mxu0 %v312
  %401 = vmatprep.mubr.bf16.mxu0 %v151
  %402 = vmatmul.mubr.bf16.gmra.mrb[0].mxu0 %v150
  %v403 = vpop.f32.mrb[0].mxu0
  %v404 = vadd.f32 %v94, %v403
  %v405 = vpop.f32.mrb[0].mxu0
  %v406 = vpop.f32.mrb[0].mxu0
  %v407 = vadd.f32 %v94, %v406
  %v408 = vpop.f32.mrb[0].mxu0
  %409 = vmatprep.mubr.bf16.mxu0 %v155
  %410 = vmatmul.mubr.bf16.gmra.mrb[0].mxu0 %v154
  %v411 = vpop.f32.mrb[0].mxu0
  %v412 = vadd.f32 %v94, %v411
  %v413 = vpop.f32.mrb[0].mxu0
  %v414 = vpop.f32.mrb[0].mxu0
  %v415 = vadd.f32 %v94, %v414
  %v416 = vpop.f32.mrb[0].mxu0
  %417 = vmatprep.mubr.bf16.mxu0 %v159
  %418 = vmatmul.mubr.bf16.gmra.mrb[0].mxu0 %v158
  %v419 = vpop.f32.mrb[0].mxu0
  %v420 = vadd.f32 %v94, %v419
  %v421 = vpop.f32.mrb[0].mxu0
  %v422 = vpop.f32.mrb[0].mxu0
  %v423 = vadd.f32 %v94, %v422
  %v424 = vpop.f32.mrb[0].mxu0
  %425 = vmatprep.mubr.bf16.mxu0 %v163
  %426 = vmatmul.mubr.bf16.gmra.mrb[0].mxu0 %v162
  %v427 = vpop.f32.mrb[0].mxu0
  %v428 = vadd.f32 %v94, %v427
  %v429 = vpop.f32.mrb[0].mxu0
  %v430 = vpop.f32.mrb[0].mxu0
  %v431 = vadd.f32 %v94, %v430
  %v432 = vpop.f32.mrb[0].mxu0
  %433 = vmatprep.mubr.bf16.mxu0 %v167
  %434 = vmatmul.mubr.bf16.gmra.mrb[0].mxu0 %v166
  %v435 = vpop.f32.mrb[0].mxu0
  %v436 = vadd.f32 %v94, %v435
  %v437 = vpop.f32.mrb[0].mxu0
  %v438 = vpop.f32.mrb[0].mxu0
  %v439 = vpop.f32.mrb[0].mxu0
  %440 = vdwg.mxu0
  %441 = vmatprep.subr.bf16.mxu0 0
  %442 = vmatpush1.bf16.msra.mxu0 %v313
  %443 = vmatprep.subr.bf16.mxu0 0
  %444 = vmatpush1.bf16.msra.mxu0 %v314
  %445 = vmatprep.subr.bf16.mxu0 0
  %446 = vmatpush1.bf16.msra.mxu0 %v315
  %447 = vmatprep.subr.bf16.mxu0 0
  %448 = vmatpush1.bf16.msra.mxu0 %v316
  %449 = vmatprep.subr.bf16.mxu0 0
  %450 = vmatpush1.bf16.msra.mxu0 %v317
  %451 = vmatprep.subr.bf16.mxu0 0
  %452 = vmatpush1.bf16.msra.mxu0 %v318
  %453 = vmatprep.subr.bf16.mxu0 0
  %454 = vmatpush1.bf16.msra.mxu0 %v319
  %455 = vmatprep.subr.bf16.mxu0 0
  %456 = vmatpush1.bf16.msra.mxu0 %v320
  %457 = vmatprep.subr.bf16.mxu0 0
  %458 = vmatpush1.bf16.msra.mxu0 %v321
  %459 = vmatprep.subr.bf16.mxu0 0
  %460 = vmatpush1.bf16.msra.mxu0 %v322
  %461 = vmatprep.subr.bf16.mxu0 0
  %462 = vmatpush1.bf16.msra.mxu0 %v323
  %463 = vmatprep.subr.bf16.mxu0 0
  %464 = vmatpush1.bf16.msra.mxu0 %v324
  %465 = vmatprep.subr.bf16.mxu0 0
  %466 = vmatpush1.bf16.msra.mxu0 0
  %467 = vmatprep.subr.bf16.mxu0 0
  %468 = vmatpush1.bf16.msra.mxu0 0
  %469 = vmatprep.subr.bf16.mxu0 0
  %470 = vmatpush1.bf16.msra.mxu0 0
  %471 = vmatprep.subr.bf16.mxu0 0
  %472 = vmatpush1.bf16.msra.mxu0 0
  %473 = vmatprep.mubr.bf16.mxu0 %v355
  %474 = vmatmul.mubr.bf16.gmra.mrb[0].mxu0 %v152
  %v475 = vpop.f32.mrb[0].mxu0
  %v476 = vadd.f32 %v404, %v475
  %v477 = vpop.f32.mrb[0].mxu0
  %v478 = vpop.f32.mrb[0].mxu0
  %v479 = vadd.f32 %v407, %v478
  %v480 = vpop.f32.mrb[0].mxu0
  %481 = vmatprep.mubr.bf16.mxu0 %v358
  %482 = vmatmul.mubr.bf16.gmra.mrb[0].mxu0 %v156
  %v483 = vpop.f32.mrb[0].mxu0
  %v484 = vadd.f32 %v412, %v483
  %v485 = vpop.f32.mrb[0].mxu0
  %v486 = vpop.f32.mrb[0].mxu0
  %v487 = vadd.f32 %v415, %v486
  %v488 = vpop.f32.mrb[0].mxu0
  %489 = vmatprep.mubr.bf16.mxu0 %v361
  %490 = vmatmul.mubr.bf16.gmra.mrb[0].mxu0 %v160
  %v491 = vpop.f32.mrb[0].mxu0
  %v492 = vadd.f32 %v420, %v491
  %v493 = vpop.f32.mrb[0].mxu0
  %v494 = vpop.f32.mrb[0].mxu0
  %v495 = vadd.f32 %v423, %v494
  %v496 = vpop.f32.mrb[0].mxu0
  %497 = vmatprep.mubr.bf16.mxu0 %v364
  %498 = vmatmul.mubr.bf16.gmra.mrb[0].mxu0 %v164
  %v499 = vpop.f32.mrb[0].mxu0
  %v500 = vadd.f32 %v428, %v499
  %v501 = vpop.f32.mrb[0].mxu0
  %v502 = vpop.f32.mrb[0].mxu0
  %v503 = vadd.f32 %v431, %v502
  %v504 = vpop.f32.mrb[0].mxu0
  %505 = vmatprep.mubr.bf16.mxu0 %v367
  %506 = vmatmul.mubr.bf16.gmra.mrb[0].mxu0 %v168
  %v507 = vpop.f32.mrb[0].mxu0
  %v508 = vadd.f32 %v436, %v507
  %v509 = vpop.f32.mrb[0].mxu0
  %v510 = vpop.f32.mrb[0].mxu0
  %v511 = vpop.f32.mrb[0].mxu0
  %512 = vdwg.mxu0
  %v513 = vmax.f32 %v476, 0.0
  %v514 = vmax.f32 %v479, 0.0
  %v515 = vmax.f32 %v484, 0.0
  %v516 = vmax.f32 %v487, 0.0
  %v517 = vmax.f32 %v492, 0.0
  %v518 = vmax.f32 %v495, 0.0
  %v519 = vmax.f32 %v500, 0.0
  %v520 = vmax.f32 %v503, 0.0
  %v521 = vmax.f32 %v508, 0.0
  %522 = vst.msk [vmem:[%s3] sm:$0xff] %vm353, %v513
  %523 = vst.msk [vmem:[%s3 + $0x8] sm:$0xff] %vm353, %v514
  %524 = vst.msk [vmem:[%s3 + $0x10] sm:$0xff] %vm353, %v515
  %525 = vst.msk [vmem:[%s3 + $0x18] sm:$0xff] %vm353, %v516
  %526 = vst.msk [vmem:[%s3 + $0x20] sm:$0xff] %vm353, %v517
  %527 = vst.msk [vmem:[%s3 + $0x28] sm:$0xff] %vm353, %v518
  %528 = vst.msk [vmem:[%s3 + $0x30] sm:$0xff] %vm353, %v519
  %529 = vst.msk [vmem:[%s3 + $0x38] sm:$0xff] %vm353, %v520
  %530 = vst.msk [vmem:[%s3 + $0x40] sm:$0xff] %vm353, %v521
  // Predicated region
  $region14: #{stem_forward.16} parent=0 // pred_check
    _
  $region15: #{stem_forward.16} parent=0 // pred_check_branch
    %532 = sbr.rel (0) target = $region17
  $region16: #{stem_forward.16} parent=0 // pred_region
    _
  $region17: #{stem_forward.16} parent=0 // pred_fallthru
    _
  // Predicated region
  $region18: #{stem_forward.16} parent=0 // pred_check
    _
  $region19: #{stem_forward.16} parent=0 // pred_check_branch
    %534 = sbr.rel (0) target = $region21
  $region20: #{stem_forward.16} parent=0 // pred_region
    _
  $region21: #{stem_forward.16} parent=0 // pred_fallthru
    _

// kernel: stem_forward.19
$region0: #{stem_forward.19}
  #allocation0 [shape = 'u32[]', space=smem, size = 0x4, offset = 0x4, fixed_abs, tag = 'smem constant byte address 0x4 - core index']
  #allocation1 [shape = 'u32[144,128]{1,0:T(1,128)}', space=vmem, size = 0x12000, scoped, tag = 'internal scratch']
  %s0 = inlined_call_operand.vmem [shape: bf16[8,1728], index: 0, kind: input, shape index: {}]
  %s1 = inlined_call_operand.vmem [shape: bf16[1728,192], index: 1, kind: input, shape index: {}]
  %s2 = inlined_call_operand.vmem [shape: f32[1,192], index: 2, kind: input, shape index: {}]
  %s3 = inlined_call_operand.vmem [shape: f32[8,192], index: 3, kind: output, shape index: {}]
  %s4 = sld [smem:[#allocation0]]
  $region22: #{stem_forward.19} parent=0
    _
  %s6 = ssub.s32 1, %s4
  %s7 = scalar_select 0, %s6, %s4
  // Predicated region
  $region2: #{stem_forward.19} parent=0 // pred_check
    _
  $region3: #{stem_forward.19} parent=0 // pred_check_branch
    %9 = sbr.rel (0) target = $region5
  $region4: #{stem_forward.19} parent=0 // pred_region
    _
  $region5: #{stem_forward.19} parent=0 // pred_fallthru
    _
  // Predicated region
  $region6: #{stem_forward.19} parent=0 // pred_check
    _
  $region7: #{stem_forward.19} parent=0 // pred_check_branch
    %11 = sbr.rel (0) target = $region9
  $region8: #{stem_forward.19} parent=0 // pred_region
    _
  $region9: #{stem_forward.19} parent=0 // pred_fallthru
    _
  // Predicated region
  $region10: #{stem_forward.19} parent=0 // pred_check
    _
  $region11: #{stem_forward.19} parent=0 // pred_check_branch
    %13 = sbr.rel (0) target = $region13
  $region12: #{stem_forward.19} parent=0 // pred_region
    _
  $region13: #{stem_forward.19} parent=0 // pred_fallthru
    _
  %v15 = vld [vmem:[%s0] sm:$0xff]
  %v16 = vld [vmem:[%s0 + $0x8] sm:$0xff]
  %v17 = vld [vmem:[%s0 + $0x10] sm:$0xff]
  %v18 = vld [vmem:[%s0 + $0x18] sm:$0xff]
  %v19 = vld [vmem:[%s0 + $0x20] sm:$0xff]
  %v20 = vld [vmem:[%s0 + $0x28] sm:$0xff]
  %v21 = vld [vmem:[%s0 + $0x30] sm:$0xff]
  %v22 = vld [vmem:[%s1] sm:$0xff]
  %v23 = vld [vmem:[%s1 + $0x8] sm:$0xff]
  %v24 = vld [vmem:[%s1 + $0x10] sm:$0xff]
  %v25 = vld [vmem:[%s1 + $0x18] sm:$0xff]
  %v26 = vld [vmem:[%s1 + $0x20] sm:$0xff]
  %v27 = vld [vmem:[%s1 + $0x28] sm:$0xff]
  %v28 = vld [vmem:[%s1 + $0x30] sm:$0xff]
  %v29 = vld [vmem:[%s1 + $0x38] sm:$0xff]
  %v30 = vld [vmem:[%s1 + $0x40] sm:$0xff]
  %v31 = vld [vmem:[%s1 + $0x48] sm:$0xff]
  %v32 = vld [vmem:[%s1 + $0x50] sm:$0xff]
  %v33 = vld [vmem:[%s1 + $0x58] sm:$0xff]
  %v34 = vld [vmem:[%s1 + $0x60] sm:$0xff]
  %v35 = vld [vmem:[%s1 + $0x68] sm:$0xff]
  %v36 = vld [vmem:[%s1 + $0x70] sm:$0xff]
  %v37 = vld [vmem:[%s1 + $0x78] sm:$0xff]
  %v38 = vld [vmem:[%s1 + $0x80] sm:$0xff]
  %v39 = vld [vmem:[%s1 + $0x88] sm:$0xff]
  %v40 = vld [vmem:[%s1 + $0x90] sm:$0xff]
  %v41 = vld [vmem:[%s1 + $0x98] sm:$0xff]
  %v42 = vld [vmem:[%s1 + $0xa0] sm:$0xff]
  %v43 = vld [vmem:[%s1 + $0xa8] sm:$0xff]
  %v44 = vld [vmem:[%s1 + $0xb0] sm:$0xff]
  %v45 = vld [vmem:[%s1 + $0xb8] sm:$0xff]
  %v46 = vld [vmem:[%s1 + $0xc0] sm:$0xff]
  %v47 = vld [vmem:[%s1 + $0xc8] sm:$0xff]
  %v48 = vld [vmem:[%s1 + $0xd0] sm:$0xff]
  %v49 = vld [vmem:[%s1 + $0xd8] sm:$0xff]
  %v50 = vld [vmem:[%s1 + $0xe0] sm:$0xff]
  %v51 = vld [vmem:[%s1 + $0xe8] sm:$0xff]
  %v52 = vld [vmem:[%s1 + $0xf0] sm:$0xff]
  %v53 = vld [vmem:[%s1 + $0xf8] sm:$0xff]
  %v54 = vld [vmem:[%s1 + $0x100] sm:$0xff]
  %v55 = vld [vmem:[%s1 + $0x108] sm:$0xff]
  %v56 = vld [vmem:[%s1 + $0x110] sm:$0xff]
  %v57 = vld [vmem:[%s1 + $0x118] sm:$0xff]
  %v58 = vld [vmem:[%s1 + $0x120] sm:$0xff]
  %v59 = vld [vmem:[%s1 + $0x128] sm:$0xff]
  %v60 = vld [vmem:[%s1 + $0x130] sm:$0xff]
  %v61 = vld [vmem:[%s1 + $0x138] sm:$0xff]
  %v62 = vld [vmem:[%s1 + $0x140] sm:$0xff]
  %v63 = vld [vmem:[%s1 + $0x148] sm:$0xff]
  %v64 = vld [vmem:[%s1 + $0x150] sm:$0xff]
  %v65 = vld [vmem:[%s1 + $0x158] sm:$0xff]
  %v66 = vld [vmem:[%s1 + $0x160] sm:$0xff]
  %v67 = vld [vmem:[%s1 + $0x168] sm:$0xff]
  %v68 = vld [vmem:[%s1 + $0x170] sm:$0xff]
  %v69 = vld [vmem:[%s1 + $0x178] sm:$0xff]
  %v70 = vld [vmem:[%s1 + $0x180] sm:$0xff]
  %v71 = vld [vmem:[%s1 + $0x188] sm:$0xff]
  %v72 = vld [vmem:[%s1 + $0x190] sm:$0xff]
  %v73 = vld [vmem:[%s1 + $0x198] sm:$0xff]
  %v74 = vld [vmem:[%s1 + $0x1a0] sm:$0xff]
  %v75 = vld [vmem:[%s1 + $0x1a8] sm:$0xff]
  %v76 = vld [vmem:[%s1 + $0x1b0] sm:$0xff]
  %v77 = vld [vmem:[%s1 + $0x1b8] sm:$0xff]
  %v78 = vld [vmem:[%s1 + $0x1c0] sm:$0xff]
  %v79 = vld [vmem:[%s1 + $0x1c8] sm:$0xff]
  %v80 = vld [vmem:[%s1 + $0x1d0] sm:$0xff]
  %v81 = vld [vmem:[%s1 + $0x1d8] sm:$0xff]
  %v82 = vld [vmem:[%s1 + $0x1e0] sm:$0xff]
  %v83 = vld [vmem:[%s1 + $0x1e8] sm:$0xff]
  %v84 = vld [vmem:[%s1 + $0x1f0] sm:$0xff]
  %v85 = vld [vmem:[%s1 + $0x1f8] sm:$0xff]
  %v86 = vld [vmem:[%s1 + $0x200] sm:$0xff]
  %v87 = vld [vmem:[%s1 + $0x208] sm:$0xff]
  %v88 = vld [vmem:[%s1 + $0x210] sm:$0xff]
  %v89 = vld [vmem:[%s1 + $0x218] sm:$0xff]
  %v90 = vld [vmem:[%s1 + $0x220] sm:$0xff]
  %v91 = vld [vmem:[%s1 + $0x228] sm:$0xff]
  %v92 = vld [vmem:[%s1 + $0x230] sm:$0xff]
  %v93 = vld [vmem:[%s1 + $0x238] sm:$0xff]
  %v94 = vld [vmem:[%s1 + $0x240] sm:$0xff]
  %v95 = vld [vmem:[%s1 + $0x248] sm:$0xff]
  %v96 = vld [vmem:[%s1 + $0x250] sm:$0xff]
  %v97 = vld [vmem:[%s1 + $0x258] sm:$0xff]
  %v98 = vld [vmem:[%s1 + $0x260] sm:$0xff]
  %v99 = vld [vmem:[%s1 + $0x268] sm:$0xff]
  %v100 = vld [vmem:[%s1 + $0x270] sm:$0xff]
  %v101 = vld [vmem:[%s1 + $0x278] sm:$0xff]
  %v102 = vld [vmem:[%s1 + $0x280] sm:$0xff]
  %v103 = vld [vmem:[%s1 + $0x288] sm:$0xff]
  %v104 = vld [vmem:[%s1 + $0x290] sm:$0xff]
  %v105 = vld [vmem:[%s1 + $0x298] sm:$0xff]
  %v106 = vld [vmem:[%s1 + $0x2a0] sm:$0xff]
  %v107 = vld [vmem:[%s1 + $0x2a8] sm:$0xff]
  %v108 = vld [vmem:[%s1 + $0x2b0] sm:$0xff]
  %v109 = vld [vmem:[%s1 + $0x2b8] sm:$0xff]
  %v110 = vld [vmem:[%s1 + $0x2c0] sm:$0xff]
  %v111 = vld [vmem:[%s1 + $0x2c8] sm:$0xff]
  %v112 = vld [vmem:[%s1 + $0x2d0] sm:$0xff]
  %v113 = vld [vmem:[%s1 + $0x2d8] sm:$0xff]
  %v114 = vld [vmem:[%s1 + $0x2e0] sm:$0xff]
  %v115 = vld [vmem:[%s1 + $0x2e8] sm:$0xff]
  %v116 = vld [vmem:[%s1 + $0x2f0] sm:$0xff]
  %v117 = vld [vmem:[%s1 + $0x2f8] sm:$0xff]
  %v118 = vld [vmem:[%s1 + $0x300] sm:$0xff]
  %v119 = vld [vmem:[%s1 + $0x308] sm:$0xff]
  %v120 = vld [vmem:[%s1 + $0x310] sm:$0xff]
  %v121 = vld [vmem:[%s1 + $0x318] sm:$0xff]
  %v122 = vld [vmem:[%s1 + $0x320] sm:$0xff]
  %v123 = vld [vmem:[%s1 + $0x328] sm:$0xff]
  %v124 = vld [vmem:[%s1 + $0x330] sm:$0xff]
  %v125 = vld [vmem:[%s1 + $0x338] sm:$0xff]
  %v126 = vld [vmem:[%s1 + $0x340] sm:$0xff]
  %v127 = vld [vmem:[%s1 + $0x348] sm:$0xff]
  %v128 = vld [vmem:[%s1 + $0x350] sm:$0xff]
  %v129 = vld [vmem:[%s1 + $0x358] sm:$0xff]
  %v130 = vld [vmem:[%s1 + $0x360] sm:$0xff]
  %v131 = vld [vmem:[%s1 + $0x368] sm:$0xff]
  %v132 = vld [vmem:[%s1 + $0x370] sm:$0xff]
  %v133 = vld [vmem:[%s1 + $0x378] sm:$0xff]
  %v134 = vld [vmem:[%s1 + $0x380] sm:$0xff]
  %v135 = vld [vmem:[%s1 + $0x388] sm:$0xff]
  %v136 = vld [vmem:[%s1 + $0x390] sm:$0xff]
  %v137 = vld [vmem:[%s1 + $0x398] sm:$0xff]
  %v138 = vld [vmem:[%s1 + $0x3a0] sm:$0xff]
  %v139 = vld [vmem:[%s1 + $0x3a8] sm:$0xff]
  %v140 = vld [vmem:[%s1 + $0x3b0] sm:$0xff]
  %v141 = vld [vmem:[%s1 + $0x3b8] sm:$0xff]
  %v142 = vld [vmem:[%s1 + $0x3c0] sm:$0xff]
  %v143 = vld [vmem:[%s1 + $0x3c8] sm:$0xff]
  %v144 = vld [vmem:[%s1 + $0x3d0] sm:$0xff]
  %v145 = vld [vmem:[%s1 + $0x3d8] sm:$0xff]
  %v146 = vld [vmem:[%s1 + $0x3e0] sm:$0xff]
  %v147 = vld [vmem:[%s1 + $0x3e8] sm:$0xff]
  %v148 = vld [vmem:[%s1 + $0x3f0] sm:$0xff]
  %v149 = vld [vmem:[%s1 + $0x3f8] sm:$0xff]
  %v150 = vld [vmem:[%s1 + $0x400] sm:$0xff]
  %v151 = vld [vmem:[%s1 + $0x408] sm:$0xff]
  %v152 = vld [vmem:[%s1 + $0x410] sm:$0xff]
  %v153 = vld [vmem:[%s1 + $0x418] sm:$0xff]
  %v154 = vld [vmem:[%s1 + $0x420] sm:$0xff]
  %v155 = vld [vmem:[%s1 + $0x428] sm:$0xff]
  %v156 = vld [vmem:[%s1 + $0x430] sm:$0xff]
  %v157 = vld [vmem:[%s1 + $0x438] sm:$0xff]
  %v158 = vld [vmem:[%s1 + $0x440] sm:$0xff]
  %v159 = vld [vmem:[%s1 + $0x448] sm:$0xff]
  %v160 = vld [vmem:[%s1 + $0x450] sm:$0xff]
  %v161 = vld [vmem:[%s1 + $0x458] sm:$0xff]
  %v162 = vld [vmem:[%s1 + $0x460] sm:$0xff]
  %v163 = vld [vmem:[%s1 + $0x468] sm:$0xff]
  %v164 = vld [vmem:[%s1 + $0x470] sm:$0xff]
  %v165 = vld [vmem:[%s1 + $0x478] sm:$0xff]
  %v166 = vld [vmem:[%s1 + $0x480] sm:$0xff]
  %v167 = vld [vmem:[%s1 + $0x488] sm:$0xff]
  %v168 = vld [vmem:[%s1 + $0x490] sm:$0xff]
  %v169 = vld [vmem:[%s1 + $0x498] sm:$0xff]
  %v170 = vld [vmem:[%s1 + $0x4a0] sm:$0xff]
  %v171 = vld [vmem:[%s1 + $0x4a8] sm:$0xff]
  %v172 = vld [vmem:[%s1 + $0x4b0] sm:$0xff]
  %v173 = vld [vmem:[%s1 + $0x4b8] sm:$0xff]
  %v174 = vld [vmem:[%s1 + $0x4c0] sm:$0xff]
  %v175 = vld [vmem:[%s1 + $0x4c8] sm:$0xff]
  %v176 = vld [vmem:[%s1 + $0x4d0] sm:$0xff]
  %v177 = vld [vmem:[%s1 + $0x4d8] sm:$0xff]
  %v178 = vld [vmem:[%s1 + $0x4e0] sm:$0xff]
  %v179 = vld [vmem:[%s1 + $0x4e8] sm:$0xff]
  %v180 = vld [vmem:[%s1 + $0x4f0] sm:$0xff]
  %v181 = vld [vmem:[%s1 + $0x4f8] sm:$0xff]
  %v182 = vld [vmem:[%s1 + $0x500] sm:$0xff]
  %v183 = vld [vmem:[%s1 + $0x508] sm:$0xff]
  %v184 = vld [vmem:[%s1 + $0x510] sm:$0xff]
  %v185 = vld [vmem:[%s1 + $0x518] sm:$0xff]
  %v186 = vld [vmem:[%s1 + $0x520] sm:$0xff]
  %v187 = vld [vmem:[%s1 + $0x528] sm:$0xff]
  %v188 = vld [vmem:[%s1 + $0x530] sm:$0xff]
  %v189 = vld [vmem:[%s1 + $0x538] sm:$0xff]
  %v190 = vld [vmem:[%s1 + $0x540] sm:$0xff]
  %v191 = vld [vmem:[%s1 + $0x548] sm:$0xff]
  %v192 = vld [vmem:[%s1 + $0x550] sm:$0xff]
  %v193 = vld [vmem:[%s1 + $0x558] sm:$0xff]
  %v194 = vld [vmem:[%s1 + $0x560] sm:$0xff]
  %v195 = vld [vmem:[%s1 + $0x568] sm:$0xff]
  %v196 = vld [vmem:[%s1 + $0x570] sm:$0xff]
  %v197 = vld [vmem:[%s1 + $0x578] sm:$0xff]
  %v198 = vld [vmem:[%s1 + $0x580] sm:$0xff]
  %v199 = vld [vmem:[%s1 + $0x588] sm:$0xff]
  %v200 = vld [vmem:[%s1 + $0x590] sm:$0xff]
  %v201 = vld [vmem:[%s1 + $0x598] sm:$0xff]
  %v202 = vld [vmem:[%s1 + $0x5a0] sm:$0xff]
  %v203 = vld [vmem:[%s1 + $0x5a8] sm:$0xff]
  %v204 = vld [vmem:[%s1 + $0x5b0] sm:$0xff]
  %v205 = vld [vmem:[%s1 + $0x5b8] sm:$0xff]
  %v206 = vld [vmem:[%s1 + $0x5c0] sm:$0xff]
  %v207 = vld [vmem:[%s1 + $0x5c8] sm:$0xff]
  %v208 = vld [vmem:[%s1 + $0x5d0] sm:$0xff]
  %v209 = vld [vmem:[%s1 + $0x5d8] sm:$0xff]
  %v210 = vld [vmem:[%s1 + $0x5e0] sm:$0xff]
  %v211 = vld [vmem:[%s1 + $0x5e8] sm:$0xff]
  %v212 = vld [vmem:[%s1 + $0x5f0] sm:$0xff]
  %v213 = vld [vmem:[%s1 + $0x5f8] sm:$0xff]
  %v214 = vld [vmem:[%s1 + $0x600] sm:$0xff]
  %v215 = vld [vmem:[%s1 + $0x608] sm:$0xff]
  %v216 = vld [vmem:[%s1 + $0x610] sm:$0xff]
  %v217 = vld [vmem:[%s1 + $0x618] sm:$0xff]
  %v218 = vld [vmem:[%s1 + $0x620] sm:$0xff]
  %v219 = vld [vmem:[%s1 + $0x628] sm:$0xff]
  %v220 = vld [vmem:[%s1 + $0x630] sm:$0xff]
  %v221 = vld [vmem:[%s1 + $0x638] sm:$0xff]
  %v222 = vld [vmem:[%s1 + $0x640] sm:$0xff]
  %v223 = vld [vmem:[%s1 + $0x648] sm:$0xff]
  %v224 = vld [vmem:[%s1 + $0x650] sm:$0xff]
  %v225 = vld [vmem:[%s1 + $0x658] sm:$0xff]
  %v226 = vld [vmem:[%s1 + $0x660] sm:$0xff]
  %v227 = vld [vmem:[%s1 + $0x668] sm:$0xff]
  %v228 = vld [vmem:[%s1 + $0x670] sm:$0xff]
  %v229 = vld [vmem:[%s1 + $0x678] sm:$0xff]
  %v230 = vld [vmem:[%s1 + $0x680] sm:$0xff]
  %v231 = vld [vmem:[%s1 + $0x688] sm:$0xff]
  %v232 = vld [vmem:[%s1 + $0x690] sm:$0xff]
  %v233 = vld [vmem:[%s1 + $0x698] sm:$0xff]
  %v234 = vld [vmem:[%s1 + $0x6a0] sm:$0xff]
  %v235 = vld [vmem:[%s1 + $0x6a8] sm:$0xff]
  %v236 = vld [vmem:[%s1 + $0x6b0] sm:$0xff]
  %v237 = vld [vmem:[%s1 + $0x6b8] sm:$0xff]
  %v238 = vld [vmem:[%s2] sm:$0x3]
  %v240 = vlaneseq
  %v241 = vshrl.u32 %v240, 7
  %v242 = vsub.s32 0, %v241
  %v243 = vrot.slane %v238, %v242
  %v244 = vlaneseq
  %v245 = vshrl.u32 %v244, 7
  %v246 = vsub.s32 1, %v245
  %v247 = vrot.slane %v238, %v246
  %v257 = vunpack.c.l.b16 %v15
  %v258 = vunpack.c.h.b16 %v15
  %v259 = vunpack.c.l.b16 %v16
  %v260 = vunpack.c.h.b16 %v16
  %v261 = vunpack.c.l.b16 %v17
  %v262 = vunpack.c.h.b16 %v17
  %v263 = vunpack.c.l.b16 %v18
  %v264 = vunpack.c.h.b16 %v18
  %v265 = vunpack.c.l.b16 %v19
  %v266 = vunpack.c.h.b16 %v19
  %v267 = vunpack.c.l.b16 %v20
  %v268 = vunpack.c.h.b16 %v20
  %v269 = vunpack.c.l.b16 %v21
  %v270 = vunpack.c.h.b16 %v21
  %v271 = vpack.c.b16 %v257, %v257
  %v272 = vpack.c.b16 %v258, %v258
  %v273 = vpack.c.b16 %v259, %v259
  %v274 = vpack.c.b16 %v260, %v260
  %v275 = vpack.c.b16 %v261, %v261
  %v276 = vpack.c.b16 %v262, %v262
  %v277 = vpack.c.b16 %v263, %v263
  %v278 = vpack.c.b16 %v264, %v264
  %v279 = vpack.c.b16 %v265, %v265
  %v280 = vpack.c.b16 %v266, %v266
  %v281 = vpack.c.b16 %v267, %v267
  %v282 = vpack.c.b16 %v268, %v268
  %v283 = vpack.c.b16 %v269, %v269
  %v284 = vpack.c.b16 %v270, %v270
  %v514 = vunpack.c.l.b16 %v22
  %v515 = vunpack.c.h.b16 %v22
  %v516 = vunpack.c.l.b16 %v23
  %v517 = vunpack.c.h.b16 %v23
  %v518 = vunpack.c.l.b16 %v24
  %v519 = vunpack.c.h.b16 %v24
  %v520 = vunpack.c.l.b16 %v25
  %v521 = vunpack.c.h.b16 %v25
  %v522 = vunpack.c.l.b16 %v26
  %v523 = vunpack.c.h.b16 %v26
  %v524 = vunpack.c.l.b16 %v27
  %v525 = vunpack.c.h.b16 %v27
  %v526 = vunpack.c.l.b16 %v28
  %v527 = vunpack.c.h.b16 %v28
  %v528 = vunpack.c.l.b16 %v29
  %v529 = vunpack.c.h.b16 %v29
  %v530 = vunpack.c.l.b16 %v30
  %v531 = vunpack.c.h.b16 %v30
  %v532 = vunpack.c.l.b16 %v31
  %v533 = vunpack.c.h.b16 %v31
  %v534 = vunpack.c.l.b16 %v32
  %v535 = vunpack.c.h.b16 %v32
  %v536 = vunpack.c.l.b16 %v33
  %v537 = vunpack.c.h.b16 %v33
  %v538 = vunpack.c.l.b16 %v34
  %v539 = vunpack.c.h.b16 %v34
  %v540 = vunpack.c.l.b16 %v35
  %v541 = vunpack.c.h.b16 %v35
  %v542 = vunpack.c.l.b16 %v36
  %v543 = vunpack.c.h.b16 %v36
  %v544 = vunpack.c.l.b16 %v37
  %v545 = vunpack.c.h.b16 %v37
  %v546 = vunpack.c.l.b16 %v38
  %v547 = vunpack.c.h.b16 %v38
  %v548 = vunpack.c.l.b16 %v39
  %v549 = vunpack.c.h.b16 %v39
  %v550 = vunpack.c.l.b16 %v40
  %v551 = vunpack.c.h.b16 %v40
  %v552 = vunpack.c.l.b16 %v41
  %v553 = vunpack.c.h.b16 %v41
  %v554 = vunpack.c.l.b16 %v42
  %v555 = vunpack.c.h.b16 %v42
  %v556 = vunpack.c.l.b16 %v43
  %v557 = vunpack.c.h.b16 %v43
  %v558 = vunpack.c.l.b16 %v44
  %v559 = vunpack.c.h.b16 %v44
  %v560 = vunpack.c.l.b16 %v45
  %v561 = vunpack.c.h.b16 %v45
  %v562 = vunpack.c.l.b16 %v46
  %v563 = vunpack.c.h.b16 %v46
  %v564 = vunpack.c.l.b16 %v47
  %v565 = vunpack.c.h.b16 %v47
  %v566 = vunpack.c.l.b16 %v48
  %v567 = vunpack.c.h.b16 %v48
  %v568 = vunpack.c.l.b16 %v49
  %v569 = vunpack.c.h.b16 %v49
  %v570 = vunpack.c.l.b16 %v50
  %v571 = vunpack.c.h.b16 %v50
  %v572 = vunpack.c.l.b16 %v51
  %v573 = vunpack.c.h.b16 %v51
  %v574 = vunpack.c.l.b16 %v52
  %v575 = vunpack.c.h.b16 %v52
  %v576 = vunpack.c.l.b16 %v53
  %v577 = vunpack.c.h.b16 %v53
  %v578 = vunpack.c.l.b16 %v54
  %v579 = vunpack.c.h.b16 %v54
  %v580 = vunpack.c.l.b16 %v55
  %v581 = vunpack.c.h.b16 %v55
  %v582 = vunpack.c.l.b16 %v56
  %v583 = vunpack.c.h.b16 %v56
  %v584 = vunpack.c.l.b16 %v57
  %v585 = vunpack.c.h.b16 %v57
  %v586 = vunpack.c.l.b16 %v58
  %v587 = vunpack.c.h.b16 %v58
  %v588 = vunpack.c.l.b16 %v59
  %v589 = vunpack.c.h.b16 %v59
  %v590 = vunpack.c.l.b16 %v60
  %v591 = vunpack.c.h.b16 %v60
  %v592 = vunpack.c.l.b16 %v61
  %v593 = vunpack.c.h.b16 %v61
  %v594 = vunpack.c.l.b16 %v62
  %v595 = vunpack.c.h.b16 %v62
  %v596 = vunpack.c.l.b16 %v63
  %v597 = vunpack.c.h.b16 %v63
  %v598 = vunpack.c.l.b16 %v64
  %v599 = vunpack.c.h.b16 %v64
  %v600 = vunpack.c.l.b16 %v65
  %v601 = vunpack.c.h.b16 %v65
  %v602 = vunpack.c.l.b16 %v66
  %v603 = vunpack.c.h.b16 %v66
  %v604 = vunpack.c.l.b16 %v67
  %v605 = vunpack.c.h.b16 %v67
  %v606 = vunpack.c.l.b16 %v68
  %v607 = vunpack.c.h.b16 %v68
  %v608 = vunpack.c.l.b16 %v69
  %v609 = vunpack.c.h.b16 %v69
  %v610 = vunpack.c.l.b16 %v70
  %v611 = vunpack.c.h.b16 %v70
  %v612 = vunpack.c.l.b16 %v71
  %v613 = vunpack.c.h.b16 %v71
  %v614 = vunpack.c.l.b16 %v72
  %v615 = vunpack.c.h.b16 %v72
  %v616 = vunpack.c.l.b16 %v73
  %v617 = vunpack.c.h.b16 %v73
  %v618 = vunpack.c.l.b16 %v74
  %v619 = vunpack.c.h.b16 %v74
  %v620 = vunpack.c.l.b16 %v75
  %v621 = vunpack.c.h.b16 %v75
  %v622 = vunpack.c.l.b16 %v76
  %v623 = vunpack.c.h.b16 %v76
  %v624 = vunpack.c.l.b16 %v77
  %v625 = vunpack.c.h.b16 %v77
  %v626 = vunpack.c.l.b16 %v78
  %v627 = vunpack.c.h.b16 %v78
  %v628 = vunpack.c.l.b16 %v79
  %v629 = vunpack.c.h.b16 %v79
  %v630 = vunpack.c.l.b16 %v80
  %v631 = vunpack.c.h.b16 %v80
  %v632 = vunpack.c.l.b16 %v81
  %v633 = vunpack.c.h.b16 %v81
  %v634 = vunpack.c.l.b16 %v82
  %v635 = vunpack.c.h.b16 %v82
  %v636 = vunpack.c.l.b16 %v83
  %v637 = vunpack.c.h.b16 %v83
  %v638 = vunpack.c.l.b16 %v84
  %v639 = vunpack.c.h.b16 %v84
  %v640 = vunpack.c.l.b16 %v85
  %v641 = vunpack.c.h.b16 %v85
  %v642 = vunpack.c.l.b16 %v86
  %v643 = vunpack.c.h.b16 %v86
  %v644 = vunpack.c.l.b16 %v87
  %v645 = vunpack.c.h.b16 %v87
  %v646 = vunpack.c.l.b16 %v88
  %v647 = vunpack.c.h.b16 %v88
  %v648 = vunpack.c.l.b16 %v89
  %v649 = vunpack.c.h.b16 %v89
  %v650 = vunpack.c.l.b16 %v90
  %v651 = vunpack.c.h.b16 %v90
  %v652 = vunpack.c.l.b16 %v91
  %v653 = vunpack.c.h.b16 %v91
  %v654 = vunpack.c.l.b16 %v92
  %v655 = vunpack.c.h.b16 %v92
  %v656 = vunpack.c.l.b16 %v93
  %v657 = vunpack.c.h.b16 %v93
  %v658 = vunpack.c.l.b16 %v94
  %v659 = vunpack.c.h.b16 %v94
  %v660 = vunpack.c.l.b16 %v95
  %v661 = vunpack.c.h.b16 %v95
  %v662 = vunpack.c.l.b16 %v96
  %v663 = vunpack.c.h.b16 %v96
  %v664 = vunpack.c.l.b16 %v97
  %v665 = vunpack.c.h.b16 %v97
  %v666 = vunpack.c.l.b16 %v98
  %v667 = vunpack.c.h.b16 %v98
  %v668 = vunpack.c.l.b16 %v99
  %v669 = vunpack.c.h.b16 %v99
  %v670 = vunpack.c.l.b16 %v100
  %v671 = vunpack.c.h.b16 %v100
  %v672 = vunpack.c.l.b16 %v101
  %v673 = vunpack.c.h.b16 %v101
  %v674 = vunpack.c.l.b16 %v102
  %v675 = vunpack.c.h.b16 %v102
  %v676 = vunpack.c.l.b16 %v103
  %v677 = vunpack.c.h.b16 %v103
  %v678 = vunpack.c.l.b16 %v104
  %v679 = vunpack.c.h.b16 %v104
  %v680 = vunpack.c.l.b16 %v105
  %v681 = vunpack.c.h.b16 %v105
  %v682 = vunpack.c.l.b16 %v106
  %v683 = vunpack.c.h.b16 %v106
  %v684 = vunpack.c.l.b16 %v107
  %v685 = vunpack.c.h.b16 %v107
  %v686 = vunpack.c.l.b16 %v108
  %v687 = vunpack.c.h.b16 %v108
  %v688 = vunpack.c.l.b16 %v109
  %v689 = vunpack.c.h.b16 %v109
  %v690 = vunpack.c.l.b16 %v110
  %v691 = vunpack.c.h.b16 %v110
  %v692 = vunpack.c.l.b16 %v111
  %v693 = vunpack.c.h.b16 %v111
  %v694 = vunpack.c.l.b16 %v112
  %v695 = vunpack.c.h.b16 %v112
  %v696 = vunpack.c.l.b16 %v113
  %v697 = vunpack.c.h.b16 %v113
  %v698 = vunpack.c.l.b16 %v114
  %v699 = vunpack.c.h.b16 %v114
  %v700 = vunpack.c.l.b16 %v115
  %v701 = vunpack.c.h.b16 %v115
  %v702 = vunpack.c.l.b16 %v116
  %v703 = vunpack.c.h.b16 %v116
  %v704 = vunpack.c.l.b16 %v117
  %v705 = vunpack.c.h.b16 %v117
  %v706 = vunpack.c.l.b16 %v118
  %v707 = vunpack.c.h.b16 %v118
  %v708 = vunpack.c.l.b16 %v119
  %v709 = vunpack.c.h.b16 %v119
  %v710 = vunpack.c.l.b16 %v120
  %v711 = vunpack.c.h.b16 %v120
  %v712 = vunpack.c.l.b16 %v121
  %v713 = vunpack.c.h.b16 %v121
  %v714 = vunpack.c.l.b16 %v122
  %v715 = vunpack.c.h.b16 %v122
  %v716 = vunpack.c.l.b16 %v123
  %v717 = vunpack.c.h.b16 %v123
  %v718 = vunpack.c.l.b16 %v124
  %v719 = vunpack.c.h.b16 %v124
  %v720 = vunpack.c.l.b16 %v125
  %v721 = vunpack.c.h.b16 %v125
  %v722 = vunpack.c.l.b16 %v126
  %v723 = vunpack.c.h.b16 %v126
  %v724 = vunpack.c.l.b16 %v127
  %v725 = vunpack.c.h.b16 %v127
  %v726 = vunpack.c.l.b16 %v128
  %v727 = vunpack.c.h.b16 %v128
  %v728 = vunpack.c.l.b16 %v129
  %v729 = vunpack.c.h.b16 %v129
  %v730 = vunpack.c.l.b16 %v130
  %v731 = vunpack.c.h.b16 %v130
  %v732 = vunpack.c.l.b16 %v131
  %v733 = vunpack.c.h.b16 %v131
  %v734 = vunpack.c.l.b16 %v132
  %v735 = vunpack.c.h.b16 %v132
  %v736 = vunpack.c.l.b16 %v133
  %v737 = vunpack.c.h.b16 %v133
  %v738 = vunpack.c.l.b16 %v134
  %v739 = vunpack.c.h.b16 %v134
  %v740 = vunpack.c.l.b16 %v135
  %v741 = vunpack.c.h.b16 %v135
  %v742 = vunpack.c.l.b16 %v136
  %v743 = vunpack.c.h.b16 %v136
  %v744 = vunpack.c.l.b16 %v137
  %v745 = vunpack.c.h.b16 %v137
  %v746 = vunpack.c.l.b16 %v138
  %v747 = vunpack.c.h.b16 %v138
  %v748 = vunpack.c.l.b16 %v139
  %v749 = vunpack.c.h.b16 %v139
  %v750 = vunpack.c.l.b16 %v140
  %v751 = vunpack.c.h.b16 %v140
  %v752 = vunpack.c.l.b16 %v141
  %v753 = vunpack.c.h.b16 %v141
  %v754 = vunpack.c.l.b16 %v142
  %v755 = vunpack.c.h.b16 %v142
  %v756 = vunpack.c.l.b16 %v143
  %v757 = vunpack.c.h.b16 %v143
  %v758 = vunpack.c.l.b16 %v144
  %v759 = vunpack.c.h.b16 %v144
  %v760 = vunpack.c.l.b16 %v145
  %v761 = vunpack.c.h.b16 %v145
  %v762 = vunpack.c.l.b16 %v146
  %v763 = vunpack.c.h.b16 %v146
  %v764 = vunpack.c.l.b16 %v147
  %v765 = vunpack.c.h.b16 %v147
  %v766 = vunpack.c.l.b16 %v148
  %v767 = vunpack.c.h.b16 %v148
  %v768 = vunpack.c.l.b16 %v149
  %v769 = vunpack.c.h.b16 %v149
  %v770 = vunpack.c.l.b16 %v150
  %v771 = vunpack.c.h.b16 %v150
  %v772 = vunpack.c.l.b16 %v151
  %v773 = vunpack.c.h.b16 %v151
  %v774 = vunpack.c.l.b16 %v152
  %v775 = vunpack.c.h.b16 %v152
  %v776 = vunpack.c.l.b16 %v153
  %v777 = vunpack.c.h.b16 %v153
  %v778 = vunpack.c.l.b16 %v154
  %v779 = vunpack.c.h.b16 %v154
  %v780 = vunpack.c.l.b16 %v155
  %v781 = vunpack.c.h.b16 %v155
  %v782 = vunpack.c.l.b16 %v156
  %v783 = vunpack.c.h.b16 %v156
  %v784 = vunpack.c.l.b16 %v157
  %v785 = vunpack.c.h.b16 %v157
  %v786 = vunpack.c.l.b16 %v158
  %v787 = vunpack.c.h.b16 %v158
  %v788 = vunpack.c.l.b16 %v159
  %v789 = vunpack.c.h.b16 %v159
  %v790 = vunpack.c.l.b16 %v160
  %v791 = vunpack.c.h.b16 %v160
  %v792 = vunpack.c.l.b16 %v161
  %v793 = vunpack.c.h.b16 %v161
  %v794 = vunpack.c.l.b16 %v162
  %v795 = vunpack.c.h.b16 %v162
  %v796 = vunpack.c.l.b16 %v163
  %v797 = vunpack.c.h.b16 %v163
  %v798 = vunpack.c.l.b16 %v164
  %v799 = vunpack.c.h.b16 %v164
  %v800 = vunpack.c.l.b16 %v165
  %v801 = vunpack.c.h.b16 %v165
  %v802 = vunpack.c.l.b16 %v166
  %v803 = vunpack.c.h.b16 %v166
  %v804 = vunpack.c.l.b16 %v167
  %v805 = vunpack.c.h.b16 %v167
  %v806 = vunpack.c.l.b16 %v168
  %v807 = vunpack.c.h.b16 %v168
  %v808 = vunpack.c.l.b16 %v169
  %v809 = vunpack.c.h.b16 %v169
  %v810 = vunpack.c.l.b16 %v170
  %v811 = vunpack.c.h.b16 %v170
  %v812 = vunpack.c.l.b16 %v171
  %v813 = vunpack.c.h.b16 %v171
  %v814 = vunpack.c.l.b16 %v172
  %v815 = vunpack.c.h.b16 %v172
  %v816 = vunpack.c.l.b16 %v173
  %v817 = vunpack.c.h.b16 %v173
  %v818 = vunpack.c.l.b16 %v174
  %v819 = vunpack.c.h.b16 %v174
  %v820 = vunpack.c.l.b16 %v175
  %v821 = vunpack.c.h.b16 %v175
  %v822 = vunpack.c.l.b16 %v176
  %v823 = vunpack.c.h.b16 %v176
  %v824 = vunpack.c.l.b16 %v177
  %v825 = vunpack.c.h.b16 %v177
  %v826 = vunpack.c.l.b16 %v178
  %v827 = vunpack.c.h.b16 %v178
  %v828 = vunpack.c.l.b16 %v179
  %v829 = vunpack.c.h.b16 %v179
  %v830 = vunpack.c.l.b16 %v180
  %v831 = vunpack.c.h.b16 %v180
  %v832 = vunpack.c.l.b16 %v181
  %v833 = vunpack.c.h.b16 %v181
  %v834 = vunpack.c.l.b16 %v182
  %v835 = vunpack.c.h.b16 %v182
  %v836 = vunpack.c.l.b16 %v183
  %v837 = vunpack.c.h.b16 %v183
  %v838 = vunpack.c.l.b16 %v184
  %v839 = vunpack.c.h.b16 %v184
  %v840 = vunpack.c.l.b16 %v185
  %v841 = vunpack.c.h.b16 %v185
  %v842 = vunpack.c.l.b16 %v186
  %v843 = vunpack.c.h.b16 %v186
  %v844 = vunpack.c.l.b16 %v187
  %v845 = vunpack.c.h.b16 %v187
  %v846 = vunpack.c.l.b16 %v188
  %v847 = vunpack.c.h.b16 %v188
  %v848 = vunpack.c.l.b16 %v189
  %v849 = vunpack.c.h.b16 %v189
  %v850 = vunpack.c.l.b16 %v190
  %v851 = vunpack.c.h.b16 %v190
  %v852 = vunpack.c.l.b16 %v191
  %v853 = vunpack.c.h.b16 %v191
  %v854 = vunpack.c.l.b16 %v192
  %v855 = vunpack.c.h.b16 %v192
  %v856 = vunpack.c.l.b16 %v193
  %v857 = vunpack.c.h.b16 %v193
  %v858 = vunpack.c.l.b16 %v194
  %v859 = vunpack.c.h.b16 %v194
  %v860 = vunpack.c.l.b16 %v195
  %v861 = vunpack.c.h.b16 %v195
  %v862 = vunpack.c.l.b16 %v196
  %v863 = vunpack.c.h.b16 %v196
  %v864 = vunpack.c.l.b16 %v197
  %v865 = vunpack.c.h.b16 %v197
  %v866 = vunpack.c.l.b16 %v198
  %v867 = vunpack.c.h.b16 %v198
  %v868 = vunpack.c.l.b16 %v199
  %v869 = vunpack.c.h.b16 %v199
  %v870 = vunpack.c.l.b16 %v200
  %v871 = vunpack.c.h.b16 %v200
  %v872 = vunpack.c.l.b16 %v201
  %v873 = vunpack.c.h.b16 %v201
  %v874 = vunpack.c.l.b16 %v202
  %v875 = vunpack.c.h.b16 %v202
  %v876 = vunpack.c.l.b16 %v203
  %v877 = vunpack.c.h.b16 %v203
  %v878 = vunpack.c.l.b16 %v204
  %v879 = vunpack.c.h.b16 %v204
  %v880 = vunpack.c.l.b16 %v205
  %v881 = vunpack.c.h.b16 %v205
  %v882 = vunpack.c.l.b16 %v206
  %v883 = vunpack.c.h.b16 %v206
  %v884 = vunpack.c.l.b16 %v207
  %v885 = vunpack.c.h.b16 %v207
  %v886 = vunpack.c.l.b16 %v208
  %v887 = vunpack.c.h.b16 %v208
  %v888 = vunpack.c.l.b16 %v209
  %v889 = vunpack.c.h.b16 %v209
  %v890 = vunpack.c.l.b16 %v210
  %v891 = vunpack.c.h.b16 %v210
  %v892 = vunpack.c.l.b16 %v211
  %v893 = vunpack.c.h.b16 %v211
  %v894 = vunpack.c.l.b16 %v212
  %v895 = vunpack.c.h.b16 %v212
  %v896 = vunpack.c.l.b16 %v213
  %v897 = vunpack.c.h.b16 %v213
  %v898 = vunpack.c.l.b16 %v214
  %v899 = vunpack.c.h.b16 %v214
  %v900 = vunpack.c.l.b16 %v215
  %v901 = vunpack.c.h.b16 %v215
  %v902 = vunpack.c.l.b16 %v216
  %v903 = vunpack.c.h.b16 %v216
  %v904 = vunpack.c.l.b16 %v217
  %v905 = vunpack.c.h.b16 %v217
  %v906 = vunpack.c.l.b16 %v218
  %v907 = vunpack.c.h.b16 %v218
  %v908 = vunpack.c.l.b16 %v219
  %v909 = vunpack.c.h.b16 %v219
  %v910 = vunpack.c.l.b16 %v220
  %v911 = vunpack.c.h.b16 %v220
  %v912 = vunpack.c.l.b16 %v221
  %v913 = vunpack.c.h.b16 %v221
  %v914 = vunpack.c.l.b16 %v222
  %v915 = vunpack.c.h.b16 %v222
  %v916 = vunpack.c.l.b16 %v223
  %v917 = vunpack.c.h.b16 %v223
  %v918 = vunpack.c.l.b16 %v224
  %v919 = vunpack.c.h.b16 %v224
  %v920 = vunpack.c.l.b16 %v225
  %v921 = vunpack.c.h.b16 %v225
  %v922 = vunpack.c.l.b16 %v226
  %v923 = vunpack.c.h.b16 %v226
  %v924 = vunpack.c.l.b16 %v227
  %v925 = vunpack.c.h.b16 %v227
  %v926 = vunpack.c.l.b16 %v228
  %v927 = vunpack.c.h.b16 %v228
  %v928 = vunpack.c.l.b16 %v229
  %v929 = vunpack.c.h.b16 %v229
  %v930 = vunpack.c.l.b16 %v230
  %v931 = vunpack.c.h.b16 %v230
  %v932 = vunpack.c.l.b16 %v231
  %v933 = vunpack.c.h.b16 %v231
  %v934 = vunpack.c.l.b16 %v232
  %v935 = vunpack.c.h.b16 %v232
  %v936 = vunpack.c.l.b16 %v233
  %v937 = vunpack.c.h.b16 %v233
  %v938 = vunpack.c.l.b16 %v234
  %v939 = vunpack.c.h.b16 %v234
  %v940 = vunpack.c.l.b16 %v235
  %v941 = vunpack.c.h.b16 %v235
  %v942 = vunpack.c.l.b16 %v236
  %v943 = vunpack.c.h.b16 %v236
  %v944 = vunpack.c.l.b16 %v237
  %v945 = vunpack.c.h.b16 %v237
  %v946 = vpack.c.b16 %v516, %v514
  %v947 = vpack.c.b16 %v517, %v515
  %v948 = vpack.c.b16 %v520, %v518
  %v949 = vpack.c.b16 %v521, %v519
  %v950 = vpack.c.b16 %v524, %v522
  %v951 = vpack.c.b16 %v525, %v523
  %v952 = vpack.c.b16 %v528, %v526
  %v953 = vpack.c.b16 %v529, %v527
  %v954 = vpack.c.b16 %v532, %v530
  %v955 = vpack.c.b16 %v533, %v531
  %v956 = vpack.c.b16 %v536, %v534
  %v957 = vpack.c.b16 %v537, %v535
  %v958 = vpack.c.b16 %v540, %v538
  %v959 = vpack.c.b16 %v541, %v539
  %v960 = vpack.c.b16 %v544, %v542
  %v961 = vpack.c.b16 %v545, %v543
  %v962 = vpack.c.b16 %v548, %v546
  %v963 = vpack.c.b16 %v549, %v547
  %v964 = vpack.c.b16 %v552, %v550
  %v965 = vpack.c.b16 %v553, %v551
  %v966 = vpack.c.b16 %v556, %v554
  %v967 = vpack.c.b16 %v557, %v555
  %v968 = vpack.c.b16 %v560, %v558
  %v969 = vpack.c.b16 %v561, %v559
  %v970 = vpack.c.b16 %v564, %v562
  %v971 = vpack.c.b16 %v565, %v563
  %v972 = vpack.c.b16 %v568, %v566
  %v973 = vpack.c.b16 %v569, %v567
  %v974 = vpack.c.b16 %v572, %v570
  %v975 = vpack.c.b16 %v573, %v571
  %v976 = vpack.c.b16 %v576, %v574
  %v977 = vpack.c.b16 %v577, %v575
  %v978 = vpack.c.b16 %v580, %v578
  %v979 = vpack.c.b16 %v581, %v579
  %v980 = vpack.c.b16 %v584, %v582
  %v981 = vpack.c.b16 %v585, %v583
  %v982 = vpack.c.b16 %v588, %v586
  %v983 = vpack.c.b16 %v589, %v587
  %v984 = vpack.c.b16 %v592, %v590
  %v985 = vpack.c.b16 %v593, %v591
  %v986 = vpack.c.b16 %v596, %v594
  %v987 = vpack.c.b16 %v597, %v595
  %v988 = vpack.c.b16 %v600, %v598
  %v989 = vpack.c.b16 %v601, %v599
  %v990 = vpack.c.b16 %v604, %v602
  %v991 = vpack.c.b16 %v605, %v603
  %v992 = vpack.c.b16 %v608, %v606
  %v993 = vpack.c.b16 %v609, %v607
  %v994 = vpack.c.b16 %v612, %v610
  %v995 = vpack.c.b16 %v613, %v611
  %v996 = vpack.c.b16 %v616, %v614
  %v997 = vpack.c.b16 %v617, %v615
  %v998 = vpack.c.b16 %v620, %v618
  %v999 = vpack.c.b16 %v621, %v619
  %v1000 = vpack.c.b16 %v624, %v622
  %v1001 = vpack.c.b16 %v625, %v623
  %v1002 = vpack.c.b16 %v628, %v626
  %v1003 = vpack.c.b16 %v629, %v627
  %v1004 = vpack.c.b16 %v632, %v630
  %v1005 = vpack.c.b16 %v633, %v631
  %v1006 = vpack.c.b16 %v636, %v634
  %v1007 = vpack.c.b16 %v637, %v635
  %v1008 = vpack.c.b16 %v640, %v638
  %v1009 = vpack.c.b16 %v641, %v639
  %v1010 = vpack.c.b16 %v644, %v642
  %v1011 = vpack.c.b16 %v645, %v643
  %v1012 = vpack.c.b16 %v648, %v646
  %v1013 = vpack.c.b16 %v649, %v647
  %v1014 = vpack.c.b16 %v652, %v650
  %v1015 = vpack.c.b16 %v653, %v651
  %v1016 = vpack.c.b16 %v656, %v654
  %v1017 = vpack.c.b16 %v657, %v655
  %v1018 = vpack.c.b16 %v660, %v658
  %v1019 = vpack.c.b16 %v661, %v659
  %v1020 = vpack.c.b16 %v664, %v662
  %v1021 = vpack.c.b16 %v665, %v663
  %v1022 = vpack.c.b16 %v668, %v666
  %v1023 = vpack.c.b16 %v669, %v667
  %v1024 = vpack.c.b16 %v672, %v670
  %v1025 = vpack.c.b16 %v673, %v671
  %v1026 = vpack.c.b16 %v676, %v674
  %v1027 = vpack.c.b16 %v677, %v675
  %v1028 = vpack.c.b16 %v680, %v678
  %v1029 = vpack.c.b16 %v681, %v679
  %v1030 = vpack.c.b16 %v684, %v682
  %v1031 = vpack.c.b16 %v685, %v683
  %v1032 = vpack.c.b16 %v688, %v686
  %v1033 = vpack.c.b16 %v689, %v687
  %v1034 = vpack.c.b16 %v692, %v690
  %v1035 = vpack.c.b16 %v693, %v691
  %v1036 = vpack.c.b16 %v696, %v694
  %v1037 = vpack.c.b16 %v697, %v695
  %v1038 = vpack.c.b16 %v700, %v698
  %v1039 = vpack.c.b16 %v701, %v699
  %v1040 = vpack.c.b16 %v704, %v702
  %v1041 = vpack.c.b16 %v705, %v703
  %v1042 = vpack.c.b16 %v708, %v706
  %v1043 = vpack.c.b16 %v709, %v707
  %v1044 = vpack.c.b16 %v712, %v710
  %v1045 = vpack.c.b16 %v713, %v711
  %v1046 = vpack.c.b16 %v716, %v714
  %v1047 = vpack.c.b16 %v717, %v715
  %v1048 = vpack.c.b16 %v720, %v718
  %v1049 = vpack.c.b16 %v721, %v719
  %v1050 = vpack.c.b16 %v724, %v722
  %v1051 = vpack.c.b16 %v725, %v723
  %v1052 = vpack.c.b16 %v728, %v726
  %v1053 = vpack.c.b16 %v729, %v727
  %v1054 = vpack.c.b16 %v732, %v730
  %v1055 = vpack.c.b16 %v733, %v731
  %v1056 = vpack.c.b16 %v736, %v734
  %v1057 = vpack.c.b16 %v737, %v735
  %v1058 = vpack.c.b16 %v740, %v738
  %v1059 = vpack.c.b16 %v741, %v739
  %v1060 = vpack.c.b16 %v744, %v742
  %v1061 = vpack.c.b16 %v745, %v743
  %v1062 = vpack.c.b16 %v748, %v746
  %v1063 = vpack.c.b16 %v749, %v747
  %v1064 = vpack.c.b16 %v752, %v750
  %v1065 = vpack.c.b16 %v753, %v751
  %v1066 = vpack.c.b16 %v756, %v754
  %v1067 = vpack.c.b16 %v757, %v755
  %v1068 = vpack.c.b16 %v760, %v758
  %v1069 = vpack.c.b16 %v761, %v759
  %v1070 = vpack.c.b16 %v764, %v762
  %v1071 = vpack.c.b16 %v765, %v763
  %v1072 = vpack.c.b16 %v768, %v766
  %v1073 = vpack.c.b16 %v769, %v767
  %v1074 = vpack.c.b16 %v772, %v770
  %v1075 = vpack.c.b16 %v773, %v771
  %v1076 = vpack.c.b16 %v776, %v774
  %v1077 = vpack.c.b16 %v777, %v775
  %v1078 = vpack.c.b16 %v780, %v778
  %v1079 = vpack.c.b16 %v781, %v779
  %v1080 = vpack.c.b16 %v784, %v782
  %v1081 = vpack.c.b16 %v785, %v783
  %v1082 = vpack.c.b16 %v788, %v786
  %v1083 = vpack.c.b16 %v789, %v787
  %v1084 = vpack.c.b16 %v792, %v790
  %v1085 = vpack.c.b16 %v793, %v791
  %v1086 = vpack.c.b16 %v796, %v794
  %v1087 = vpack.c.b16 %v797, %v795
  %v1088 = vpack.c.b16 %v800, %v798
  %v1089 = vpack.c.b16 %v801, %v799
  %v1090 = vpack.c.b16 %v804, %v802
  %v1091 = vpack.c.b16 %v805, %v803
  %v1092 = vpack.c.b16 %v808, %v806
  %v1093 = vpack.c.b16 %v809, %v807
  %v1094 = vpack.c.b16 %v812, %v810
  %v1095 = vpack.c.b16 %v813, %v811
  %v1096 = vpack.c.b16 %v816, %v814
  %v1097 = vpack.c.b16 %v817, %v815
  %v1098 = vpack.c.b16 %v820, %v818
  %v1099 = vpack.c.b16 %v821, %v819
  %v1100 = vpack.c.b16 %v824, %v822
  %v1101 = vpack.c.b16 %v825, %v823
  %v1102 = vpack.c.b16 %v828, %v826
  %v1103 = vpack.c.b16 %v829, %v827
  %v1104 = vpack.c.b16 %v832, %v830
  %v1105 = vpack.c.b16 %v833, %v831
  %v1106 = vpack.c.b16 %v836, %v834
  %v1107 = vpack.c.b16 %v837, %v835
  %v1108 = vpack.c.b16 %v840, %v838
  %v1109 = vpack.c.b16 %v841, %v839
  %v1110 = vpack.c.b16 %v844, %v842
  %v1111 = vpack.c.b16 %v845, %v843
  %v1112 = vpack.c.b16 %v848, %v846
  %v1113 = vpack.c.b16 %v849, %v847
  %v1114 = vpack.c.b16 %v852, %v850
  %v1115 = vpack.c.b16 %v853, %v851
  %v1116 = vpack.c.b16 %v856, %v854
  %v1117 = vpack.c.b16 %v857, %v855
  %v1118 = vpack.c.b16 %v860, %v858
  %v1119 = vpack.c.b16 %v861, %v859
  %v1120 = vpack.c.b16 %v864, %v862
  %v1121 = vpack.c.b16 %v865, %v863
  %v1122 = vpack.c.b16 %v868, %v866
  %v1123 = vpack.c.b16 %v869, %v867
  %v1124 = vpack.c.b16 %v872, %v870
  %v1125 = vpack.c.b16 %v873, %v871
  %v1126 = vpack.c.b16 %v876, %v874
  %v1127 = vpack.c.b16 %v877, %v875
  %v1128 = vpack.c.b16 %v880, %v878
  %v1129 = vpack.c.b16 %v881, %v879
  %v1130 = vpack.c.b16 %v884, %v882
  %v1131 = vpack.c.b16 %v885, %v883
  %v1132 = vpack.c.b16 %v888, %v886
  %v1133 = vpack.c.b16 %v889, %v887
  %v1134 = vpack.c.b16 %v892, %v890
  %v1135 = vpack.c.b16 %v893, %v891
  %v1136 = vpack.c.b16 %v896, %v894
  %v1137 = vpack.c.b16 %v897, %v895
  %v1138 = vpack.c.b16 %v900, %v898
  %v1139 = vpack.c.b16 %v901, %v899
  %v1140 = vpack.c.b16 %v904, %v902
  %v1141 = vpack.c.b16 %v905, %v903
  %v1142 = vpack.c.b16 %v908, %v906
  %v1143 = vpack.c.b16 %v909, %v907
  %v1144 = vpack.c.b16 %v912, %v910
  %v1145 = vpack.c.b16 %v913, %v911
  %v1146 = vpack.c.b16 %v916, %v914
  %v1147 = vpack.c.b16 %v917, %v915
  %v1148 = vpack.c.b16 %v920, %v918
  %v1149 = vpack.c.b16 %v921, %v919
  %v1150 = vpack.c.b16 %v924, %v922
  %v1151 = vpack.c.b16 %v925, %v923
  %v1152 = vpack.c.b16 %v928, %v926
  %v1153 = vpack.c.b16 %v929, %v927
  %v1154 = vpack.c.b16 %v932, %v930
  %v1155 = vpack.c.b16 %v933, %v931
  %v1156 = vpack.c.b16 %v936, %v934
  %v1157 = vpack.c.b16 %v937, %v935
  %v1158 = vpack.c.b16 %v940, %v938
  %v1159 = vpack.c.b16 %v941, %v939
  %v1160 = vpack.c.b16 %v944, %v942
  %v1161 = vpack.c.b16 %v945, %v943
  %vm1378 = vcmask 523264
  %v1380 = vsel %vm1378, %v284, 0
  %1382 = vmatprep.subr.bf16.mxu0 %v947
  %1383 = vmatpush1.bf16.msra.mxu0 %v946
  %1384 = vmatprep.subr.bf16.mxu0 %v949
  %1385 = vmatpush1.bf16.msra.mxu0 %v948
  %1386 = vmatprep.subr.bf16.mxu0 %v951
  %1387 = vmatpush1.bf16.msra.mxu0 %v950
  %1388 = vmatprep.subr.bf16.mxu0 %v953
  %1389 = vmatpush1.bf16.msra.mxu0 %v952
  %1390 = vmatprep.subr.bf16.mxu0 %v955
  %1391 = vmatpush1.bf16.msra.mxu0 %v954
  %1392 = vmatprep.subr.bf16.mxu0 %v957
  %1393 = vmatpush1.bf16.msra.mxu0 %v956
  %1394 = vmatprep.subr.bf16.mxu0 %v959
  %1395 = vmatpush1.bf16.msra.mxu0 %v958
  %1396 = vmatprep.subr.bf16.mxu0 %v961
  %1397 = vmatpush1.bf16.msra.mxu0 %v960
  %1398 = vmatprep.subr.bf16.mxu0 %v963
  %1399 = vmatpush1.bf16.msra.mxu0 %v962
  %1400 = vmatprep.subr.bf16.mxu0 %v965
  %1401 = vmatpush1.bf16.msra.mxu0 %v964
  %1402 = vmatprep.subr.bf16.mxu0 %v967
  %1403 = vmatpush1.bf16.msra.mxu0 %v966
  %1404 = vmatprep.subr.bf16.mxu0 %v969
  %1405 = vmatpush1.bf16.msra.mxu0 %v968
  %1406 = vmatprep.subr.bf16.mxu0 %v971
  %1407 = vmatpush1.bf16.msra.mxu0 %v970
  %1408 = vmatprep.subr.bf16.mxu0 %v973
  %1409 = vmatpush1.bf16.msra.mxu0 %v972
  %1410 = vmatprep.subr.bf16.mxu0 %v975
  %1411 = vmatpush1.bf16.msra.mxu0 %v974
  %1412 = vmatprep.subr.bf16.mxu0 %v977
  %1413 = vmatpush1.bf16.msra.mxu0 %v976
  %1414 = vmatprep.mubr.bf16.mxu0 %v272
  %1415 = vmatmul.mubr.bf16.gmra.mrb[0].mxu0 %v271
  %v1416 = vpop.f32.mrb[0].mxu0
  %v1417 = vadd.f32 %v243, %v1416
  %v1418 = vpop.f32.mrb[0].mxu0
  %v1419 = vadd.f32 %v247, %v1418
  %v1420 = vpop.f32.mrb[0].mxu0
  %v1421 = vpop.f32.mrb[0].mxu0
  %1422 = vdwg.mxu0
  %1423 = vmatprep.subr.bf16.mxu0 %v979
  %1424 = vmatpush1.bf16.msra.mxu0 %v978
  %1425 = vmatprep.subr.bf16.mxu0 %v981
  %1426 = vmatpush1.bf16.msra.mxu0 %v980
  %1427 = vmatprep.subr.bf16.mxu0 %v983
  %1428 = vmatpush1.bf16.msra.mxu0 %v982
  %1429 = vmatprep.subr.bf16.mxu0 %v985
  %1430 = vmatpush1.bf16.msra.mxu0 %v984
  %1431 = vmatprep.subr.bf16.mxu0 %v987
  %1432 = vmatpush1.bf16.msra.mxu0 %v986
  %1433 = vmatprep.subr.bf16.mxu0 %v989
  %1434 = vmatpush1.bf16.msra.mxu0 %v988
  %1435 = vmatprep.subr.bf16.mxu0 %v991
  %1436 = vmatpush1.bf16.msra.mxu0 %v990
  %1437 = vmatprep.subr.bf16.mxu0 %v993
  %1438 = vmatpush1.bf16.msra.mxu0 %v992
  %1439 = vmatprep.subr.bf16.mxu0 %v995
  %1440 = vmatpush1.bf16.msra.mxu0 %v994
  %1441 = vmatprep.subr.bf16.mxu0 %v997
  %1442 = vmatpush1.bf16.msra.mxu0 %v996
  %1443 = vmatprep.subr.bf16.mxu0 %v999
  %1444 = vmatpush1.bf16.msra.mxu0 %v998
  %1445 = vmatprep.subr.bf16.mxu0 %v1001
  %1446 = vmatpush1.bf16.msra.mxu0 %v1000
  %1447 = vmatprep.subr.bf16.mxu0 %v1003
  %1448 = vmatpush1.bf16.msra.mxu0 %v1002
  %1449 = vmatprep.subr.bf16.mxu0 %v1005
  %1450 = vmatpush1.bf16.msra.mxu0 %v1004
  %1451 = vmatprep.subr.bf16.mxu0 %v1007
  %1452 = vmatpush1.bf16.msra.mxu0 %v1006
  %1453 = vmatprep.subr.bf16.mxu0 %v1009
  %1454 = vmatpush1.bf16.msra.mxu0 %v1008
  %1455 = vmatprep.mubr.bf16.mxu0 %v274
  %1456 = vmatmul.mubr.bf16.gmra.mrb[0].mxu0 %v273
  %v1457 = vpop.f32.mrb[0].mxu0
  %v1458 = vadd.f32 %v1417, %v1457
  %v1459 = vpop.f32.mrb[0].mxu0
  %v1460 = vadd.f32 %v1419, %v1459
  %v1461 = vpop.f32.mrb[0].mxu0
  %v1462 = vpop.f32.mrb[0].mxu0
  %1463 = vdwg.mxu0
  %1464 = vmatprep.subr.bf16.mxu0 %v1011
  %1465 = vmatpush1.bf16.msra.mxu0 %v1010
  %1466 = vmatprep.subr.bf16.mxu0 %v1013
  %1467 = vmatpush1.bf16.msra.mxu0 %v1012
  %1468 = vmatprep.subr.bf16.mxu0 %v1015
  %1469 = vmatpush1.bf16.msra.mxu0 %v1014
  %1470 = vmatprep.subr.bf16.mxu0 %v1017
  %1471 = vmatpush1.bf16.msra.mxu0 %v1016
  %1472 = vmatprep.subr.bf16.mxu0 %v1019
  %1473 = vmatpush1.bf16.msra.mxu0 %v1018
  %1474 = vmatprep.subr.bf16.mxu0 %v1021
  %1475 = vmatpush1.bf16.msra.mxu0 %v1020
  %1476 = vmatprep.subr.bf16.mxu0 %v1023
  %1477 = vmatpush1.bf16.msra.mxu0 %v1022
  %1478 = vmatprep.subr.bf16.mxu0 %v1025
  %1479 = vmatpush1.bf16.msra.mxu0 %v1024
  %1480 = vmatprep.subr.bf16.mxu0 %v1027
  %1481 = vmatpush1.bf16.msra.mxu0 %v1026
  %1482 = vmatprep.subr.bf16.mxu0 %v1029
  %1483 = vmatpush1.bf16.msra.mxu0 %v1028
  %1484 = vmatprep.subr.bf16.mxu0 %v1031
  %1485 = vmatpush1.bf16.msra.mxu0 %v1030
  %1486 = vmatprep.subr.bf16.mxu0 %v1033
  %1487 = vmatpush1.bf16.msra.mxu0 %v1032
  %1488 = vmatprep.subr.bf16.mxu0 %v1035
  %1489 = vmatpush1.bf16.msra.mxu0 %v1034
  %1490 = vmatprep.subr.bf16.mxu0 %v1037
  %1491 = vmatpush1.bf16.msra.mxu0 %v1036
  %1492 = vmatprep.subr.bf16.mxu0 %v1039
  %1493 = vmatpush1.bf16.msra.mxu0 %v1038
  %1494 = vmatprep.subr.bf16.mxu0 %v1041
  %1495 = vmatpush1.bf16.msra.mxu0 %v1040
  %1496 = vmatprep.mubr.bf16.mxu0 %v276
  %1497 = vmatmul.mubr.bf16.gmra.mrb[0].mxu0 %v275
  %v1498 = vpop.f32.mrb[0].mxu0
  %v1499 = vadd.f32 %v1458, %v1498
  %v1500 = vpop.f32.mrb[0].mxu0
  %v1501 = vadd.f32 %v1460, %v1500
  %v1502 = vpop.f32.mrb[0].mxu0
  %v1503 = vpop.f32.mrb[0].mxu0
  %1504 = vdwg.mxu0
  %1505 = vmatprep.subr.bf16.mxu0 %v1043
  %1506 = vmatpush1.bf16.msra.mxu0 %v1042
  %1507 = vmatprep.subr.bf16.mxu0 %v1045
  %1508 = vmatpush1.bf16.msra.mxu0 %v1044
  %1509 = vmatprep.subr.bf16.mxu0 %v1047
  %1510 = vmatpush1.bf16.msra.mxu0 %v1046
  %1511 = vmatprep.subr.bf16.mxu0 %v1049
  %1512 = vmatpush1.bf16.msra.mxu0 %v1048
  %1513 = vmatprep.subr.bf16.mxu0 %v1051
  %1514 = vmatpush1.bf16.msra.mxu0 %v1050
  %1515 = vmatprep.subr.bf16.mxu0 %v1053
  %1516 = vmatpush1.bf16.msra.mxu0 %v1052
  %1517 = vmatprep.subr.bf16.mxu0 %v1055
  %1518 = vmatpush1.bf16.msra.mxu0 %v1054
  %1519 = vmatprep.subr.bf16.mxu0 %v1057
  %1520 = vmatpush1.bf16.msra.mxu0 %v1056
  %1521 = vmatprep.subr.bf16.mxu0 %v1059
  %1522 = vmatpush1.bf16.msra.mxu0 %v1058
  %1523 = vmatprep.subr.bf16.mxu0 %v1061
  %1524 = vmatpush1.bf16.msra.mxu0 %v1060
  %1525 = vmatprep.subr.bf16.mxu0 %v1063
  %1526 = vmatpush1.bf16.msra.mxu0 %v1062
  %1527 = vmatprep.subr.bf16.mxu0 %v1065
  %1528 = vmatpush1.bf16.msra.mxu0 %v1064
  %1529 = vmatprep.subr.bf16.mxu0 %v1067
  %1530 = vmatpush1.bf16.msra.mxu0 %v1066
  %1531 = vmatprep.subr.bf16.mxu0 %v1069
  %1532 = vmatpush1.bf16.msra.mxu0 %v1068
  %1533 = vmatprep.subr.bf16.mxu0 %v1071
  %1534 = vmatpush1.bf16.msra.mxu0 %v1070
  %1535 = vmatprep.subr.bf16.mxu0 %v1073
  %1536 = vmatpush1.bf16.msra.mxu0 %v1072
  %1537 = vmatprep.mubr.bf16.mxu0 %v278
  %1538 = vmatmul.mubr.bf16.gmra.mrb[0].mxu0 %v277
  %v1539 = vpop.f32.mrb[0].mxu0
  %v1540 = vadd.f32 %v1499, %v1539
  %v1541 = vpop.f32.mrb[0].mxu0
  %v1542 = vadd.f32 %v1501, %v1541
  %v1543 = vpop.f32.mrb[0].mxu0
  %v1544 = vpop.f32.mrb[0].mxu0
  %1545 = vdwg.mxu0
  %1546 = vmatprep.subr.bf16.mxu0 %v1075
  %1547 = vmatpush1.bf16.msra.mxu0 %v1074
  %1548 = vmatprep.subr.bf16.mxu0 %v1077
  %1549 = vmatpush1.bf16.msra.mxu0 %v1076
  %1550 = vmatprep.subr.bf16.mxu0 %v1079
  %1551 = vmatpush1.bf16.msra.mxu0 %v1078
  %1552 = vmatprep.subr.bf16.mxu0 %v1081
  %1553 = vmatpush1.bf16.msra.mxu0 %v1080
  %1554 = vmatprep.subr.bf16.mxu0 %v1083
  %1555 = vmatpush1.bf16.msra.mxu0 %v1082
  %1556 = vmatprep.subr.bf16.mxu0 %v1085
  %1557 = vmatpush1.bf16.msra.mxu0 %v1084
  %1558 = vmatprep.subr.bf16.mxu0 %v1087
  %1559 = vmatpush1.bf16.msra.mxu0 %v1086
  %1560 = vmatprep.subr.bf16.mxu0 %v1089
  %1561 = vmatpush1.bf16.msra.mxu0 %v1088
  %1562 = vmatprep.subr.bf16.mxu0 %v1091
  %1563 = vmatpush1.bf16.msra.mxu0 %v1090
  %1564 = vmatprep.subr.bf16.mxu0 %v1093
  %1565 = vmatpush1.bf16.msra.mxu0 %v1092
  %1566 = vmatprep.subr.bf16.mxu0 %v1095
  %1567 = vmatpush1.bf16.msra.mxu0 %v1094
  %1568 = vmatprep.subr.bf16.mxu0 %v1097
  %1569 = vmatpush1.bf16.msra.mxu0 %v1096
  %1570 = vmatprep.subr.bf16.mxu0 %v1099
  %1571 = vmatpush1.bf16.msra.mxu0 %v1098
  %1572 = vmatprep.subr.bf16.mxu0 %v1101
  %1573 = vmatpush1.bf16.msra.mxu0 %v1100
  %1574 = vmatprep.subr.bf16.mxu0 %v1103
  %1575 = vmatpush1.bf16.msra.mxu0 %v1102
  %1576 = vmatprep.subr.bf16.mxu0 %v1105
  %1577 = vmatpush1.bf16.msra.mxu0 %v1104
  %1578 = vmatprep.mubr.bf16.mxu0 %v280
  %1579 = vmatmul.mubr.bf16.gmra.mrb[0].mxu0 %v279
  %v1580 = vpop.f32.mrb[0].mxu0
  %v1581 = vadd.f32 %v1540, %v1580
  %v1582 = vpop.f32.mrb[0].mxu0
  %v1583 = vadd.f32 %v1542, %v1582
  %v1584 = vpop.f32.mrb[0].mxu0
  %v1585 = vpop.f32.mrb[0].mxu0
  %1586 = vdwg.mxu0
  %1587 = vmatprep.subr.bf16.mxu0 %v1107
  %1588 = vmatpush1.bf16.msra.mxu0 %v1106
  %1589 = vmatprep.subr.bf16.mxu0 %v1109
  %1590 = vmatpush1.bf16.msra.mxu0 %v1108
  %1591 = vmatprep.subr.bf16.mxu0 %v1111
  %1592 = vmatpush1.bf16.msra.mxu0 %v1110
  %1593 = vmatprep.subr.bf16.mxu0 %v1113
  %1594 = vmatpush1.bf16.msra.mxu0 %v1112
  %1595 = vmatprep.subr.bf16.mxu0 %v1115
  %1596 = vmatpush1.bf16.msra.mxu0 %v1114
  %1597 = vmatprep.subr.bf16.mxu0 %v1117
  %1598 = vmatpush1.bf16.msra.mxu0 %v1116
  %1599 = vmatprep.subr.bf16.mxu0 %v1119
  %1600 = vmatpush1.bf16.msra.mxu0 %v1118
  %1601 = vmatprep.subr.bf16.mxu0 %v1121
  %1602 = vmatpush1.bf16.msra.mxu0 %v1120
  %1603 = vmatprep.subr.bf16.mxu0 %v1123
  %1604 = vmatpush1.bf16.msra.mxu0 %v1122
  %1605 = vmatprep.subr.bf16.mxu0 %v1125
  %1606 = vmatpush1.bf16.msra.mxu0 %v1124
  %1607 = vmatprep.subr.bf16.mxu0 %v1127
  %1608 = vmatpush1.bf16.msra.mxu0 %v1126
  %1609 = vmatprep.subr.bf16.mxu0 %v1129
  %1610 = vmatpush1.bf16.msra.mxu0 %v1128
  %1611 = vmatprep.subr.bf16.mxu0 %v1131
  %1612 = vmatpush1.bf16.msra.mxu0 %v1130
  %1613 = vmatprep.subr.bf16.mxu0 %v1133
  %1614 = vmatpush1.bf16.msra.mxu0 %v1132
  %1615 = vmatprep.subr.bf16.mxu0 %v1135
  %1616 = vmatpush1.bf16.msra.mxu0 %v1134
  %1617 = vmatprep.subr.bf16.mxu0 %v1137
  %1618 = vmatpush1.bf16.msra.mxu0 %v1136
  %1619 = vmatprep.mubr.bf16.mxu0 %v282
  %1620 = vmatmul.mubr.bf16.gmra.mrb[0].mxu0 %v281
  %v1621 = vpop.f32.mrb[0].mxu0
  %v1622 = vadd.f32 %v1581, %v1621
  %v1623 = vpop.f32.mrb[0].mxu0
  %v1624 = vadd.f32 %v1583, %v1623
  %v1625 = vpop.f32.mrb[0].mxu0
  %v1626 = vpop.f32.mrb[0].mxu0
  %1627 = vdwg.mxu0
  %1628 = vmatprep.subr.bf16.mxu0 %v1139
  %1629 = vmatpush1.bf16.msra.mxu0 %v1138
  %1630 = vmatprep.subr.bf16.mxu0 %v1141
  %1631 = vmatpush1.bf16.msra.mxu0 %v1140
  %1632 = vmatprep.subr.bf16.mxu0 %v1143
  %1633 = vmatpush1.bf16.msra.mxu0 %v1142
  %1634 = vmatprep.subr.bf16.mxu0 %v1145
  %1635 = vmatpush1.bf16.msra.mxu0 %v1144
  %1636 = vmatprep.subr.bf16.mxu0 %v1147
  %1637 = vmatpush1.bf16.msra.mxu0 %v1146
  %1638 = vmatprep.subr.bf16.mxu0 %v1149
  %1639 = vmatpush1.bf16.msra.mxu0 %v1148
  %1640 = vmatprep.subr.bf16.mxu0 %v1151
  %1641 = vmatpush1.bf16.msra.mxu0 %v1150
  %1642 = vmatprep.subr.bf16.mxu0 %v1153
  %1643 = vmatpush1.bf16.msra.mxu0 %v1152
  %1644 = vmatprep.subr.bf16.mxu0 %v1155
  %1645 = vmatpush1.bf16.msra.mxu0 %v1154
  %1646 = vmatprep.subr.bf16.mxu0 %v1157
  %1647 = vmatpush1.bf16.msra.mxu0 %v1156
  %1648 = vmatprep.subr.bf16.mxu0 %v1159
  %1649 = vmatpush1.bf16.msra.mxu0 %v1158
  %1650 = vmatprep.subr.bf16.mxu0 %v1161
  %1651 = vmatpush1.bf16.msra.mxu0 %v1160
  %1652 = vmatprep.subr.bf16.mxu0 0
  %1653 = vmatpush1.bf16.msra.mxu0 0
  %1654 = vmatprep.subr.bf16.mxu0 0
  %1655 = vmatpush1.bf16.msra.mxu0 0
  %1656 = vmatprep.subr.bf16.mxu0 0
  %1657 = vmatpush1.bf16.msra.mxu0 0
  %1658 = vmatprep.subr.bf16.mxu0 0
  %1659 = vmatpush1.bf16.msra.mxu0 0
  %1660 = vmatprep.mubr.bf16.mxu0 %v1380
  %1661 = vmatmul.mubr.bf16.gmra.mrb[0].mxu0 %v283
  %v1662 = vpop.f32.mrb[0].mxu0
  %v1663 = vadd.f32 %v1622, %v1662
  %v1664 = vpop.f32.mrb[0].mxu0
  %v1665 = vadd.f32 %v1624, %v1664
  %v1666 = vpop.f32.mrb[0].mxu0
  %v1667 = vpop.f32.mrb[0].mxu0
  %1668 = vdwg.mxu0
  %v1669 = vmax.f32 %v1663, 0.0
  %v1670 = vmax.f32 %v1665, 0.0
  %1671 = vst [vmem:[%s3] sm:$0xff] %v1669
  %1672 = vst.msk [vmem:[%s3 + $0x8] sm:$0xff] %vm1378, %v1670
  // Predicated region
  $region14: #{stem_forward.19} parent=0 // pred_check
    _
  $region15: #{stem_forward.19} parent=0 // pred_check_branch
    %1674 = sbr.rel (0) target = $region17
  $region16: #{stem_forward.19} parent=0 // pred_region
    _
  $region17: #{stem_forward.19} parent=0 // pred_fallthru
    _
  // Predicated region
  $region18: #{stem_forward.19} parent=0 // pred_check
    _
  $region19: #{stem_forward.19} parent=0 // pred_check_branch
    %1676 = sbr.rel (0) target = $region21
  $region20: #{stem_forward.19} parent=0 // pred_region
    _
  $region21: #{stem_forward.19} parent=0 // pred_fallthru
    _

</llo_original>
